<compile_context>
chip_gen: v7x
topology: tpu7x:2x2x1
jax: 0.10.0
libtpu: 0.0.40
codegen_flags: <defaults>
</compile_context>

<pallas_src>
import jax
import jax.numpy as jnp
from jax.experimental import pallas as pl
from jax.experimental.pallas import tpu as pltpu


def _conv_stats_kernel(xp_ref, w_ref, b_ref, y_ref, psum_ref, psumsq_ref):
    """Pass 1: 3x3 conv (+bias) for one image + partial BN statistics.

    xp_ref    : (1, H+2, W+2, Cin)  zero-padded, upsampled NHWC activation
    w_ref     : (9*Cin, Cout)       folded conv weight (tap-major, channel-minor)
    b_ref     : (1, Cout)           conv bias
    y_ref     : (1, Cout, H*W)      conv output, channel-major (lane-dense)
    psum_ref  : (1, 1, Cout)        per-image sum over (H, W)
    psumsq_ref: (1, 1, Cout)        per-image sum of squares over (H, W)
    """
    _, hp, wp, cin = xp_ref.shape
    hs, ws = hp - 2, wp - 2
    hw = hs * ws

    xp = xp_ref[0]                                   # (H+2, W+2, Cin), one load

    # In-VMEM im2col: nine shifted windows, folded into the contraction dim
    # (only sublane-offset slicing; the lane dim Cin stays untouched).
    cols = []
    for kh in range(3):
        for kw in range(3):
            win = xp[kh:kh + hs, kw:kw + ws, :]      # (H, W, Cin), static slice
            cols.append(win.reshape(hw, cin))        # leading-dim merge only
    p = jnp.concatenate(cols, axis=1)                # (H*W, 9*Cin)

    # Single MXU matmul with K = 9*Cin, f32 accumulation.
    acc = jnp.dot(p, w_ref[...], preferred_element_type=jnp.float32)
    acc = acc + b_ref[...]                           # (H*W, Cout)

    # Partial batch-norm statistics for this image (combined outside).
    psum_ref[0] = jnp.sum(acc, axis=0, keepdims=True)           # (1, Cout)
    psumsq_ref[0] = jnp.sum(acc * acc, axis=0, keepdims=True)   # (1, Cout)

    # Store transposed -> (Cout, H*W): unmasked full-lane stores, NCHW order.
    y_ref[0] = acc.T.astype(y_ref.dtype)


def _bn_relu_kernel(y_ref, scale_ref, shift_ref, o_ref):
    """Pass 2: fused BatchNorm affine + ReLU (one FMA + one max per element).

    y_ref     : (1, Cout, H*W)  conv output tile (lane-dense)
    scale_ref : (Cout, 1)       gamma * rsqrt(var + eps)
    shift_ref : (Cout, 1)       beta - mean * scale
    o_ref     : (1, Cout, H*W)  final output tile
    """
    y = y_ref[0]                                     # (Cout, H*W)
    z = y * scale_ref[...] + shift_ref[...]          # per-channel FMA
    o_ref[0] = jnp.maximum(z, 0.0).astype(o_ref.dtype)


def conv_up_bn_relu(x_nchw, w_oihw, conv_bias, bn_gamma, bn_beta, *, stride=1,
                    eps=1e-5):
    """Forward pass of ConvUpBNReLU.  x_nchw: (N, Cin, H, W) float32 -> NCHW out."""
    n, cin, h_in, w_in = x_nchw.shape
    cout = w_oihw.shape[0]
    h, w = h_in * stride, w_in * stride
    hw = h * w

    # --- layout glue (plain JAX; small vs. the removed 9x im2col traffic) ----
    # TODO(synk): fold the nearest-neighbour upsample into the kernel (read each
    # source row `stride` times) to avoid materializing the stride^2 tensor.
    x = jnp.repeat(jnp.repeat(x_nchw, stride, axis=2), stride, axis=3)
    x = jnp.transpose(x, (0, 2, 3, 1))                        # NHWC
    xp = jnp.pad(x, ((0, 0), (1, 1), (1, 1), (0, 0)))         # (N, H+2, W+2, Cin)

    # Conv weight (Cout, Cin, 3, 3) -> (3, 3, Cin, Cout) -> (9*Cin, Cout);
    # row ordering (kh, kw)-major / ci-minor matches the in-kernel im2col.
    w2d = jnp.transpose(w_oihw, (2, 3, 1, 0)).reshape(9 * cin, cout)
    w2d = w2d.astype(jnp.float32)
    b2d = conv_bias.reshape(1, cout).astype(jnp.float32)

    # --- pass 1: conv + bias, per-image partial BN statistics ---------------
    y1, psum, psumsq = pl.pallas_call(
        _conv_stats_kernel,
        out_shape=(
            jax.ShapeDtypeStruct((n, cout, hw), jnp.float32),
            jax.ShapeDtypeStruct((n, 1, cout), jnp.float32),
            jax.ShapeDtypeStruct((n, 1, cout), jnp.float32),
        ),
        grid=(n,),
        in_specs=[
            pl.BlockSpec((1, h + 2, w + 2, cin), lambda i: (i, 0, 0, 0)),
            pl.BlockSpec((9 * cin, cout), lambda i: (0, 0)),
            pl.BlockSpec((1, cout), lambda i: (0, 0)),
        ],
        out_specs=(
            pl.BlockSpec((1, cout, hw), lambda i: (i, 0, 0)),
            pl.BlockSpec((1, 1, cout), lambda i: (i, 0, 0)),
            pl.BlockSpec((1, 1, cout), lambda i: (i, 0, 0)),
        ),
        compiler_params=pltpu.CompilerParams(
            dimension_semantics=("parallel",)),
    )(xp, w2d, b2d)

    # Exact BatchNorm2d training-mode statistics over the full (N, H, W) extent
    # (biased variance), folded into a single per-channel scale/shift.
    count = jnp.float32(n * hw)
    mean = jnp.sum(psum[:, 0, :], axis=0) / count              # (Cout,)
    ex2 = jnp.sum(psumsq[:, 0, :], axis=0) / count
    var = jnp.maximum(ex2 - mean * mean, 0.0)
    scale = bn_gamma.astype(jnp.float32) * jax.lax.rsqrt(var + eps)
    shift = bn_beta.astype(jnp.float32) - mean * scale

    # --- pass 2: fused BN affine + ReLU on lane-dense (Cout, H*W) tiles ------
    out = pl.pallas_call(
        _bn_relu_kernel,
        out_shape=jax.ShapeDtypeStruct((n, cout, hw), x_nchw.dtype),
        grid=(n,),
        in_specs=[
            pl.BlockSpec((1, cout, hw), lambda i: (i, 0, 0)),
            pl.BlockSpec((cout, 1), lambda i: (0, 0)),
            pl.BlockSpec((cout, 1), lambda i: (0, 0)),
        ],
        out_specs=pl.BlockSpec((1, cout, hw), lambda i: (i, 0, 0)),
        compiler_params=pltpu.CompilerParams(
            dimension_semantics=("parallel",)),
    )(y1, scale.reshape(cout, 1), shift.reshape(cout, 1))

    # (N, Cout, H*W) is already NCHW element order -> free reshape, no transpose.
    # TODO(synk): for large H*W, add a row-tile grid axis with a 1-row halo via
    # manual DMA (BlockSpec cannot express overlapping windows).
    return out.reshape(n, cout, h, w)


def _reference(x_nchw, w_oihw, conv_bias, bn_gamma, bn_beta, *, stride, eps):
    """Pure-JAX reference of the same forward pass (for a sanity check)."""
    x = jnp.repeat(jnp.repeat(x_nchw, stride, axis=2), stride, axis=3)
    x = jnp.transpose(x, (0, 2, 3, 1))                        # NHWC
    w_hwio = jnp.transpose(w_oihw, (2, 3, 1, 0))              # HWIO
    y = jax.lax.conv_general_dilated(
        x, w_hwio, window_strides=(1, 1), padding=((1, 1), (1, 1)),
        dimension_numbers=("NHWC", "HWIO", "NHWC"))
    y = y + conv_bias
    mean = jnp.mean(y, axis=(0, 1, 2), keepdims=True)
    var = jnp.mean((y - mean) ** 2, axis=(0, 1, 2), keepdims=True)
    y = (y - mean) * jax.lax.rsqrt(var + eps) * bn_gamma + bn_beta
    y = jnp.maximum(y, 0.0)
    return jnp.transpose(y, (0, 3, 1, 2))                     # back to NCHW


if __name__ == "__main__":
    key = jax.random.PRNGKey(0)
    k_x, k_w, k_b = jax.random.split(key, 3)

    # Small, module-consistent shapes: nin=4, nout=8, stride=2 (the "Up" path).
    N, NIN, NOUT, H, W, STRIDE = 2, 4, 8, 16, 16, 2

    x = jax.random.normal(k_x, (N, NIN, H, W), dtype=jnp.float32)
    # Conv2d(nin, nout, 3, stride=1, padding=1) parameters (PyTorch OIHW layout)
    conv_w = 0.1 * jax.random.normal(k_w, (NOUT, NIN, 3, 3), dtype=jnp.float32)
    conv_b = 0.05 * jax.random.normal(k_b, (NOUT,), dtype=jnp.float32)
    # BatchNorm2d(nout) parameters at init
    bn_gamma = jnp.ones((NOUT,), dtype=jnp.float32)
    bn_beta = jnp.zeros((NOUT,), dtype=jnp.float32)

    out = conv_up_bn_relu(x, conv_w, conv_b, bn_gamma, bn_beta,
                          stride=STRIDE, eps=1e-5)
    out = jax.block_until_ready(out)

    ref = _reference(x, conv_w, conv_b, bn_gamma, bn_beta,
                     stride=STRIDE, eps=1e-5)
    assert out.shape == (N, NOUT, H * STRIDE, W * STRIDE)
    assert jnp.allclose(out, ref, atol=1e-3, rtol=1e-3)

    print("KERNEL_OK")
</pallas_src>

<mosaic_0001>
module attributes {stable_mosaic.version = 11 : i64} {
  func.func @_conv_stats_kernel(%arg0: i32, %arg1: memref<1x34x34x4xf32, #tpu.memory_space<vmem>>, %arg2: memref<36x8xf32, #tpu.memory_space<vmem>>, %arg3: memref<1x8xf32, #tpu.memory_space<vmem>>, %arg4: memref<1x8x1024xf32, #tpu.memory_space<vmem>>, %arg5: memref<1x1x8xf32, #tpu.memory_space<vmem>>, %arg6: memref<1x1x8xf32, #tpu.memory_space<vmem>>) attributes {dimension_semantics = [#tpu.dimension_semantics<parallel>], iteration_bounds = array<i64: 2>, scalar_prefetch = 0 : i64, scratch_operands = 0 : i64, tpu.core_type = #tpu.core_type<tc>, window_params = [{transform_indices = @transform_0, window_bounds = array<i64: 1, 34, 34, 4>}, {pipeline_mode = #tpu.pipeline_mode<synchronous>, transform_indices = @transform_1, window_bounds = array<i64: 36, 8>}, {pipeline_mode = #tpu.pipeline_mode<synchronous>, transform_indices = @transform_2, window_bounds = array<i64: 1, 8>}, {transform_indices = @transform_3, window_bounds = array<i64: 1, 8, 1024>}, {transform_indices = @transform_4, window_bounds = array<i64: 1, 1, 8>}, {transform_indices = @transform_5, window_bounds = array<i64: 1, 1, 8>}]} {
    %c0 = arith.constant 0 : index
    %c0_0 = arith.constant 0 : index
    %c0_1 = arith.constant 0 : index
    %c0_2 = arith.constant 0 : index
    %0 = vector.load %arg1[%c0, %c0_0, %c0_1, %c0_2] : memref<1x34x34x4xf32, #tpu.memory_space<vmem>>, vector<1x34x34x4xf32>
    %1 = vector.shape_cast %0 : vector<1x34x34x4xf32> to vector<34x34x4xf32>
    %2 = vector.extract_strided_slice %1 {offsets = [0, 0, 0], sizes = [32, 32, 4], strides = [1, 1, 1]} : vector<34x34x4xf32> to vector<32x32x4xf32>
    %3 = vector.shape_cast %2 : vector<32x32x4xf32> to vector<1024x4xf32>
    %4 = vector.extract_strided_slice %1 {offsets = [0, 1, 0], sizes = [32, 32, 4], strides = [1, 1, 1]} : vector<34x34x4xf32> to vector<32x32x4xf32>
    %5 = vector.shape_cast %4 : vector<32x32x4xf32> to vector<1024x4xf32>
    %6 = vector.extract_strided_slice %1 {offsets = [0, 2, 0], sizes = [32, 32, 4], strides = [1, 1, 1]} : vector<34x34x4xf32> to vector<32x32x4xf32>
    %7 = vector.shape_cast %6 : vector<32x32x4xf32> to vector<1024x4xf32>
    %8 = vector.extract_strided_slice %1 {offsets = [1, 0, 0], sizes = [32, 32, 4], strides = [1, 1, 1]} : vector<34x34x4xf32> to vector<32x32x4xf32>
    %9 = vector.shape_cast %8 : vector<32x32x4xf32> to vector<1024x4xf32>
    %10 = vector.extract_strided_slice %1 {offsets = [1, 1, 0], sizes = [32, 32, 4], strides = [1, 1, 1]} : vector<34x34x4xf32> to vector<32x32x4xf32>
    %11 = vector.shape_cast %10 : vector<32x32x4xf32> to vector<1024x4xf32>
    %12 = vector.extract_strided_slice %1 {offsets = [1, 2, 0], sizes = [32, 32, 4], strides = [1, 1, 1]} : vector<34x34x4xf32> to vector<32x32x4xf32>
    %13 = vector.shape_cast %12 : vector<32x32x4xf32> to vector<1024x4xf32>
    %14 = vector.extract_strided_slice %1 {offsets = [2, 0, 0], sizes = [32, 32, 4], strides = [1, 1, 1]} : vector<34x34x4xf32> to vector<32x32x4xf32>
    %15 = vector.shape_cast %14 : vector<32x32x4xf32> to vector<1024x4xf32>
    %16 = vector.extract_strided_slice %1 {offsets = [2, 1, 0], sizes = [32, 32, 4], strides = [1, 1, 1]} : vector<34x34x4xf32> to vector<32x32x4xf32>
    %17 = vector.shape_cast %16 : vector<32x32x4xf32> to vector<1024x4xf32>
    %18 = vector.extract_strided_slice %1 {offsets = [2, 2, 0], sizes = [32, 32, 4], strides = [1, 1, 1]} : vector<34x34x4xf32> to vector<32x32x4xf32>
    %19 = vector.shape_cast %18 : vector<32x32x4xf32> to vector<1024x4xf32>
    %20 = tpu.concatenate %3, %5, %7, %9, %11, %13, %15, %17, %19 in 1 : vector<1024x4xf32>, vector<1024x4xf32>, vector<1024x4xf32>, vector<1024x4xf32>, vector<1024x4xf32>, vector<1024x4xf32>, vector<1024x4xf32>, vector<1024x4xf32>, vector<1024x4xf32> -> vector<1024x36xf32>
    %c0_3 = arith.constant 0 : index
    %c0_4 = arith.constant 0 : index
    %21 = vector.load %arg2[%c0_3, %c0_4] : memref<36x8xf32, #tpu.memory_space<vmem>>, vector<36x8xf32>
    %cst = arith.constant dense<0.000000e+00> : vector<1024x8xf32>
    %22 = tpu.matmul %20, %21, %cst {dimension_numbers = #tpu.dot_dimension_numbers<[1], [0], [0], [1], [0, 0, 1, 1], [], []>} : vector<1024x36xf32>, vector<36x8xf32>, vector<1024x8xf32> -> vector<1024x8xf32>
    %c0_5 = arith.constant 0 : index
    %c0_6 = arith.constant 0 : index
    %23 = vector.load %arg3[%c0_5, %c0_6] : memref<1x8xf32, #tpu.memory_space<vmem>>, vector<1x8xf32>
    %24 = vector.broadcast %23 : vector<1x8xf32> to vector<1024x8xf32>
    %25 = arith.addf %22, %24 : vector<1024x8xf32>
    %cst_7 = arith.constant dense<0.000000e+00> : vector<8xf32>
    %26 = vector.multi_reduction <add>, %25, %cst_7 [0] : vector<1024x8xf32> to vector<8xf32>
    %27 = vector.shape_cast %26 : vector<8xf32> to vector<1x8xf32>
    %c0_8 = arith.constant 0 : index
    %c0_9 = arith.constant 0 : index
    %c0_10 = arith.constant 0 : index
    %28 = vector.load %arg5[%c0_8, %c0_9, %c0_10] : memref<1x1x8xf32, #tpu.memory_space<vmem>>, vector<1x1x8xf32>
    %29 = vector.shape_cast %28 : vector<1x1x8xf32> to vector<1x8xf32>
    %30 = vector.shape_cast %27 : vector<1x8xf32> to vector<1x1x8xf32>
    tpu.vector_store %arg5[%c0_8, %c0_9, %c0_10], %30 {strides = array<i32>} : memref<1x1x8xf32, #tpu.memory_space<vmem>>, vector<1x1x8xf32>,
    %31 = arith.mulf %25, %25 : vector<1024x8xf32>
    %cst_11 = arith.constant dense<0.000000e+00> : vector<8xf32>
    %32 = vector.multi_reduction <add>, %31, %cst_11 [0] : vector<1024x8xf32> to vector<8xf32>
    %33 = vector.shape_cast %32 : vector<8xf32> to vector<1x8xf32>
    %c0_12 = arith.constant 0 : index
    %c0_13 = arith.constant 0 : index
    %c0_14 = arith.constant 0 : index
    %34 = vector.load %arg6[%c0_12, %c0_13, %c0_14] : memref<1x1x8xf32, #tpu.memory_space<vmem>>, vector<1x1x8xf32>
    %35 = vector.shape_cast %34 : vector<1x1x8xf32> to vector<1x8xf32>
    %36 = vector.shape_cast %33 : vector<1x8xf32> to vector<1x1x8xf32>
    tpu.vector_store %arg6[%c0_12, %c0_13, %c0_14], %36 {strides = array<i32>} : memref<1x1x8xf32, #tpu.memory_space<vmem>>, vector<1x1x8xf32>,
    %37 = tpu.transpose %25, [1, 0] : vector<1024x8xf32> -> vector<8x1024xf32>
    %c0_15 = arith.constant 0 : index
    %c0_16 = arith.constant 0 : index
    %c0_17 = arith.constant 0 : index
    %38 = vector.load %arg4[%c0_15, %c0_16, %c0_17] : memref<1x8x1024xf32, #tpu.memory_space<vmem>>, vector<1x8x1024xf32>
    %39 = vector.shape_cast %38 : vector<1x8x1024xf32> to vector<8x1024xf32>
    %40 = vector.shape_cast %37 : vector<8x1024xf32> to vector<1x8x1024xf32>
    tpu.vector_store %arg4[%c0_15, %c0_16, %c0_17], %40 {strides = array<i32>} : memref<1x8x1024xf32, #tpu.memory_space<vmem>>, vector<1x8x1024xf32>,
    return
  }
  func.func @transform_0(%arg0: i32) -> (i32, i32, i32, i32) {
    %c0_i32 = arith.constant 0 : i32
    %c0_i32_0 = arith.constant 0 : i32
    %c0_i32_1 = arith.constant 0 : i32
    %c0_i32_2 = arith.constant 0 : i32
    return %arg0, %c0_i32, %c0_i32_0, %c0_i32_1 : i32, i32, i32, i32
  }
  func.func @transform_1(%arg0: i32) -> (i32, i32) {
    %c0_i32 = arith.constant 0 : i32
    %c0_i32_0 = arith.constant 0 : i32
    %c0_i32_1 = arith.constant 0 : i32
    return %c0_i32, %c0_i32_0 : i32, i32
  }
  func.func @transform_2(%arg0: i32) -> (i32, i32) {
    %c0_i32 = arith.constant 0 : i32
    %c0_i32_0 = arith.constant 0 : i32
    %c0_i32_1 = arith.constant 0 : i32
    return %c0_i32, %c0_i32_0 : i32, i32
  }
  func.func @transform_3(%arg0: i32) -> (i32, i32, i32) {
    %c0_i32 = arith.constant 0 : i32
    %c0_i32_0 = arith.constant 0 : i32
    %c0_i32_1 = arith.constant 0 : i32
    return %arg0, %c0_i32, %c0_i32_0 : i32, i32, i32
  }
  func.func @transform_4(%arg0: i32) -> (i32, i32, i32) {
    %c0_i32 = arith.constant 0 : i32
    %c0_i32_0 = arith.constant 0 : i32
    %c0_i32_1 = arith.constant 0 : i32
    return %arg0, %c0_i32, %c0_i32_0 : i32, i32, i32
  }
  func.func @transform_5(%arg0: i32) -> (i32, i32, i32) {
    %c0_i32 = arith.constant 0 : i32
    %c0_i32_0 = arith.constant 0 : i32
    %c0_i32_1 = arith.constant 0 : i32
    return %arg0, %c0_i32, %c0_i32_0 : i32, i32, i32
  }
}

</mosaic_0001>

<llo_original>
// kernel: tpu_custom_call.1
$region0: #{tpu_custom_call.1}
  #allocation0 [shape = 'u32[]', space=smem, size = 0x4, offset = 0x4, fixed_abs, tag = 'smem constant byte address 0x4 - core index']
  #allocation1 [shape = 'u32[144,128]{1,0:T(1,128)}', space=vmem, size = 0x12000, scoped, tag = 'internal scratch']
  %s0 = inlined_call_operand.vmem [shape: f32[2,34,34,4], index: 0, kind: input, shape index: {}]
  %s1 = inlined_call_operand.vmem [shape: f32[36,8], index: 1, kind: input, shape index: {}]
  %s2 = inlined_call_operand.vmem [shape: f32[1,8], index: 2, kind: input, shape index: {}]
  %s3 = inlined_call_operand.hbm [shape: f32[2,8,1024], index: 3, kind: output, shape index: {0}]
  %s4 = inlined_call_operand.hbm [shape: f32[2,1,8], index: 4, kind: output, shape index: {1}]
  %s5 = inlined_call_operand.hbm [shape: f32[2,1,8], index: 5, kind: output, shape index: {2}]
  %6 = xla_tuple %s3, %s4, %s5
  %s7 = sld [smem:[#allocation0]]
  $region61: #{tpu_custom_call.1} parent=0
    _
  %s9 = ssub.s32 1, %s7
  %s10 = scalar_select 0, %s9, %s7
  $region1: #{tpu_custom_call.1} parent=0
    #allocation2 [shape = 'u8[65536]{0}', space=vmem, size = 0x10000, scoped, tag = 'output window, operand 0']
    #allocation3 [shape = 's32[2]{0}', space=sflag, size = 0x8, scoped, tag = 'scoped memory for tpu_custom_call.1']
    #allocation4 [shape = 'u8[1024]{0}', space=vmem, size = 0x400, scoped, tag = 'output window, operand 1']
    #allocation5 [shape = 's32[2]{0}', space=sflag, size = 0x8, scoped, tag = 'scoped memory for tpu_custom_call.1']
    #allocation6 [shape = 'u8[1024]{0}', space=vmem, size = 0x400, scoped, tag = 'output window, operand 2']
    %11 = vsyncpa [#allocation3], 0
    %s12 = scalar_lea.sflag [#allocation3], 1
    %13 = vsyncpa %s12, 0
    %14 = vsyncpa [#allocation5], 0
    %s15 = scalar_lea.sflag [#allocation5], 1
    %16 = vsyncpa %s15, 0
    loop: start=0, step=1, limit=4
    $region2: #{tpu_custom_call.1} parent=1 // loop_pre_header
      _
    $region3: #{tpu_custom_call.1} parent=1 // loop_header
      %s18 = sphi 0, %s22
      %p19 = scmp.ge.s32.totalorder %s18, 4
      %s28 = sphi 0, %s30
      %s31 = sphi 0, %s28
      %s32 = sphi 0, %s31
      %s48 = sphi 0, %s32
      %s52 = sphi 0, %s52
      %s54 = sphi 0, %s52
      %s55 = sphi 0, %s54
      %s69 = sphi 0, %s55
      %s73 = sphi 0, %s73
      %s75 = sphi 0, %s73
      %s76 = sphi 0, %s75
      %s90 = sphi 0, %s76
      %s96 = sphi 0, %s98
      %s99 = sphi 0, %s96
      %s100 = sphi 0, %s99
      %s116 = sphi 0, %s100
      %s122 = sphi 0, %s124
      %s125 = sphi 0, %s122
      %s126 = sphi 0, %s125
      %s142 = sphi 0, %s126
      %s148 = sphi 0, %s150
      %s151 = sphi 0, %s148
      %s152 = sphi 0, %s151
      %s168 = sphi 0, %s152
    $region4: #{tpu_custom_call.1} parent=1 // loop_header_branch
      %21 = sbr.rel (%p19) target = $region8
    $region5: #{tpu_custom_call.1} parent=1 // loop_body
      %s23 = ssub.s32 %s18, 1
      %s24 = ssub.s32 %s18, 2
      %s25 = sadd.s32 %s18, 1
      %s26 = ssub.s32 %s18, %s25
      %p27 = scmp.eq.s32.totalorder %s26, 0
      %s29 = sadd.s32 %s28, 1
      %s30 = scalar_select %p27, %s28, %s29
      %p33 = pneg %p27
      %p34 = scmp.eq.s32.totalorder %s18, 1
      %p35 = por %p33, %p34
      %p36 = scmp.ne.s32.totalorder %s28, %s31
      %p37 = scmp.eq.s32.totalorder %s18, 0
      %p38 = por %p36, %p37
      %p39 = scmp.ne.s32.totalorder %s28, %s31
      %p40 = scmp.eq.s32.totalorder %s23, 1
      %p41 = por %p39, %p40
      %p42 = scmp.ne.s32.totalorder %s31, %s32
      %p43 = scmp.eq.s32.totalorder %s23, 0
      %p44 = por %p42, %p43
      %p45 = scmp.ne.s32.totalorder %s31, %s32
      %p46 = scmp.eq.s32.totalorder %s24, 1
      %p47 = por %p45, %p46
      %p49 = scmp.ne.s32.totalorder %s32, %s48
      %p50 = scmp.eq.s32.totalorder %s24, 0
      %p51 = por %p49, %p50
      %s53 = sadd.s32 %s52, 1
      %p56 = scmp.eq.s32.totalorder %s18, 1
      %p57 = scmp.ne.s32.totalorder %s52, %s54
      %p58 = scmp.eq.s32.totalorder %s18, 0
      %p59 = por %p57, %p58
      %p60 = scmp.ne.s32.totalorder %s52, %s54
      %p61 = scmp.eq.s32.totalorder %s23, 1
      %p62 = por %p60, %p61
      %p63 = scmp.ne.s32.totalorder %s54, %s55
      %p64 = scmp.eq.s32.totalorder %s23, 0
      %p65 = por %p63, %p64
      %p66 = scmp.ne.s32.totalorder %s54, %s55
      %p67 = scmp.eq.s32.totalorder %s24, 1
      %p68 = por %p66, %p67
      %p70 = scmp.ne.s32.totalorder %s55, %s69
      %p71 = scmp.eq.s32.totalorder %s24, 0
      %p72 = por %p70, %p71
      %s74 = sadd.s32 %s73, 1
      %p77 = scmp.eq.s32.totalorder %s18, 1
      %p78 = scmp.ne.s32.totalorder %s73, %s75
      %p79 = scmp.eq.s32.totalorder %s18, 0
      %p80 = por %p78, %p79
      %p81 = scmp.ne.s32.totalorder %s73, %s75
      %p82 = scmp.eq.s32.totalorder %s23, 1
      %p83 = por %p81, %p82
      %p84 = scmp.ne.s32.totalorder %s75, %s76
      %p85 = scmp.eq.s32.totalorder %s23, 0
      %p86 = por %p84, %p85
      %p87 = scmp.ne.s32.totalorder %s75, %s76
      %p88 = scmp.eq.s32.totalorder %s24, 1
      %p89 = por %p87, %p88
      %p91 = scmp.ne.s32.totalorder %s76, %s90
      %p92 = scmp.eq.s32.totalorder %s24, 0
      %p93 = por %p91, %p92
      %s94 = ssub.s32 %s18, %s25
      %p95 = scmp.eq.s32.totalorder %s94, 0
      %s97 = sadd.s32 %s96, 1
      %s98 = scalar_select %p95, %s96, %s97
      %p101 = pneg %p95
      %p102 = scmp.eq.s32.totalorder %s18, 1
      %p103 = por %p101, %p102
      %p104 = scmp.ne.s32.totalorder %s96, %s99
      %p105 = scmp.eq.s32.totalorder %s18, 0
      %p106 = por %p104, %p105
      %p107 = scmp.ne.s32.totalorder %s96, %s99
      %p108 = scmp.eq.s32.totalorder %s23, 1
      %p109 = por %p107, %p108
      %p110 = scmp.ne.s32.totalorder %s99, %s100
      %p111 = scmp.eq.s32.totalorder %s23, 0
      %p112 = por %p110, %p111
      %p113 = scmp.ne.s32.totalorder %s99, %s100
      %p114 = scmp.eq.s32.totalorder %s24, 1
      %p115 = por %p113, %p114
      %p117 = scmp.ne.s32.totalorder %s100, %s116
      %p118 = scmp.eq.s32.totalorder %s24, 0
      %p119 = por %p117, %p118
      %s120 = ssub.s32 %s18, %s25
      %p121 = scmp.eq.s32.totalorder %s120, 0
      %s123 = sadd.s32 %s122, 1
      %s124 = scalar_select %p121, %s122, %s123
      %p127 = pneg %p121
      %p128 = scmp.eq.s32.totalorder %s18, 1
      %p129 = por %p127, %p128
      %p130 = scmp.ne.s32.totalorder %s122, %s125
      %p131 = scmp.eq.s32.totalorder %s18, 0
      %p132 = por %p130, %p131
      %p133 = scmp.ne.s32.totalorder %s122, %s125
      %p134 = scmp.eq.s32.totalorder %s23, 1
      %p135 = por %p133, %p134
      %p136 = scmp.ne.s32.totalorder %s125, %s126
      %p137 = scmp.eq.s32.totalorder %s23, 0
      %p138 = por %p136, %p137
      %p139 = scmp.ne.s32.totalorder %s125, %s126
      %p140 = scmp.eq.s32.totalorder %s24, 1
      %p141 = por %p139, %p140
      %p143 = scmp.ne.s32.totalorder %s126, %s142
      %p144 = scmp.eq.s32.totalorder %s24, 0
      %p145 = por %p143, %p144
      %s146 = ssub.s32 %s18, %s25
      %p147 = scmp.eq.s32.totalorder %s146, 0
      %s149 = sadd.s32 %s148, 1
      %s150 = scalar_select %p147, %s148, %s149
      %p153 = pneg %p147
      %p154 = scmp.eq.s32.totalorder %s18, 1
      %p155 = por %p153, %p154
      %p156 = scmp.ne.s32.totalorder %s148, %s151
      %p157 = scmp.eq.s32.totalorder %s18, 0
      %p158 = por %p156, %p157
      %p159 = scmp.ne.s32.totalorder %s148, %s151
      %p160 = scmp.eq.s32.totalorder %s23, 1
      %p161 = por %p159, %p160
      %p162 = scmp.ne.s32.totalorder %s151, %s152
      %p163 = scmp.eq.s32.totalorder %s23, 0
      %p164 = por %p162, %p163
      %p165 = scmp.ne.s32.totalorder %s151, %s152
      %p166 = scmp.eq.s32.totalorder %s24, 1
      %p167 = por %p165, %p166
      %p169 = scmp.ne.s32.totalorder %s152, %s168
      %p170 = scmp.eq.s32.totalorder %s24, 0
      %p171 = por %p169, %p170
      %p172 = scmp.le.s32.totalorder 1, %s18
      %p173 = scmp.lt.s32.totalorder %s18, 3
      %p174 = pnand %p172, %p173
      %p175 = pneg %p174
      // Predicated region
      $region9: #{tpu_custom_call.1} parent=5 // pred_check
        _
      $region10: #{tpu_custom_call.1} parent=5 // pred_check_branch
        %177 = sbr.rel (%p174) target = $region12
      $region11: #{tpu_custom_call.1} parent=5 // pred_region
        %s178 = ssub.s32 %s18, 1
        // Predicated region
        $region13: #{tpu_custom_call.1} parent=11 // pred_check
          %p179 = pneg %p65
        $region14: #{tpu_custom_call.1} parent=11 // pred_check_branch
          %181 = sbr.rel (%p179) target = $region16
        $region15: #{tpu_custom_call.1} parent=11 // pred_region
          _
        $region16: #{tpu_custom_call.1} parent=11 // pred_fallthru
          _
        // Predicated region
        $region17: #{tpu_custom_call.1} parent=11 // pred_check
          %p182 = pneg %p86
        $region18: #{tpu_custom_call.1} parent=11 // pred_check_branch
          %184 = sbr.rel (%p182) target = $region20
        $region19: #{tpu_custom_call.1} parent=11 // pred_region
          _
        $region20: #{tpu_custom_call.1} parent=11 // pred_fallthru
          _
      $region12: #{tpu_custom_call.1} parent=5 // pred_fallthru
        _
      %p185 = scmp.lt.s32.totalorder %s18, 2
      // Predicated region
      $region21: #{tpu_custom_call.1} parent=5 // pred_check
        %p186 = pneg %p185
      $region22: #{tpu_custom_call.1} parent=5 // pred_check_branch
        %188 = sbr.rel (%p186) target = $region24
      $region23: #{tpu_custom_call.1} parent=5 // pred_region
        // Predicated region
        $region25: #{tpu_custom_call.1} parent=23 // pred_check
          %p189 = pneg %p38
        $region26: #{tpu_custom_call.1} parent=23 // pred_check_branch
          %191 = sbr.rel (%p189) target = $region28
        $region27: #{tpu_custom_call.1} parent=23 // pred_region
          %p192 = scmp.lt.s32.totalorder %s18, 1
          %s193 = scalar_select %p192, %s18, 1
          %s194 = smul.addr %s193, 170
          %s195 = smul.addr %s194, 8
          %s196 = scalar_lea.vmem %s0, %s195
        $region28: #{tpu_custom_call.1} parent=23 // pred_fallthru
          _
      $region24: #{tpu_custom_call.1} parent=5 // pred_fallthru
        _
      %p197 = scmp.le.s32.totalorder 1, %s18
      %p198 = scmp.lt.s32.totalorder %s18, 3
      %p199 = pnand %p197, %p198
      %p200 = pneg %p199
      // Predicated region
      $region29: #{tpu_custom_call.1} parent=5 // pred_check
        _
      $region30: #{tpu_custom_call.1} parent=5 // pred_check_branch
        %202 = sbr.rel (%p199) target = $region32
      $region31: #{tpu_custom_call.1} parent=5 // pred_region
        %s203 = ssub.s32 %s18, 1
        %p204 = scmp.lt.s32.totalorder %s23, 1
        %s205 = scalar_select %p204, %s23, 1
        %s206 = smul.addr %s205, 170
        %s207 = smul.addr %s206, 8
        %s208 = scalar_lea.vmem %s0, %s207
        %p209 = pneg %p44
        %p210 = pneg %p41
        %p211 = pneg %p65
        %p212 = pneg %p62
        %p213 = pneg %p86
        %p214 = pneg %p83
        %p215 = pneg %p112
        %p216 = pneg %p109
        %s217 = sand.u32 %s99, 1
        %s218 = scalar_lea.sflag [#allocation3], %s217
        %s219 = sand.u32 %s99, 1
        %s220 = smul.addr %s219, 64
        %s221 = scalar_lea.vmem [#allocation2], %s220
        %p222 = pneg %p138
        %p223 = pneg %p135
        %s224 = sand.u32 %s23, 1
        %s225 = scalar_lea.sflag [#allocation5], %s224
        %s226 = sand.u32 %s125, 1
        %s227 = scalar_lea.vmem [#allocation4], %s226
        %p228 = pneg %p164
        %p229 = pneg %p161
        %s230 = sand.u32 %s23, 1
        %s231 = scalar_lea.sflag [#allocation5], %s230
        %s232 = sand.u32 %s151, 1
        %s233 = scalar_lea.vmem [#allocation6], %s232
        %p234 = scmp.lt.s32.totalorder %s23, 1
        %s235 = scalar_select %p234, %s23, 1
        %s236 = smul.addr %s235, 170
        %s237 = smul.addr %s236, 8
        %s238 = scalar_lea.vmem %s0, %s237
        %v239 = vld [vmem:[%s238] sm:$0xff]
        %v240 = vld [vmem:[%s238 + $0x8] sm:$0xff]
        %v241 = vld [vmem:[%s238 + $0x10] sm:$0xff]
        %v242 = vld [vmem:[%s238 + $0x18] sm:$0xff]
        %v243 = vld [vmem:[%s238 + $0x20] sm:$0x3]
        %v244 = vld [vmem:[%s238 + $0x28] sm:$0xff]
        %v245 = vld [vmem:[%s238 + $0x30] sm:$0xff]
        %v246 = vld [vmem:[%s238 + $0x38] sm:$0xff]
        %v247 = vld [vmem:[%s238 + $0x40] sm:$0xff]
        %v248 = vld [vmem:[%s238 + $0x48] sm:$0x3]
        %v249 = vld [vmem:[%s238 + $0x50] sm:$0xff]
        %v250 = vld [vmem:[%s238 + $0x58] sm:$0xff]
        %v251 = vld [vmem:[%s238 + $0x60] sm:$0xff]
        %v252 = vld [vmem:[%s238 + $0x68] sm:$0xff]
        %v253 = vld [vmem:[%s238 + $0x70] sm:$0x3]
        %v254 = vld [vmem:[%s238 + $0x78] sm:$0xff]
        %v255 = vld [vmem:[%s238 + $0x80] sm:$0xff]
        %v256 = vld [vmem:[%s238 + $0x88] sm:$0xff]
        %v257 = vld [vmem:[%s238 + $0x90] sm:$0xff]
        %v258 = vld [vmem:[%s238 + $0x98] sm:$0x3]
        %v259 = vld [vmem:[%s238 + $0xa0] sm:$0xff]
        %v260 = vld [vmem:[%s238 + $0xa8] sm:$0xff]
        %v261 = vld [vmem:[%s238 + $0xb0] sm:$0xff]
        %v262 = vld [vmem:[%s238 + $0xb8] sm:$0xff]
        %v263 = vld [vmem:[%s238 + $0xc0] sm:$0x3]
        %v264 = vld [vmem:[%s238 + $0xc8] sm:$0xff]
        %v265 = vld [vmem:[%s238 + $0xd0] sm:$0xff]
        %v266 = vld [vmem:[%s238 + $0xd8] sm:$0xff]
        %v267 = vld [vmem:[%s238 + $0xe0] sm:$0xff]
        %v268 = vld [vmem:[%s238 + $0xe8] sm:$0x3]
        %v269 = vld [vmem:[%s238 + $0xf0] sm:$0xff]
        %v270 = vld [vmem:[%s238 + $0xf8] sm:$0xff]
        %v271 = vld [vmem:[%s238 + $0x100] sm:$0xff]
        %v272 = vld [vmem:[%s238 + $0x108] sm:$0xff]
        %v273 = vld [vmem:[%s238 + $0x110] sm:$0x3]
        %v274 = vld [vmem:[%s238 + $0x118] sm:$0xff]
        %v275 = vld [vmem:[%s238 + $0x120] sm:$0xff]
        %v276 = vld [vmem:[%s238 + $0x128] sm:$0xff]
        %v277 = vld [vmem:[%s238 + $0x130] sm:$0xff]
        %v278 = vld [vmem:[%s238 + $0x138] sm:$0x3]
        %v279 = vld [vmem:[%s238 + $0x140] sm:$0xff]
        %v280 = vld [vmem:[%s238 + $0x148] sm:$0xff]
        %v281 = vld [vmem:[%s238 + $0x150] sm:$0xff]
        %v282 = vld [vmem:[%s238 + $0x158] sm:$0xff]
        %v283 = vld [vmem:[%s238 + $0x160] sm:$0x3]
        %v284 = vld [vmem:[%s238 + $0x168] sm:$0xff]
        %v285 = vld [vmem:[%s238 + $0x170] sm:$0xff]
        %v286 = vld [vmem:[%s238 + $0x178] sm:$0xff]
        %v287 = vld [vmem:[%s238 + $0x180] sm:$0xff]
        %v288 = vld [vmem:[%s238 + $0x188] sm:$0x3]
        %v289 = vld [vmem:[%s238 + $0x190] sm:$0xff]
        %v290 = vld [vmem:[%s238 + $0x198] sm:$0xff]
        %v291 = vld [vmem:[%s238 + $0x1a0] sm:$0xff]
        %v292 = vld [vmem:[%s238 + $0x1a8] sm:$0xff]
        %v293 = vld [vmem:[%s238 + $0x1b0] sm:$0x3]
        %v294 = vld [vmem:[%s238 + $0x1b8] sm:$0xff]
        %v295 = vld [vmem:[%s238 + $0x1c0] sm:$0xff]
        %v296 = vld [vmem:[%s238 + $0x1c8] sm:$0xff]
        %v297 = vld [vmem:[%s238 + $0x1d0] sm:$0xff]
        %v298 = vld [vmem:[%s238 + $0x1d8] sm:$0x3]
        %v299 = vld [vmem:[%s238 + $0x1e0] sm:$0xff]
        %v300 = vld [vmem:[%s238 + $0x1e8] sm:$0xff]
        %v301 = vld [vmem:[%s238 + $0x1f0] sm:$0xff]
        %v302 = vld [vmem:[%s238 + $0x1f8] sm:$0xff]
        %v303 = vld [vmem:[%s238 + $0x200] sm:$0x3]
        %v304 = vld [vmem:[%s238 + $0x208] sm:$0xff]
        %v305 = vld [vmem:[%s238 + $0x210] sm:$0xff]
        %v306 = vld [vmem:[%s238 + $0x218] sm:$0xff]
        %v307 = vld [vmem:[%s238 + $0x220] sm:$0xff]
        %v308 = vld [vmem:[%s238 + $0x228] sm:$0x3]
        %v309 = vld [vmem:[%s238 + $0x230] sm:$0xff]
        %v310 = vld [vmem:[%s238 + $0x238] sm:$0xff]
        %v311 = vld [vmem:[%s238 + $0x240] sm:$0xff]
        %v312 = vld [vmem:[%s238 + $0x248] sm:$0xff]
        %v313 = vld [vmem:[%s238 + $0x250] sm:$0x3]
        %v314 = vld [vmem:[%s238 + $0x258] sm:$0xff]
        %v315 = vld [vmem:[%s238 + $0x260] sm:$0xff]
        %v316 = vld [vmem:[%s238 + $0x268] sm:$0xff]
        %v317 = vld [vmem:[%s238 + $0x270] sm:$0xff]
        %v318 = vld [vmem:[%s238 + $0x278] sm:$0x3]
        %v319 = vld [vmem:[%s238 + $0x280] sm:$0xff]
        %v320 = vld [vmem:[%s238 + $0x288] sm:$0xff]
        %v321 = vld [vmem:[%s238 + $0x290] sm:$0xff]
        %v322 = vld [vmem:[%s238 + $0x298] sm:$0xff]
        %v323 = vld [vmem:[%s238 + $0x2a0] sm:$0x3]
        %v324 = vld [vmem:[%s238 + $0x2a8] sm:$0xff]
        %v325 = vld [vmem:[%s238 + $0x2b0] sm:$0xff]
        %v326 = vld [vmem:[%s238 + $0x2b8] sm:$0xff]
        %v327 = vld [vmem:[%s238 + $0x2c0] sm:$0xff]
        %v328 = vld [vmem:[%s238 + $0x2c8] sm:$0x3]
        %v329 = vld [vmem:[%s238 + $0x2d0] sm:$0xff]
        %v330 = vld [vmem:[%s238 + $0x2d8] sm:$0xff]
        %v331 = vld [vmem:[%s238 + $0x2e0] sm:$0xff]
        %v332 = vld [vmem:[%s238 + $0x2e8] sm:$0xff]
        %v333 = vld [vmem:[%s238 + $0x2f0] sm:$0x3]
        %v334 = vld [vmem:[%s238 + $0x2f8] sm:$0xff]
        %v335 = vld [vmem:[%s238 + $0x300] sm:$0xff]
        %v336 = vld [vmem:[%s238 + $0x308] sm:$0xff]
        %v337 = vld [vmem:[%s238 + $0x310] sm:$0xff]
        %v338 = vld [vmem:[%s238 + $0x318] sm:$0x3]
        %v339 = vld [vmem:[%s238 + $0x320] sm:$0xff]
        %v340 = vld [vmem:[%s238 + $0x328] sm:$0xff]
        %v341 = vld [vmem:[%s238 + $0x330] sm:$0xff]
        %v342 = vld [vmem:[%s238 + $0x338] sm:$0xff]
        %v343 = vld [vmem:[%s238 + $0x340] sm:$0x3]
        %v344 = vld [vmem:[%s238 + $0x348] sm:$0xff]
        %v345 = vld [vmem:[%s238 + $0x350] sm:$0xff]
        %v346 = vld [vmem:[%s238 + $0x358] sm:$0xff]
        %v347 = vld [vmem:[%s238 + $0x360] sm:$0xff]
        %v348 = vld [vmem:[%s238 + $0x368] sm:$0x3]
        %v349 = vld [vmem:[%s238 + $0x370] sm:$0xff]
        %v350 = vld [vmem:[%s238 + $0x378] sm:$0xff]
        %v351 = vld [vmem:[%s238 + $0x380] sm:$0xff]
        %v352 = vld [vmem:[%s238 + $0x388] sm:$0xff]
        %v353 = vld [vmem:[%s238 + $0x390] sm:$0x3]
        %v354 = vld [vmem:[%s238 + $0x398] sm:$0xff]
        %v355 = vld [vmem:[%s238 + $0x3a0] sm:$0xff]
        %v356 = vld [vmem:[%s238 + $0x3a8] sm:$0xff]
        %v357 = vld [vmem:[%s238 + $0x3b0] sm:$0xff]
        %v358 = vld [vmem:[%s238 + $0x3b8] sm:$0x3]
        %v359 = vld [vmem:[%s238 + $0x3c0] sm:$0xff]
        %v360 = vld [vmem:[%s238 + $0x3c8] sm:$0xff]
        %v361 = vld [vmem:[%s238 + $0x3d0] sm:$0xff]
        %v362 = vld [vmem:[%s238 + $0x3d8] sm:$0xff]
        %v363 = vld [vmem:[%s238 + $0x3e0] sm:$0x3]
        %v364 = vld [vmem:[%s238 + $0x3e8] sm:$0xff]
        %v365 = vld [vmem:[%s238 + $0x3f0] sm:$0xff]
        %v366 = vld [vmem:[%s238 + $0x3f8] sm:$0xff]
        %v367 = vld [vmem:[%s238 + $0x400] sm:$0xff]
        %v368 = vld [vmem:[%s238 + $0x408] sm:$0x3]
        %v369 = vld [vmem:[%s238 + $0x410] sm:$0xff]
        %v370 = vld [vmem:[%s238 + $0x418] sm:$0xff]
        %v371 = vld [vmem:[%s238 + $0x420] sm:$0xff]
        %v372 = vld [vmem:[%s238 + $0x428] sm:$0xff]
        %v373 = vld [vmem:[%s238 + $0x430] sm:$0x3]
        %v374 = vld [vmem:[%s238 + $0x438] sm:$0xff]
        %v375 = vld [vmem:[%s238 + $0x440] sm:$0xff]
        %v376 = vld [vmem:[%s238 + $0x448] sm:$0xff]
        %v377 = vld [vmem:[%s238 + $0x450] sm:$0xff]
        %v378 = vld [vmem:[%s238 + $0x458] sm:$0x3]
        %v379 = vld [vmem:[%s238 + $0x460] sm:$0xff]
        %v380 = vld [vmem:[%s238 + $0x468] sm:$0xff]
        %v381 = vld [vmem:[%s238 + $0x470] sm:$0xff]
        %v382 = vld [vmem:[%s238 + $0x478] sm:$0xff]
        %v383 = vld [vmem:[%s238 + $0x480] sm:$0x3]
        %v384 = vld [vmem:[%s238 + $0x488] sm:$0xff]
        %v385 = vld [vmem:[%s238 + $0x490] sm:$0xff]
        %v386 = vld [vmem:[%s238 + $0x498] sm:$0xff]
        %v387 = vld [vmem:[%s238 + $0x4a0] sm:$0xff]
        %v388 = vld [vmem:[%s238 + $0x4a8] sm:$0x3]
        %v389 = vld [vmem:[%s238 + $0x4b0] sm:$0xff]
        %v390 = vld [vmem:[%s238 + $0x4b8] sm:$0xff]
        %v391 = vld [vmem:[%s238 + $0x4c0] sm:$0xff]
        %v392 = vld [vmem:[%s238 + $0x4c8] sm:$0xff]
        %v393 = vld [vmem:[%s238 + $0x4d0] sm:$0x3]
        %v394 = vld [vmem:[%s238 + $0x4d8] sm:$0xff]
        %v395 = vld [vmem:[%s238 + $0x4e0] sm:$0xff]
        %v396 = vld [vmem:[%s238 + $0x4e8] sm:$0xff]
        %v397 = vld [vmem:[%s238 + $0x4f0] sm:$0xff]
        %v398 = vld [vmem:[%s238 + $0x4f8] sm:$0x3]
        %v399 = vld [vmem:[%s238 + $0x500] sm:$0xff]
        %v400 = vld [vmem:[%s238 + $0x508] sm:$0xff]
        %v401 = vld [vmem:[%s238 + $0x510] sm:$0xff]
        %v402 = vld [vmem:[%s238 + $0x518] sm:$0xff]
        %v403 = vld [vmem:[%s238 + $0x520] sm:$0x3]
        %v404 = vld [vmem:[%s238 + $0x528] sm:$0xff]
        %v405 = vld [vmem:[%s238 + $0x530] sm:$0xff]
        %v406 = vld [vmem:[%s238 + $0x538] sm:$0xff]
        %v407 = vld [vmem:[%s238 + $0x540] sm:$0xff]
        %v408 = vld [vmem:[%s238 + $0x548] sm:$0x3]
        %vm569 = vcmask 1046528
        %v570 = vrot.slane %v239, 1
        %v571 = vrot.slane %v240, 1
        %v572 = vsel %vm569, %v570, %v571
        %v573 = vrot.slane %v241, 1
        %v574 = vsel %vm569, %v571, %v573
        %v575 = vrot.slane %v242, 1
        %v576 = vsel %vm569, %v573, %v575
        %v577 = vrot.slane %v243, 1
        %v578 = vsel %vm569, %v575, %v577
        %v579 = vrot.slane %v244, 1
        %v580 = vrot.slane %v245, 1
        %v581 = vsel %vm569, %v579, %v580
        %v582 = vrot.slane %v246, 1
        %v583 = vsel %vm569, %v580, %v582
        %v584 = vrot.slane %v247, 1
        %v585 = vsel %vm569, %v582, %v584
        %v586 = vrot.slane %v248, 1
        %v587 = vsel %vm569, %v584, %v586
        %v588 = vrot.slane %v249, 1
        %v589 = vrot.slane %v250, 1
        %v590 = vsel %vm569, %v588, %v589
        %v591 = vrot.slane %v251, 1
        %v592 = vsel %vm569, %v589, %v591
        %v593 = vrot.slane %v252, 1
        %v594 = vsel %vm569, %v591, %v593
        %v595 = vrot.slane %v253, 1
        %v596 = vsel %vm569, %v593, %v595
        %v597 = vrot.slane %v254, 1
        %v598 = vrot.slane %v255, 1
        %v599 = vsel %vm569, %v597, %v598
        %v600 = vrot.slane %v256, 1
        %v601 = vsel %vm569, %v598, %v600
        %v602 = vrot.slane %v257, 1
        %v603 = vsel %vm569, %v600, %v602
        %v604 = vrot.slane %v258, 1
        %v605 = vsel %vm569, %v602, %v604
        %v606 = vrot.slane %v259, 1
        %v607 = vrot.slane %v260, 1
        %v608 = vsel %vm569, %v606, %v607
        %v609 = vrot.slane %v261, 1
        %v610 = vsel %vm569, %v607, %v609
        %v611 = vrot.slane %v262, 1
        %v612 = vsel %vm569, %v609, %v611
        %v613 = vrot.slane %v263, 1
        %v614 = vsel %vm569, %v611, %v613
        %v615 = vrot.slane %v264, 1
        %v616 = vrot.slane %v265, 1
        %v617 = vsel %vm569, %v615, %v616
        %v618 = vrot.slane %v266, 1
        %v619 = vsel %vm569, %v616, %v618
        %v620 = vrot.slane %v267, 1
        %v621 = vsel %vm569, %v618, %v620
        %v622 = vrot.slane %v268, 1
        %v623 = vsel %vm569, %v620, %v622
        %v624 = vrot.slane %v269, 1
        %v625 = vrot.slane %v270, 1
        %v626 = vsel %vm569, %v624, %v625
        %v627 = vrot.slane %v271, 1
        %v628 = vsel %vm569, %v625, %v627
        %v629 = vrot.slane %v272, 1
        %v630 = vsel %vm569, %v627, %v629
        %v631 = vrot.slane %v273, 1
        %v632 = vsel %vm569, %v629, %v631
        %v633 = vrot.slane %v274, 1
        %v634 = vrot.slane %v275, 1
        %v635 = vsel %vm569, %v633, %v634
        %v636 = vrot.slane %v276, 1
        %v637 = vsel %vm569, %v634, %v636
        %v638 = vrot.slane %v277, 1
        %v639 = vsel %vm569, %v636, %v638
        %v640 = vrot.slane %v278, 1
        %v641 = vsel %vm569, %v638, %v640
        %v642 = vrot.slane %v279, 1
        %v643 = vrot.slane %v280, 1
        %v644 = vsel %vm569, %v642, %v643
        %v645 = vrot.slane %v281, 1
        %v646 = vsel %vm569, %v643, %v645
        %v647 = vrot.slane %v282, 1
        %v648 = vsel %vm569, %v645, %v647
        %v649 = vrot.slane %v283, 1
        %v650 = vsel %vm569, %v647, %v649
        %v651 = vrot.slane %v284, 1
        %v652 = vrot.slane %v285, 1
        %v653 = vsel %vm569, %v651, %v652
        %v654 = vrot.slane %v286, 1
        %v655 = vsel %vm569, %v652, %v654
        %v656 = vrot.slane %v287, 1
        %v657 = vsel %vm569, %v654, %v656
        %v658 = vrot.slane %v288, 1
        %v659 = vsel %vm569, %v656, %v658
        %v660 = vrot.slane %v289, 1
        %v661 = vrot.slane %v290, 1
        %v662 = vsel %vm569, %v660, %v661
        %v663 = vrot.slane %v291, 1
        %v664 = vsel %vm569, %v661, %v663
        %v665 = vrot.slane %v292, 1
        %v666 = vsel %vm569, %v663, %v665
        %v667 = vrot.slane %v293, 1
        %v668 = vsel %vm569, %v665, %v667
        %v669 = vrot.slane %v294, 1
        %v670 = vrot.slane %v295, 1
        %v671 = vsel %vm569, %v669, %v670
        %v672 = vrot.slane %v296, 1
        %v673 = vsel %vm569, %v670, %v672
        %v674 = vrot.slane %v297, 1
        %v675 = vsel %vm569, %v672, %v674
        %v676 = vrot.slane %v298, 1
        %v677 = vsel %vm569, %v674, %v676
        %v678 = vrot.slane %v299, 1
        %v679 = vrot.slane %v300, 1
        %v680 = vsel %vm569, %v678, %v679
        %v681 = vrot.slane %v301, 1
        %v682 = vsel %vm569, %v679, %v681
        %v683 = vrot.slane %v302, 1
        %v684 = vsel %vm569, %v681, %v683
        %v685 = vrot.slane %v303, 1
        %v686 = vsel %vm569, %v683, %v685
        %v687 = vrot.slane %v304, 1
        %v688 = vrot.slane %v305, 1
        %v689 = vsel %vm569, %v687, %v688
        %v690 = vrot.slane %v306, 1
        %v691 = vsel %vm569, %v688, %v690
        %v692 = vrot.slane %v307, 1
        %v693 = vsel %vm569, %v690, %v692
        %v694 = vrot.slane %v308, 1
        %v695 = vsel %vm569, %v692, %v694
        %v696 = vrot.slane %v309, 1
        %v697 = vrot.slane %v310, 1
        %v698 = vsel %vm569, %v696, %v697
        %v699 = vrot.slane %v311, 1
        %v700 = vsel %vm569, %v697, %v699
        %v701 = vrot.slane %v312, 1
        %v702 = vsel %vm569, %v699, %v701
        %v703 = vrot.slane %v313, 1
        %v704 = vsel %vm569, %v701, %v703
        %v705 = vrot.slane %v314, 1
        %v706 = vrot.slane %v315, 1
        %v707 = vsel %vm569, %v705, %v706
        %v708 = vrot.slane %v316, 1
        %v709 = vsel %vm569, %v706, %v708
        %v710 = vrot.slane %v317, 1
        %v711 = vsel %vm569, %v708, %v710
        %v712 = vrot.slane %v318, 1
        %v713 = vsel %vm569, %v710, %v712
        %v714 = vrot.slane %v319, 1
        %v715 = vrot.slane %v320, 1
        %v716 = vsel %vm569, %v714, %v715
        %v717 = vrot.slane %v321, 1
        %v718 = vsel %vm569, %v715, %v717
        %v719 = vrot.slane %v322, 1
        %v720 = vsel %vm569, %v717, %v719
        %v721 = vrot.slane %v323, 1
        %v722 = vsel %vm569, %v719, %v721
        %v723 = vrot.slane %v324, 1
        %v724 = vrot.slane %v325, 1
        %v725 = vsel %vm569, %v723, %v724
        %v726 = vrot.slane %v326, 1
        %v727 = vsel %vm569, %v724, %v726
        %v728 = vrot.slane %v327, 1
        %v729 = vsel %vm569, %v726, %v728
        %v730 = vrot.slane %v328, 1
        %v731 = vsel %vm569, %v728, %v730
        %v732 = vrot.slane %v329, 1
        %v733 = vrot.slane %v330, 1
        %v734 = vsel %vm569, %v732, %v733
        %v735 = vrot.slane %v331, 1
        %v736 = vsel %vm569, %v733, %v735
        %v737 = vrot.slane %v332, 1
        %v738 = vsel %vm569, %v735, %v737
        %v739 = vrot.slane %v333, 1
        %v740 = vsel %vm569, %v737, %v739
        %v741 = vrot.slane %v334, 1
        %v742 = vrot.slane %v335, 1
        %v743 = vsel %vm569, %v741, %v742
        %v744 = vrot.slane %v336, 1
        %v745 = vsel %vm569, %v742, %v744
        %v746 = vrot.slane %v337, 1
        %v747 = vsel %vm569, %v744, %v746
        %v748 = vrot.slane %v338, 1
        %v749 = vsel %vm569, %v746, %v748
        %v750 = vrot.slane %v339, 1
        %v751 = vrot.slane %v340, 1
        %v752 = vsel %vm569, %v750, %v751
        %v753 = vrot.slane %v341, 1
        %v754 = vsel %vm569, %v751, %v753
        %v755 = vrot.slane %v342, 1
        %v756 = vsel %vm569, %v753, %v755
        %v757 = vrot.slane %v343, 1
        %v758 = vsel %vm569, %v755, %v757
        %v759 = vrot.slane %v344, 1
        %v760 = vrot.slane %v345, 1
        %v761 = vsel %vm569, %v759, %v760
        %v762 = vrot.slane %v346, 1
        %v763 = vsel %vm569, %v760, %v762
        %v764 = vrot.slane %v347, 1
        %v765 = vsel %vm569, %v762, %v764
        %v766 = vrot.slane %v348, 1
        %v767 = vsel %vm569, %v764, %v766
        %v768 = vrot.slane %v349, 1
        %v769 = vrot.slane %v350, 1
        %v770 = vsel %vm569, %v768, %v769
        %v771 = vrot.slane %v351, 1
        %v772 = vsel %vm569, %v769, %v771
        %v773 = vrot.slane %v352, 1
        %v774 = vsel %vm569, %v771, %v773
        %v775 = vrot.slane %v353, 1
        %v776 = vsel %vm569, %v773, %v775
        %v777 = vrot.slane %v354, 1
        %v778 = vrot.slane %v355, 1
        %v779 = vsel %vm569, %v777, %v778
        %v780 = vrot.slane %v356, 1
        %v781 = vsel %vm569, %v778, %v780
        %v782 = vrot.slane %v357, 1
        %v783 = vsel %vm569, %v780, %v782
        %v784 = vrot.slane %v358, 1
        %v785 = vsel %vm569, %v782, %v784
        %v786 = vrot.slane %v359, 1
        %v787 = vrot.slane %v360, 1
        %v788 = vsel %vm569, %v786, %v787
        %v789 = vrot.slane %v361, 1
        %v790 = vsel %vm569, %v787, %v789
        %v791 = vrot.slane %v362, 1
        %v792 = vsel %vm569, %v789, %v791
        %v793 = vrot.slane %v363, 1
        %v794 = vsel %vm569, %v791, %v793
        %v795 = vrot.slane %v364, 1
        %v796 = vrot.slane %v365, 1
        %v797 = vsel %vm569, %v795, %v796
        %v798 = vrot.slane %v366, 1
        %v799 = vsel %vm569, %v796, %v798
        %v800 = vrot.slane %v367, 1
        %v801 = vsel %vm569, %v798, %v800
        %v802 = vrot.slane %v368, 1
        %v803 = vsel %vm569, %v800, %v802
        %v804 = vrot.slane %v369, 1
        %v805 = vrot.slane %v370, 1
        %v806 = vsel %vm569, %v804, %v805
        %v807 = vrot.slane %v371, 1
        %v808 = vsel %vm569, %v805, %v807
        %v809 = vrot.slane %v372, 1
        %v810 = vsel %vm569, %v807, %v809
        %v811 = vrot.slane %v373, 1
        %v812 = vsel %vm569, %v809, %v811
        %v813 = vrot.slane %v374, 1
        %v814 = vrot.slane %v375, 1
        %v815 = vsel %vm569, %v813, %v814
        %v816 = vrot.slane %v376, 1
        %v817 = vsel %vm569, %v814, %v816
        %v818 = vrot.slane %v377, 1
        %v819 = vsel %vm569, %v816, %v818
        %v820 = vrot.slane %v378, 1
        %v821 = vsel %vm569, %v818, %v820
        %v822 = vrot.slane %v379, 1
        %v823 = vrot.slane %v380, 1
        %v824 = vsel %vm569, %v822, %v823
        %v825 = vrot.slane %v381, 1
        %v826 = vsel %vm569, %v823, %v825
        %v827 = vrot.slane %v382, 1
        %v828 = vsel %vm569, %v825, %v827
        %v829 = vrot.slane %v383, 1
        %v830 = vsel %vm569, %v827, %v829
        %v831 = vrot.slane %v384, 1
        %v832 = vrot.slane %v385, 1
        %v833 = vsel %vm569, %v831, %v832
        %v834 = vrot.slane %v386, 1
        %v835 = vsel %vm569, %v832, %v834
        %v836 = vrot.slane %v387, 1
        %v837 = vsel %vm569, %v834, %v836
        %v838 = vrot.slane %v388, 1
        %v839 = vsel %vm569, %v836, %v838
        %v840 = vrot.slane %v389, 1
        %v841 = vrot.slane %v390, 1
        %v842 = vsel %vm569, %v840, %v841
        %v843 = vrot.slane %v391, 1
        %v844 = vsel %vm569, %v841, %v843
        %v845 = vrot.slane %v392, 1
        %v846 = vsel %vm569, %v843, %v845
        %v847 = vrot.slane %v393, 1
        %v848 = vsel %vm569, %v845, %v847
        %v849 = vrot.slane %v394, 1
        %v850 = vrot.slane %v395, 1
        %v851 = vsel %vm569, %v849, %v850
        %v852 = vrot.slane %v396, 1
        %v853 = vsel %vm569, %v850, %v852
        %v854 = vrot.slane %v397, 1
        %v855 = vsel %vm569, %v852, %v854
        %v856 = vrot.slane %v398, 1
        %v857 = vsel %vm569, %v854, %v856
        %vm858 = vcmask 1045504
        %v859 = vrot.slane %v239, 2
        %v860 = vrot.slane %v240, 2
        %v861 = vsel %vm858, %v859, %v860
        %v862 = vrot.slane %v241, 2
        %v863 = vsel %vm858, %v860, %v862
        %v864 = vrot.slane %v242, 2
        %v865 = vsel %vm858, %v862, %v864
        %v866 = vrot.slane %v243, 2
        %v867 = vsel %vm858, %v864, %v866
        %v868 = vrot.slane %v244, 2
        %v869 = vrot.slane %v245, 2
        %v870 = vsel %vm858, %v868, %v869
        %v871 = vrot.slane %v246, 2
        %v872 = vsel %vm858, %v869, %v871
        %v873 = vrot.slane %v247, 2
        %v874 = vsel %vm858, %v871, %v873
        %v875 = vrot.slane %v248, 2
        %v876 = vsel %vm858, %v873, %v875
        %v877 = vrot.slane %v249, 2
        %v878 = vrot.slane %v250, 2
        %v879 = vsel %vm858, %v877, %v878
        %v880 = vrot.slane %v251, 2
        %v881 = vsel %vm858, %v878, %v880
        %v882 = vrot.slane %v252, 2
        %v883 = vsel %vm858, %v880, %v882
        %v884 = vrot.slane %v253, 2
        %v885 = vsel %vm858, %v882, %v884
        %v886 = vrot.slane %v254, 2
        %v887 = vrot.slane %v255, 2
        %v888 = vsel %vm858, %v886, %v887
        %v889 = vrot.slane %v256, 2
        %v890 = vsel %vm858, %v887, %v889
        %v891 = vrot.slane %v257, 2
        %v892 = vsel %vm858, %v889, %v891
        %v893 = vrot.slane %v258, 2
        %v894 = vsel %vm858, %v891, %v893
        %v895 = vrot.slane %v259, 2
        %v896 = vrot.slane %v260, 2
        %v897 = vsel %vm858, %v895, %v896
        %v898 = vrot.slane %v261, 2
        %v899 = vsel %vm858, %v896, %v898
        %v900 = vrot.slane %v262, 2
        %v901 = vsel %vm858, %v898, %v900
        %v902 = vrot.slane %v263, 2
        %v903 = vsel %vm858, %v900, %v902
        %v904 = vrot.slane %v264, 2
        %v905 = vrot.slane %v265, 2
        %v906 = vsel %vm858, %v904, %v905
        %v907 = vrot.slane %v266, 2
        %v908 = vsel %vm858, %v905, %v907
        %v909 = vrot.slane %v267, 2
        %v910 = vsel %vm858, %v907, %v909
        %v911 = vrot.slane %v268, 2
        %v912 = vsel %vm858, %v909, %v911
        %v913 = vrot.slane %v269, 2
        %v914 = vrot.slane %v270, 2
        %v915 = vsel %vm858, %v913, %v914
        %v916 = vrot.slane %v271, 2
        %v917 = vsel %vm858, %v914, %v916
        %v918 = vrot.slane %v272, 2
        %v919 = vsel %vm858, %v916, %v918
        %v920 = vrot.slane %v273, 2
        %v921 = vsel %vm858, %v918, %v920
        %v922 = vrot.slane %v274, 2
        %v923 = vrot.slane %v275, 2
        %v924 = vsel %vm858, %v922, %v923
        %v925 = vrot.slane %v276, 2
        %v926 = vsel %vm858, %v923, %v925
        %v927 = vrot.slane %v277, 2
        %v928 = vsel %vm858, %v925, %v927
        %v929 = vrot.slane %v278, 2
        %v930 = vsel %vm858, %v927, %v929
        %v931 = vrot.slane %v279, 2
        %v932 = vrot.slane %v280, 2
        %v933 = vsel %vm858, %v931, %v932
        %v934 = vrot.slane %v281, 2
        %v935 = vsel %vm858, %v932, %v934
        %v936 = vrot.slane %v282, 2
        %v937 = vsel %vm858, %v934, %v936
        %v938 = vrot.slane %v283, 2
        %v939 = vsel %vm858, %v936, %v938
        %v940 = vrot.slane %v284, 2
        %v941 = vrot.slane %v285, 2
        %v942 = vsel %vm858, %v940, %v941
        %v943 = vrot.slane %v286, 2
        %v944 = vsel %vm858, %v941, %v943
        %v945 = vrot.slane %v287, 2
        %v946 = vsel %vm858, %v943, %v945
        %v947 = vrot.slane %v288, 2
        %v948 = vsel %vm858, %v945, %v947
        %v949 = vrot.slane %v289, 2
        %v950 = vrot.slane %v290, 2
        %v951 = vsel %vm858, %v949, %v950
        %v952 = vrot.slane %v291, 2
        %v953 = vsel %vm858, %v950, %v952
        %v954 = vrot.slane %v292, 2
        %v955 = vsel %vm858, %v952, %v954
        %v956 = vrot.slane %v293, 2
        %v957 = vsel %vm858, %v954, %v956
        %v958 = vrot.slane %v294, 2
        %v959 = vrot.slane %v295, 2
        %v960 = vsel %vm858, %v958, %v959
        %v961 = vrot.slane %v296, 2
        %v962 = vsel %vm858, %v959, %v961
        %v963 = vrot.slane %v297, 2
        %v964 = vsel %vm858, %v961, %v963
        %v965 = vrot.slane %v298, 2
        %v966 = vsel %vm858, %v963, %v965
        %v967 = vrot.slane %v299, 2
        %v968 = vrot.slane %v300, 2
        %v969 = vsel %vm858, %v967, %v968
        %v970 = vrot.slane %v301, 2
        %v971 = vsel %vm858, %v968, %v970
        %v972 = vrot.slane %v302, 2
        %v973 = vsel %vm858, %v970, %v972
        %v974 = vrot.slane %v303, 2
        %v975 = vsel %vm858, %v972, %v974
        %v976 = vrot.slane %v304, 2
        %v977 = vrot.slane %v305, 2
        %v978 = vsel %vm858, %v976, %v977
        %v979 = vrot.slane %v306, 2
        %v980 = vsel %vm858, %v977, %v979
        %v981 = vrot.slane %v307, 2
        %v982 = vsel %vm858, %v979, %v981
        %v983 = vrot.slane %v308, 2
        %v984 = vsel %vm858, %v981, %v983
        %v985 = vrot.slane %v309, 2
        %v986 = vrot.slane %v310, 2
        %v987 = vsel %vm858, %v985, %v986
        %v988 = vrot.slane %v311, 2
        %v989 = vsel %vm858, %v986, %v988
        %v990 = vrot.slane %v312, 2
        %v991 = vsel %vm858, %v988, %v990
        %v992 = vrot.slane %v313, 2
        %v993 = vsel %vm858, %v990, %v992
        %v994 = vrot.slane %v314, 2
        %v995 = vrot.slane %v315, 2
        %v996 = vsel %vm858, %v994, %v995
        %v997 = vrot.slane %v316, 2
        %v998 = vsel %vm858, %v995, %v997
        %v999 = vrot.slane %v317, 2
        %v1000 = vsel %vm858, %v997, %v999
        %v1001 = vrot.slane %v318, 2
        %v1002 = vsel %vm858, %v999, %v1001
        %v1003 = vrot.slane %v319, 2
        %v1004 = vrot.slane %v320, 2
        %v1005 = vsel %vm858, %v1003, %v1004
        %v1006 = vrot.slane %v321, 2
        %v1007 = vsel %vm858, %v1004, %v1006
        %v1008 = vrot.slane %v322, 2
        %v1009 = vsel %vm858, %v1006, %v1008
        %v1010 = vrot.slane %v323, 2
        %v1011 = vsel %vm858, %v1008, %v1010
        %v1012 = vrot.slane %v324, 2
        %v1013 = vrot.slane %v325, 2
        %v1014 = vsel %vm858, %v1012, %v1013
        %v1015 = vrot.slane %v326, 2
        %v1016 = vsel %vm858, %v1013, %v1015
        %v1017 = vrot.slane %v327, 2
        %v1018 = vsel %vm858, %v1015, %v1017
        %v1019 = vrot.slane %v328, 2
        %v1020 = vsel %vm858, %v1017, %v1019
        %v1021 = vrot.slane %v329, 2
        %v1022 = vrot.slane %v330, 2
        %v1023 = vsel %vm858, %v1021, %v1022
        %v1024 = vrot.slane %v331, 2
        %v1025 = vsel %vm858, %v1022, %v1024
        %v1026 = vrot.slane %v332, 2
        %v1027 = vsel %vm858, %v1024, %v1026
        %v1028 = vrot.slane %v333, 2
        %v1029 = vsel %vm858, %v1026, %v1028
        %v1030 = vrot.slane %v334, 2
        %v1031 = vrot.slane %v335, 2
        %v1032 = vsel %vm858, %v1030, %v1031
        %v1033 = vrot.slane %v336, 2
        %v1034 = vsel %vm858, %v1031, %v1033
        %v1035 = vrot.slane %v337, 2
        %v1036 = vsel %vm858, %v1033, %v1035
        %v1037 = vrot.slane %v338, 2
        %v1038 = vsel %vm858, %v1035, %v1037
        %v1039 = vrot.slane %v339, 2
        %v1040 = vrot.slane %v340, 2
        %v1041 = vsel %vm858, %v1039, %v1040
        %v1042 = vrot.slane %v341, 2
        %v1043 = vsel %vm858, %v1040, %v1042
        %v1044 = vrot.slane %v342, 2
        %v1045 = vsel %vm858, %v1042, %v1044
        %v1046 = vrot.slane %v343, 2
        %v1047 = vsel %vm858, %v1044, %v1046
        %v1048 = vrot.slane %v344, 2
        %v1049 = vrot.slane %v345, 2
        %v1050 = vsel %vm858, %v1048, %v1049
        %v1051 = vrot.slane %v346, 2
        %v1052 = vsel %vm858, %v1049, %v1051
        %v1053 = vrot.slane %v347, 2
        %v1054 = vsel %vm858, %v1051, %v1053
        %v1055 = vrot.slane %v348, 2
        %v1056 = vsel %vm858, %v1053, %v1055
        %v1057 = vrot.slane %v349, 2
        %v1058 = vrot.slane %v350, 2
        %v1059 = vsel %vm858, %v1057, %v1058
        %v1060 = vrot.slane %v351, 2
        %v1061 = vsel %vm858, %v1058, %v1060
        %v1062 = vrot.slane %v352, 2
        %v1063 = vsel %vm858, %v1060, %v1062
        %v1064 = vrot.slane %v353, 2
        %v1065 = vsel %vm858, %v1062, %v1064
        %v1066 = vrot.slane %v354, 2
        %v1067 = vrot.slane %v355, 2
        %v1068 = vsel %vm858, %v1066, %v1067
        %v1069 = vrot.slane %v356, 2
        %v1070 = vsel %vm858, %v1067, %v1069
        %v1071 = vrot.slane %v357, 2
        %v1072 = vsel %vm858, %v1069, %v1071
        %v1073 = vrot.slane %v358, 2
        %v1074 = vsel %vm858, %v1071, %v1073
        %v1075 = vrot.slane %v359, 2
        %v1076 = vrot.slane %v360, 2
        %v1077 = vsel %vm858, %v1075, %v1076
        %v1078 = vrot.slane %v361, 2
        %v1079 = vsel %vm858, %v1076, %v1078
        %v1080 = vrot.slane %v362, 2
        %v1081 = vsel %vm858, %v1078, %v1080
        %v1082 = vrot.slane %v363, 2
        %v1083 = vsel %vm858, %v1080, %v1082
        %v1084 = vrot.slane %v364, 2
        %v1085 = vrot.slane %v365, 2
        %v1086 = vsel %vm858, %v1084, %v1085
        %v1087 = vrot.slane %v366, 2
        %v1088 = vsel %vm858, %v1085, %v1087
        %v1089 = vrot.slane %v367, 2
        %v1090 = vsel %vm858, %v1087, %v1089
        %v1091 = vrot.slane %v368, 2
        %v1092 = vsel %vm858, %v1089, %v1091
        %v1093 = vrot.slane %v369, 2
        %v1094 = vrot.slane %v370, 2
        %v1095 = vsel %vm858, %v1093, %v1094
        %v1096 = vrot.slane %v371, 2
        %v1097 = vsel %vm858, %v1094, %v1096
        %v1098 = vrot.slane %v372, 2
        %v1099 = vsel %vm858, %v1096, %v1098
        %v1100 = vrot.slane %v373, 2
        %v1101 = vsel %vm858, %v1098, %v1100
        %v1102 = vrot.slane %v374, 2
        %v1103 = vrot.slane %v375, 2
        %v1104 = vsel %vm858, %v1102, %v1103
        %v1105 = vrot.slane %v376, 2
        %v1106 = vsel %vm858, %v1103, %v1105
        %v1107 = vrot.slane %v377, 2
        %v1108 = vsel %vm858, %v1105, %v1107
        %v1109 = vrot.slane %v378, 2
        %v1110 = vsel %vm858, %v1107, %v1109
        %v1111 = vrot.slane %v379, 2
        %v1112 = vrot.slane %v380, 2
        %v1113 = vsel %vm858, %v1111, %v1112
        %v1114 = vrot.slane %v381, 2
        %v1115 = vsel %vm858, %v1112, %v1114
        %v1116 = vrot.slane %v382, 2
        %v1117 = vsel %vm858, %v1114, %v1116
        %v1118 = vrot.slane %v383, 2
        %v1119 = vsel %vm858, %v1116, %v1118
        %v1120 = vrot.slane %v384, 2
        %v1121 = vrot.slane %v385, 2
        %v1122 = vsel %vm858, %v1120, %v1121
        %v1123 = vrot.slane %v386, 2
        %v1124 = vsel %vm858, %v1121, %v1123
        %v1125 = vrot.slane %v387, 2
        %v1126 = vsel %vm858, %v1123, %v1125
        %v1127 = vrot.slane %v388, 2
        %v1128 = vsel %vm858, %v1125, %v1127
        %v1129 = vrot.slane %v389, 2
        %v1130 = vrot.slane %v390, 2
        %v1131 = vsel %vm858, %v1129, %v1130
        %v1132 = vrot.slane %v391, 2
        %v1133 = vsel %vm858, %v1130, %v1132
        %v1134 = vrot.slane %v392, 2
        %v1135 = vsel %vm858, %v1132, %v1134
        %v1136 = vrot.slane %v393, 2
        %v1137 = vsel %vm858, %v1134, %v1136
        %v1138 = vrot.slane %v394, 2
        %v1139 = vrot.slane %v395, 2
        %v1140 = vsel %vm858, %v1138, %v1139
        %v1141 = vrot.slane %v396, 2
        %v1142 = vsel %vm858, %v1139, %v1141
        %v1143 = vrot.slane %v397, 2
        %v1144 = vsel %vm858, %v1141, %v1143
        %v1145 = vrot.slane %v398, 2
        %v1146 = vsel %vm858, %v1143, %v1145
        %v1152 = vrot.slane %v399, 1
        %v1153 = vrot.slane %v400, 1
        %v1154 = vsel %vm569, %v1152, %v1153
        %v1155 = vrot.slane %v401, 1
        %v1156 = vsel %vm569, %v1153, %v1155
        %v1157 = vrot.slane %v402, 1
        %v1158 = vsel %vm569, %v1155, %v1157
        %v1159 = vrot.slane %v403, 1
        %v1160 = vsel %vm569, %v1157, %v1159
        %v1161 = vrot.slane %v399, 2
        %v1162 = vrot.slane %v400, 2
        %v1163 = vsel %vm858, %v1161, %v1162
        %v1164 = vrot.slane %v401, 2
        %v1165 = vsel %vm858, %v1162, %v1164
        %v1166 = vrot.slane %v402, 2
        %v1167 = vsel %vm858, %v1164, %v1166
        %v1168 = vrot.slane %v403, 2
        %v1169 = vsel %vm858, %v1166, %v1168
        %v1175 = vrot.slane %v404, 1
        %v1176 = vrot.slane %v405, 1
        %v1177 = vsel %vm569, %v1175, %v1176
        %v1178 = vrot.slane %v406, 1
        %v1179 = vsel %vm569, %v1176, %v1178
        %v1180 = vrot.slane %v407, 1
        %v1181 = vsel %vm569, %v1178, %v1180
        %v1182 = vrot.slane %v408, 1
        %v1183 = vsel %vm569, %v1180, %v1182
        %v1184 = vrot.slane %v404, 2
        %v1185 = vrot.slane %v405, 2
        %v1186 = vsel %vm858, %v1184, %v1185
        %v1187 = vrot.slane %v406, 2
        %v1188 = vsel %vm858, %v1185, %v1187
        %v1189 = vrot.slane %v407, 2
        %v1190 = vsel %vm858, %v1187, %v1189
        %v1191 = vrot.slane %v408, 2
        %v1192 = vsel %vm858, %v1189, %v1191
        %1193 = vrot.lane.b32.xlu0 %v572, 4
        %v1194 = vpop.permute.xlu0 %1193
        %1195 = vrot.lane.b32.xlu0 %v574, 4
        %v1196 = vpop.permute.xlu0 %1195
        %1197 = vrot.lane.b32.xlu0 %v576, 4
        %v1198 = vpop.permute.xlu0 %1197
        %1199 = vrot.lane.b32.xlu0 %v578, 4
        %v1200 = vpop.permute.xlu0 %1199
        %1201 = vrot.lane.b32.xlu0 %v581, 4
        %v1202 = vpop.permute.xlu0 %1201
        %1203 = vrot.lane.b32.xlu0 %v583, 4
        %v1204 = vpop.permute.xlu0 %1203
        %1205 = vrot.lane.b32.xlu0 %v585, 4
        %v1206 = vpop.permute.xlu0 %1205
        %1207 = vrot.lane.b32.xlu0 %v587, 4
        %v1208 = vpop.permute.xlu0 %1207
        %1209 = vrot.lane.b32.xlu0 %v590, 4
        %v1210 = vpop.permute.xlu0 %1209
        %1211 = vrot.lane.b32.xlu0 %v592, 4
        %v1212 = vpop.permute.xlu0 %1211
        %1213 = vrot.lane.b32.xlu0 %v594, 4
        %v1214 = vpop.permute.xlu0 %1213
        %1215 = vrot.lane.b32.xlu0 %v596, 4
        %v1216 = vpop.permute.xlu0 %1215
        %1217 = vrot.lane.b32.xlu0 %v599, 4
        %v1218 = vpop.permute.xlu0 %1217
        %1219 = vrot.lane.b32.xlu0 %v601, 4
        %v1220 = vpop.permute.xlu0 %1219
        %1221 = vrot.lane.b32.xlu0 %v603, 4
        %v1222 = vpop.permute.xlu0 %1221
        %1223 = vrot.lane.b32.xlu0 %v605, 4
        %v1224 = vpop.permute.xlu0 %1223
        %1225 = vrot.lane.b32.xlu0 %v608, 4
        %v1226 = vpop.permute.xlu0 %1225
        %1227 = vrot.lane.b32.xlu0 %v610, 4
        %v1228 = vpop.permute.xlu0 %1227
        %1229 = vrot.lane.b32.xlu0 %v612, 4
        %v1230 = vpop.permute.xlu0 %1229
        %1231 = vrot.lane.b32.xlu0 %v614, 4
        %v1232 = vpop.permute.xlu0 %1231
        %1233 = vrot.lane.b32.xlu0 %v617, 4
        %v1234 = vpop.permute.xlu0 %1233
        %1235 = vrot.lane.b32.xlu0 %v619, 4
        %v1236 = vpop.permute.xlu0 %1235
        %1237 = vrot.lane.b32.xlu0 %v621, 4
        %v1238 = vpop.permute.xlu0 %1237
        %1239 = vrot.lane.b32.xlu0 %v623, 4
        %v1240 = vpop.permute.xlu0 %1239
        %1241 = vrot.lane.b32.xlu0 %v626, 4
        %v1242 = vpop.permute.xlu0 %1241
        %1243 = vrot.lane.b32.xlu0 %v628, 4
        %v1244 = vpop.permute.xlu0 %1243
        %1245 = vrot.lane.b32.xlu0 %v630, 4
        %v1246 = vpop.permute.xlu0 %1245
        %1247 = vrot.lane.b32.xlu0 %v632, 4
        %v1248 = vpop.permute.xlu0 %1247
        %1249 = vrot.lane.b32.xlu0 %v635, 4
        %v1250 = vpop.permute.xlu0 %1249
        %1251 = vrot.lane.b32.xlu0 %v637, 4
        %v1252 = vpop.permute.xlu0 %1251
        %1253 = vrot.lane.b32.xlu0 %v639, 4
        %v1254 = vpop.permute.xlu0 %1253
        %1255 = vrot.lane.b32.xlu0 %v641, 4
        %v1256 = vpop.permute.xlu0 %1255
        %1257 = vrot.lane.b32.xlu0 %v644, 4
        %v1258 = vpop.permute.xlu0 %1257
        %1259 = vrot.lane.b32.xlu0 %v646, 4
        %v1260 = vpop.permute.xlu0 %1259
        %1261 = vrot.lane.b32.xlu0 %v648, 4
        %v1262 = vpop.permute.xlu0 %1261
        %1263 = vrot.lane.b32.xlu0 %v650, 4
        %v1264 = vpop.permute.xlu0 %1263
        %1265 = vrot.lane.b32.xlu0 %v653, 4
        %v1266 = vpop.permute.xlu0 %1265
        %1267 = vrot.lane.b32.xlu0 %v655, 4
        %v1268 = vpop.permute.xlu0 %1267
        %1269 = vrot.lane.b32.xlu0 %v657, 4
        %v1270 = vpop.permute.xlu0 %1269
        %1271 = vrot.lane.b32.xlu0 %v659, 4
        %v1272 = vpop.permute.xlu0 %1271
        %1273 = vrot.lane.b32.xlu0 %v662, 4
        %v1274 = vpop.permute.xlu0 %1273
        %1275 = vrot.lane.b32.xlu0 %v664, 4
        %v1276 = vpop.permute.xlu0 %1275
        %1277 = vrot.lane.b32.xlu0 %v666, 4
        %v1278 = vpop.permute.xlu0 %1277
        %1279 = vrot.lane.b32.xlu0 %v668, 4
        %v1280 = vpop.permute.xlu0 %1279
        %1281 = vrot.lane.b32.xlu0 %v671, 4
        %v1282 = vpop.permute.xlu0 %1281
        %1283 = vrot.lane.b32.xlu0 %v673, 4
        %v1284 = vpop.permute.xlu0 %1283
        %1285 = vrot.lane.b32.xlu0 %v675, 4
        %v1286 = vpop.permute.xlu0 %1285
        %1287 = vrot.lane.b32.xlu0 %v677, 4
        %v1288 = vpop.permute.xlu0 %1287
        %1289 = vrot.lane.b32.xlu0 %v680, 4
        %v1290 = vpop.permute.xlu0 %1289
        %1291 = vrot.lane.b32.xlu0 %v682, 4
        %v1292 = vpop.permute.xlu0 %1291
        %1293 = vrot.lane.b32.xlu0 %v684, 4
        %v1294 = vpop.permute.xlu0 %1293
        %1295 = vrot.lane.b32.xlu0 %v686, 4
        %v1296 = vpop.permute.xlu0 %1295
        %1297 = vrot.lane.b32.xlu0 %v689, 4
        %v1298 = vpop.permute.xlu0 %1297
        %1299 = vrot.lane.b32.xlu0 %v691, 4
        %v1300 = vpop.permute.xlu0 %1299
        %1301 = vrot.lane.b32.xlu0 %v693, 4
        %v1302 = vpop.permute.xlu0 %1301
        %1303 = vrot.lane.b32.xlu0 %v695, 4
        %v1304 = vpop.permute.xlu0 %1303
        %1305 = vrot.lane.b32.xlu0 %v698, 4
        %v1306 = vpop.permute.xlu0 %1305
        %1307 = vrot.lane.b32.xlu0 %v700, 4
        %v1308 = vpop.permute.xlu0 %1307
        %1309 = vrot.lane.b32.xlu0 %v702, 4
        %v1310 = vpop.permute.xlu0 %1309
        %1311 = vrot.lane.b32.xlu0 %v704, 4
        %v1312 = vpop.permute.xlu0 %1311
        %1313 = vrot.lane.b32.xlu0 %v707, 4
        %v1314 = vpop.permute.xlu0 %1313
        %1315 = vrot.lane.b32.xlu0 %v709, 4
        %v1316 = vpop.permute.xlu0 %1315
        %1317 = vrot.lane.b32.xlu0 %v711, 4
        %v1318 = vpop.permute.xlu0 %1317
        %1319 = vrot.lane.b32.xlu0 %v713, 4
        %v1320 = vpop.permute.xlu0 %1319
        %1321 = vrot.lane.b32.xlu0 %v716, 4
        %v1322 = vpop.permute.xlu0 %1321
        %1323 = vrot.lane.b32.xlu0 %v718, 4
        %v1324 = vpop.permute.xlu0 %1323
        %1325 = vrot.lane.b32.xlu0 %v720, 4
        %v1326 = vpop.permute.xlu0 %1325
        %1327 = vrot.lane.b32.xlu0 %v722, 4
        %v1328 = vpop.permute.xlu0 %1327
        %1329 = vrot.lane.b32.xlu0 %v725, 4
        %v1330 = vpop.permute.xlu0 %1329
        %1331 = vrot.lane.b32.xlu0 %v727, 4
        %v1332 = vpop.permute.xlu0 %1331
        %1333 = vrot.lane.b32.xlu0 %v729, 4
        %v1334 = vpop.permute.xlu0 %1333
        %1335 = vrot.lane.b32.xlu0 %v731, 4
        %v1336 = vpop.permute.xlu0 %1335
        %1337 = vrot.lane.b32.xlu0 %v734, 4
        %v1338 = vpop.permute.xlu0 %1337
        %1339 = vrot.lane.b32.xlu0 %v736, 4
        %v1340 = vpop.permute.xlu0 %1339
        %1341 = vrot.lane.b32.xlu0 %v738, 4
        %v1342 = vpop.permute.xlu0 %1341
        %1343 = vrot.lane.b32.xlu0 %v740, 4
        %v1344 = vpop.permute.xlu0 %1343
        %1345 = vrot.lane.b32.xlu0 %v743, 4
        %v1346 = vpop.permute.xlu0 %1345
        %1347 = vrot.lane.b32.xlu0 %v745, 4
        %v1348 = vpop.permute.xlu0 %1347
        %1349 = vrot.lane.b32.xlu0 %v747, 4
        %v1350 = vpop.permute.xlu0 %1349
        %1351 = vrot.lane.b32.xlu0 %v749, 4
        %v1352 = vpop.permute.xlu0 %1351
        %1353 = vrot.lane.b32.xlu0 %v752, 4
        %v1354 = vpop.permute.xlu0 %1353
        %1355 = vrot.lane.b32.xlu0 %v754, 4
        %v1356 = vpop.permute.xlu0 %1355
        %1357 = vrot.lane.b32.xlu0 %v756, 4
        %v1358 = vpop.permute.xlu0 %1357
        %1359 = vrot.lane.b32.xlu0 %v758, 4
        %v1360 = vpop.permute.xlu0 %1359
        %1361 = vrot.lane.b32.xlu0 %v761, 4
        %v1362 = vpop.permute.xlu0 %1361
        %1363 = vrot.lane.b32.xlu0 %v763, 4
        %v1364 = vpop.permute.xlu0 %1363
        %1365 = vrot.lane.b32.xlu0 %v765, 4
        %v1366 = vpop.permute.xlu0 %1365
        %1367 = vrot.lane.b32.xlu0 %v767, 4
        %v1368 = vpop.permute.xlu0 %1367
        %1369 = vrot.lane.b32.xlu0 %v770, 4
        %v1370 = vpop.permute.xlu0 %1369
        %1371 = vrot.lane.b32.xlu0 %v772, 4
        %v1372 = vpop.permute.xlu0 %1371
        %1373 = vrot.lane.b32.xlu0 %v774, 4
        %v1374 = vpop.permute.xlu0 %1373
        %1375 = vrot.lane.b32.xlu0 %v776, 4
        %v1376 = vpop.permute.xlu0 %1375
        %1377 = vrot.lane.b32.xlu0 %v779, 4
        %v1378 = vpop.permute.xlu0 %1377
        %1379 = vrot.lane.b32.xlu0 %v781, 4
        %v1380 = vpop.permute.xlu0 %1379
        %1381 = vrot.lane.b32.xlu0 %v783, 4
        %v1382 = vpop.permute.xlu0 %1381
        %1383 = vrot.lane.b32.xlu0 %v785, 4
        %v1384 = vpop.permute.xlu0 %1383
        %1385 = vrot.lane.b32.xlu0 %v788, 4
        %v1386 = vpop.permute.xlu0 %1385
        %1387 = vrot.lane.b32.xlu0 %v790, 4
        %v1388 = vpop.permute.xlu0 %1387
        %1389 = vrot.lane.b32.xlu0 %v792, 4
        %v1390 = vpop.permute.xlu0 %1389
        %1391 = vrot.lane.b32.xlu0 %v794, 4
        %v1392 = vpop.permute.xlu0 %1391
        %1393 = vrot.lane.b32.xlu0 %v797, 4
        %v1394 = vpop.permute.xlu0 %1393
        %1395 = vrot.lane.b32.xlu0 %v799, 4
        %v1396 = vpop.permute.xlu0 %1395
        %1397 = vrot.lane.b32.xlu0 %v801, 4
        %v1398 = vpop.permute.xlu0 %1397
        %1399 = vrot.lane.b32.xlu0 %v803, 4
        %v1400 = vpop.permute.xlu0 %1399
        %1401 = vrot.lane.b32.xlu0 %v806, 4
        %v1402 = vpop.permute.xlu0 %1401
        %1403 = vrot.lane.b32.xlu0 %v808, 4
        %v1404 = vpop.permute.xlu0 %1403
        %1405 = vrot.lane.b32.xlu0 %v810, 4
        %v1406 = vpop.permute.xlu0 %1405
        %1407 = vrot.lane.b32.xlu0 %v812, 4
        %v1408 = vpop.permute.xlu0 %1407
        %1409 = vrot.lane.b32.xlu0 %v815, 4
        %v1410 = vpop.permute.xlu0 %1409
        %1411 = vrot.lane.b32.xlu0 %v817, 4
        %v1412 = vpop.permute.xlu0 %1411
        %1413 = vrot.lane.b32.xlu0 %v819, 4
        %v1414 = vpop.permute.xlu0 %1413
        %1415 = vrot.lane.b32.xlu0 %v821, 4
        %v1416 = vpop.permute.xlu0 %1415
        %1417 = vrot.lane.b32.xlu0 %v824, 4
        %v1418 = vpop.permute.xlu0 %1417
        %1419 = vrot.lane.b32.xlu0 %v826, 4
        %v1420 = vpop.permute.xlu0 %1419
        %1421 = vrot.lane.b32.xlu0 %v828, 4
        %v1422 = vpop.permute.xlu0 %1421
        %1423 = vrot.lane.b32.xlu0 %v830, 4
        %v1424 = vpop.permute.xlu0 %1423
        %1425 = vrot.lane.b32.xlu0 %v833, 4
        %v1426 = vpop.permute.xlu0 %1425
        %1427 = vrot.lane.b32.xlu0 %v835, 4
        %v1428 = vpop.permute.xlu0 %1427
        %1429 = vrot.lane.b32.xlu0 %v837, 4
        %v1430 = vpop.permute.xlu0 %1429
        %1431 = vrot.lane.b32.xlu0 %v839, 4
        %v1432 = vpop.permute.xlu0 %1431
        %1433 = vrot.lane.b32.xlu0 %v842, 4
        %v1434 = vpop.permute.xlu0 %1433
        %1435 = vrot.lane.b32.xlu0 %v844, 4
        %v1436 = vpop.permute.xlu0 %1435
        %1437 = vrot.lane.b32.xlu0 %v846, 4
        %v1438 = vpop.permute.xlu0 %1437
        %1439 = vrot.lane.b32.xlu0 %v848, 4
        %v1440 = vpop.permute.xlu0 %1439
        %1441 = vrot.lane.b32.xlu0 %v851, 4
        %v1442 = vpop.permute.xlu0 %1441
        %1443 = vrot.lane.b32.xlu0 %v853, 4
        %v1444 = vpop.permute.xlu0 %1443
        %1445 = vrot.lane.b32.xlu0 %v855, 4
        %v1446 = vpop.permute.xlu0 %1445
        %1447 = vrot.lane.b32.xlu0 %v857, 4
        %v1448 = vpop.permute.xlu0 %1447
        %1577 = vrot.lane.b32.xlu0 %v861, 8
        %v1578 = vpop.permute.xlu0 %1577
        %1579 = vrot.lane.b32.xlu0 %v863, 8
        %v1580 = vpop.permute.xlu0 %1579
        %1581 = vrot.lane.b32.xlu0 %v865, 8
        %v1582 = vpop.permute.xlu0 %1581
        %1583 = vrot.lane.b32.xlu0 %v867, 8
        %v1584 = vpop.permute.xlu0 %1583
        %1585 = vrot.lane.b32.xlu0 %v870, 8
        %v1586 = vpop.permute.xlu0 %1585
        %1587 = vrot.lane.b32.xlu0 %v872, 8
        %v1588 = vpop.permute.xlu0 %1587
        %1589 = vrot.lane.b32.xlu0 %v874, 8
        %v1590 = vpop.permute.xlu0 %1589
        %1591 = vrot.lane.b32.xlu0 %v876, 8
        %v1592 = vpop.permute.xlu0 %1591
        %1593 = vrot.lane.b32.xlu0 %v879, 8
        %v1594 = vpop.permute.xlu0 %1593
        %1595 = vrot.lane.b32.xlu0 %v881, 8
        %v1596 = vpop.permute.xlu0 %1595
        %1597 = vrot.lane.b32.xlu0 %v883, 8
        %v1598 = vpop.permute.xlu0 %1597
        %1599 = vrot.lane.b32.xlu0 %v885, 8
        %v1600 = vpop.permute.xlu0 %1599
        %1601 = vrot.lane.b32.xlu0 %v888, 8
        %v1602 = vpop.permute.xlu0 %1601
        %1603 = vrot.lane.b32.xlu0 %v890, 8
        %v1604 = vpop.permute.xlu0 %1603
        %1605 = vrot.lane.b32.xlu0 %v892, 8
        %v1606 = vpop.permute.xlu0 %1605
        %1607 = vrot.lane.b32.xlu0 %v894, 8
        %v1608 = vpop.permute.xlu0 %1607
        %1609 = vrot.lane.b32.xlu0 %v897, 8
        %v1610 = vpop.permute.xlu0 %1609
        %1611 = vrot.lane.b32.xlu0 %v899, 8
        %v1612 = vpop.permute.xlu0 %1611
        %1613 = vrot.lane.b32.xlu0 %v901, 8
        %v1614 = vpop.permute.xlu0 %1613
        %1615 = vrot.lane.b32.xlu0 %v903, 8
        %v1616 = vpop.permute.xlu0 %1615
        %1617 = vrot.lane.b32.xlu0 %v906, 8
        %v1618 = vpop.permute.xlu0 %1617
        %1619 = vrot.lane.b32.xlu0 %v908, 8
        %v1620 = vpop.permute.xlu0 %1619
        %1621 = vrot.lane.b32.xlu0 %v910, 8
        %v1622 = vpop.permute.xlu0 %1621
        %1623 = vrot.lane.b32.xlu0 %v912, 8
        %v1624 = vpop.permute.xlu0 %1623
        %1625 = vrot.lane.b32.xlu0 %v915, 8
        %v1626 = vpop.permute.xlu0 %1625
        %1627 = vrot.lane.b32.xlu0 %v917, 8
        %v1628 = vpop.permute.xlu0 %1627
        %1629 = vrot.lane.b32.xlu0 %v919, 8
        %v1630 = vpop.permute.xlu0 %1629
        %1631 = vrot.lane.b32.xlu0 %v921, 8
        %v1632 = vpop.permute.xlu0 %1631
        %1633 = vrot.lane.b32.xlu0 %v924, 8
        %v1634 = vpop.permute.xlu0 %1633
        %1635 = vrot.lane.b32.xlu0 %v926, 8
        %v1636 = vpop.permute.xlu0 %1635
        %1637 = vrot.lane.b32.xlu0 %v928, 8
        %v1638 = vpop.permute.xlu0 %1637
        %1639 = vrot.lane.b32.xlu0 %v930, 8
        %v1640 = vpop.permute.xlu0 %1639
        %1641 = vrot.lane.b32.xlu0 %v933, 8
        %v1642 = vpop.permute.xlu0 %1641
        %1643 = vrot.lane.b32.xlu0 %v935, 8
        %v1644 = vpop.permute.xlu0 %1643
        %1645 = vrot.lane.b32.xlu0 %v937, 8
        %v1646 = vpop.permute.xlu0 %1645
        %1647 = vrot.lane.b32.xlu0 %v939, 8
        %v1648 = vpop.permute.xlu0 %1647
        %1649 = vrot.lane.b32.xlu0 %v942, 8
        %v1650 = vpop.permute.xlu0 %1649
        %1651 = vrot.lane.b32.xlu0 %v944, 8
        %v1652 = vpop.permute.xlu0 %1651
        %1653 = vrot.lane.b32.xlu0 %v946, 8
        %v1654 = vpop.permute.xlu0 %1653
        %1655 = vrot.lane.b32.xlu0 %v948, 8
        %v1656 = vpop.permute.xlu0 %1655
        %1657 = vrot.lane.b32.xlu0 %v951, 8
        %v1658 = vpop.permute.xlu0 %1657
        %1659 = vrot.lane.b32.xlu0 %v953, 8
        %v1660 = vpop.permute.xlu0 %1659
        %1661 = vrot.lane.b32.xlu0 %v955, 8
        %v1662 = vpop.permute.xlu0 %1661
        %1663 = vrot.lane.b32.xlu0 %v957, 8
        %v1664 = vpop.permute.xlu0 %1663
        %1665 = vrot.lane.b32.xlu0 %v960, 8
        %v1666 = vpop.permute.xlu0 %1665
        %1667 = vrot.lane.b32.xlu0 %v962, 8
        %v1668 = vpop.permute.xlu0 %1667
        %1669 = vrot.lane.b32.xlu0 %v964, 8
        %v1670 = vpop.permute.xlu0 %1669
        %1671 = vrot.lane.b32.xlu0 %v966, 8
        %v1672 = vpop.permute.xlu0 %1671
        %1673 = vrot.lane.b32.xlu0 %v969, 8
        %v1674 = vpop.permute.xlu0 %1673
        %1675 = vrot.lane.b32.xlu0 %v971, 8
        %v1676 = vpop.permute.xlu0 %1675
        %1677 = vrot.lane.b32.xlu0 %v973, 8
        %v1678 = vpop.permute.xlu0 %1677
        %1679 = vrot.lane.b32.xlu0 %v975, 8
        %v1680 = vpop.permute.xlu0 %1679
        %1681 = vrot.lane.b32.xlu0 %v978, 8
        %v1682 = vpop.permute.xlu0 %1681
        %1683 = vrot.lane.b32.xlu0 %v980, 8
        %v1684 = vpop.permute.xlu0 %1683
        %1685 = vrot.lane.b32.xlu0 %v982, 8
        %v1686 = vpop.permute.xlu0 %1685
        %1687 = vrot.lane.b32.xlu0 %v984, 8
        %v1688 = vpop.permute.xlu0 %1687
        %1689 = vrot.lane.b32.xlu0 %v987, 8
        %v1690 = vpop.permute.xlu0 %1689
        %1691 = vrot.lane.b32.xlu0 %v989, 8
        %v1692 = vpop.permute.xlu0 %1691
        %1693 = vrot.lane.b32.xlu0 %v991, 8
        %v1694 = vpop.permute.xlu0 %1693
        %1695 = vrot.lane.b32.xlu0 %v993, 8
        %v1696 = vpop.permute.xlu0 %1695
        %1697 = vrot.lane.b32.xlu0 %v996, 8
        %v1698 = vpop.permute.xlu0 %1697
        %1699 = vrot.lane.b32.xlu0 %v998, 8
        %v1700 = vpop.permute.xlu0 %1699
        %1701 = vrot.lane.b32.xlu0 %v1000, 8
        %v1702 = vpop.permute.xlu0 %1701
        %1703 = vrot.lane.b32.xlu0 %v1002, 8
        %v1704 = vpop.permute.xlu0 %1703
        %1705 = vrot.lane.b32.xlu0 %v1005, 8
        %v1706 = vpop.permute.xlu0 %1705
        %1707 = vrot.lane.b32.xlu0 %v1007, 8
        %v1708 = vpop.permute.xlu0 %1707
        %1709 = vrot.lane.b32.xlu0 %v1009, 8
        %v1710 = vpop.permute.xlu0 %1709
        %1711 = vrot.lane.b32.xlu0 %v1011, 8
        %v1712 = vpop.permute.xlu0 %1711
        %1713 = vrot.lane.b32.xlu0 %v1014, 8
        %v1714 = vpop.permute.xlu0 %1713
        %1715 = vrot.lane.b32.xlu0 %v1016, 8
        %v1716 = vpop.permute.xlu0 %1715
        %1717 = vrot.lane.b32.xlu0 %v1018, 8
        %v1718 = vpop.permute.xlu0 %1717
        %1719 = vrot.lane.b32.xlu0 %v1020, 8
        %v1720 = vpop.permute.xlu0 %1719
        %1721 = vrot.lane.b32.xlu0 %v1023, 8
        %v1722 = vpop.permute.xlu0 %1721
        %1723 = vrot.lane.b32.xlu0 %v1025, 8
        %v1724 = vpop.permute.xlu0 %1723
        %1725 = vrot.lane.b32.xlu0 %v1027, 8
        %v1726 = vpop.permute.xlu0 %1725
        %1727 = vrot.lane.b32.xlu0 %v1029, 8
        %v1728 = vpop.permute.xlu0 %1727
        %1729 = vrot.lane.b32.xlu0 %v1032, 8
        %v1730 = vpop.permute.xlu0 %1729
        %1731 = vrot.lane.b32.xlu0 %v1034, 8
        %v1732 = vpop.permute.xlu0 %1731
        %1733 = vrot.lane.b32.xlu0 %v1036, 8
        %v1734 = vpop.permute.xlu0 %1733
        %1735 = vrot.lane.b32.xlu0 %v1038, 8
        %v1736 = vpop.permute.xlu0 %1735
        %1737 = vrot.lane.b32.xlu0 %v1041, 8
        %v1738 = vpop.permute.xlu0 %1737
        %1739 = vrot.lane.b32.xlu0 %v1043, 8
        %v1740 = vpop.permute.xlu0 %1739
        %1741 = vrot.lane.b32.xlu0 %v1045, 8
        %v1742 = vpop.permute.xlu0 %1741
        %1743 = vrot.lane.b32.xlu0 %v1047, 8
        %v1744 = vpop.permute.xlu0 %1743
        %1745 = vrot.lane.b32.xlu0 %v1050, 8
        %v1746 = vpop.permute.xlu0 %1745
        %1747 = vrot.lane.b32.xlu0 %v1052, 8
        %v1748 = vpop.permute.xlu0 %1747
        %1749 = vrot.lane.b32.xlu0 %v1054, 8
        %v1750 = vpop.permute.xlu0 %1749
        %1751 = vrot.lane.b32.xlu0 %v1056, 8
        %v1752 = vpop.permute.xlu0 %1751
        %1753 = vrot.lane.b32.xlu0 %v1059, 8
        %v1754 = vpop.permute.xlu0 %1753
        %1755 = vrot.lane.b32.xlu0 %v1061, 8
        %v1756 = vpop.permute.xlu0 %1755
        %1757 = vrot.lane.b32.xlu0 %v1063, 8
        %v1758 = vpop.permute.xlu0 %1757
        %1759 = vrot.lane.b32.xlu0 %v1065, 8
        %v1760 = vpop.permute.xlu0 %1759
        %1761 = vrot.lane.b32.xlu0 %v1068, 8
        %v1762 = vpop.permute.xlu0 %1761
        %1763 = vrot.lane.b32.xlu0 %v1070, 8
        %v1764 = vpop.permute.xlu0 %1763
        %1765 = vrot.lane.b32.xlu0 %v1072, 8
        %v1766 = vpop.permute.xlu0 %1765
        %1767 = vrot.lane.b32.xlu0 %v1074, 8
        %v1768 = vpop.permute.xlu0 %1767
        %1769 = vrot.lane.b32.xlu0 %v1077, 8
        %v1770 = vpop.permute.xlu0 %1769
        %1771 = vrot.lane.b32.xlu0 %v1079, 8
        %v1772 = vpop.permute.xlu0 %1771
        %1773 = vrot.lane.b32.xlu0 %v1081, 8
        %v1774 = vpop.permute.xlu0 %1773
        %1775 = vrot.lane.b32.xlu0 %v1083, 8
        %v1776 = vpop.permute.xlu0 %1775
        %1777 = vrot.lane.b32.xlu0 %v1086, 8
        %v1778 = vpop.permute.xlu0 %1777
        %1779 = vrot.lane.b32.xlu0 %v1088, 8
        %v1780 = vpop.permute.xlu0 %1779
        %1781 = vrot.lane.b32.xlu0 %v1090, 8
        %v1782 = vpop.permute.xlu0 %1781
        %1783 = vrot.lane.b32.xlu0 %v1092, 8
        %v1784 = vpop.permute.xlu0 %1783
        %1785 = vrot.lane.b32.xlu0 %v1095, 8
        %v1786 = vpop.permute.xlu0 %1785
        %1787 = vrot.lane.b32.xlu0 %v1097, 8
        %v1788 = vpop.permute.xlu0 %1787
        %1789 = vrot.lane.b32.xlu0 %v1099, 8
        %v1790 = vpop.permute.xlu0 %1789
        %1791 = vrot.lane.b32.xlu0 %v1101, 8
        %v1792 = vpop.permute.xlu0 %1791
        %1793 = vrot.lane.b32.xlu0 %v1104, 8
        %v1794 = vpop.permute.xlu0 %1793
        %1795 = vrot.lane.b32.xlu0 %v1106, 8
        %v1796 = vpop.permute.xlu0 %1795
        %1797 = vrot.lane.b32.xlu0 %v1108, 8
        %v1798 = vpop.permute.xlu0 %1797
        %1799 = vrot.lane.b32.xlu0 %v1110, 8
        %v1800 = vpop.permute.xlu0 %1799
        %1801 = vrot.lane.b32.xlu0 %v1113, 8
        %v1802 = vpop.permute.xlu0 %1801
        %1803 = vrot.lane.b32.xlu0 %v1115, 8
        %v1804 = vpop.permute.xlu0 %1803
        %1805 = vrot.lane.b32.xlu0 %v1117, 8
        %v1806 = vpop.permute.xlu0 %1805
        %1807 = vrot.lane.b32.xlu0 %v1119, 8
        %v1808 = vpop.permute.xlu0 %1807
        %1809 = vrot.lane.b32.xlu0 %v1122, 8
        %v1810 = vpop.permute.xlu0 %1809
        %1811 = vrot.lane.b32.xlu0 %v1124, 8
        %v1812 = vpop.permute.xlu0 %1811
        %1813 = vrot.lane.b32.xlu0 %v1126, 8
        %v1814 = vpop.permute.xlu0 %1813
        %1815 = vrot.lane.b32.xlu0 %v1128, 8
        %v1816 = vpop.permute.xlu0 %1815
        %1817 = vrot.lane.b32.xlu0 %v1131, 8
        %v1818 = vpop.permute.xlu0 %1817
        %1819 = vrot.lane.b32.xlu0 %v1133, 8
        %v1820 = vpop.permute.xlu0 %1819
        %1821 = vrot.lane.b32.xlu0 %v1135, 8
        %v1822 = vpop.permute.xlu0 %1821
        %1823 = vrot.lane.b32.xlu0 %v1137, 8
        %v1824 = vpop.permute.xlu0 %1823
        %1825 = vrot.lane.b32.xlu0 %v1140, 8
        %v1826 = vpop.permute.xlu0 %1825
        %1827 = vrot.lane.b32.xlu0 %v1142, 8
        %v1828 = vpop.permute.xlu0 %1827
        %1829 = vrot.lane.b32.xlu0 %v1144, 8
        %v1830 = vpop.permute.xlu0 %1829
        %1831 = vrot.lane.b32.xlu0 %v1146, 8
        %v1832 = vpop.permute.xlu0 %1831
        %1961 = vrot.lane.b32.xlu0 %v244, 12
        %v1962 = vpop.permute.xlu0 %1961
        %1963 = vrot.lane.b32.xlu0 %v245, 12
        %v1964 = vpop.permute.xlu0 %1963
        %1965 = vrot.lane.b32.xlu0 %v246, 12
        %v1966 = vpop.permute.xlu0 %1965
        %1967 = vrot.lane.b32.xlu0 %v247, 12
        %v1968 = vpop.permute.xlu0 %1967
        %1969 = vrot.lane.b32.xlu0 %v249, 12
        %v1970 = vpop.permute.xlu0 %1969
        %1971 = vrot.lane.b32.xlu0 %v250, 12
        %v1972 = vpop.permute.xlu0 %1971
        %1973 = vrot.lane.b32.xlu0 %v251, 12
        %v1974 = vpop.permute.xlu0 %1973
        %1975 = vrot.lane.b32.xlu0 %v252, 12
        %v1976 = vpop.permute.xlu0 %1975
        %1977 = vrot.lane.b32.xlu0 %v254, 12
        %v1978 = vpop.permute.xlu0 %1977
        %1979 = vrot.lane.b32.xlu0 %v255, 12
        %v1980 = vpop.permute.xlu0 %1979
        %1981 = vrot.lane.b32.xlu0 %v256, 12
        %v1982 = vpop.permute.xlu0 %1981
        %1983 = vrot.lane.b32.xlu0 %v257, 12
        %v1984 = vpop.permute.xlu0 %1983
        %1985 = vrot.lane.b32.xlu0 %v259, 12
        %v1986 = vpop.permute.xlu0 %1985
        %1987 = vrot.lane.b32.xlu0 %v260, 12
        %v1988 = vpop.permute.xlu0 %1987
        %1989 = vrot.lane.b32.xlu0 %v261, 12
        %v1990 = vpop.permute.xlu0 %1989
        %1991 = vrot.lane.b32.xlu0 %v262, 12
        %v1992 = vpop.permute.xlu0 %1991
        %1993 = vrot.lane.b32.xlu0 %v264, 12
        %v1994 = vpop.permute.xlu0 %1993
        %1995 = vrot.lane.b32.xlu0 %v265, 12
        %v1996 = vpop.permute.xlu0 %1995
        %1997 = vrot.lane.b32.xlu0 %v266, 12
        %v1998 = vpop.permute.xlu0 %1997
        %1999 = vrot.lane.b32.xlu0 %v267, 12
        %v2000 = vpop.permute.xlu0 %1999
        %2001 = vrot.lane.b32.xlu0 %v269, 12
        %v2002 = vpop.permute.xlu0 %2001
        %2003 = vrot.lane.b32.xlu0 %v270, 12
        %v2004 = vpop.permute.xlu0 %2003
        %2005 = vrot.lane.b32.xlu0 %v271, 12
        %v2006 = vpop.permute.xlu0 %2005
        %2007 = vrot.lane.b32.xlu0 %v272, 12
        %v2008 = vpop.permute.xlu0 %2007
        %2009 = vrot.lane.b32.xlu0 %v274, 12
        %v2010 = vpop.permute.xlu0 %2009
        %2011 = vrot.lane.b32.xlu0 %v275, 12
        %v2012 = vpop.permute.xlu0 %2011
        %2013 = vrot.lane.b32.xlu0 %v276, 12
        %v2014 = vpop.permute.xlu0 %2013
        %2015 = vrot.lane.b32.xlu0 %v277, 12
        %v2016 = vpop.permute.xlu0 %2015
        %2017 = vrot.lane.b32.xlu0 %v279, 12
        %v2018 = vpop.permute.xlu0 %2017
        %2019 = vrot.lane.b32.xlu0 %v280, 12
        %v2020 = vpop.permute.xlu0 %2019
        %2021 = vrot.lane.b32.xlu0 %v281, 12
        %v2022 = vpop.permute.xlu0 %2021
        %2023 = vrot.lane.b32.xlu0 %v282, 12
        %v2024 = vpop.permute.xlu0 %2023
        %2025 = vrot.lane.b32.xlu0 %v284, 12
        %v2026 = vpop.permute.xlu0 %2025
        %2027 = vrot.lane.b32.xlu0 %v285, 12
        %v2028 = vpop.permute.xlu0 %2027
        %2029 = vrot.lane.b32.xlu0 %v286, 12
        %v2030 = vpop.permute.xlu0 %2029
        %2031 = vrot.lane.b32.xlu0 %v287, 12
        %v2032 = vpop.permute.xlu0 %2031
        %2033 = vrot.lane.b32.xlu0 %v289, 12
        %v2034 = vpop.permute.xlu0 %2033
        %2035 = vrot.lane.b32.xlu0 %v290, 12
        %v2036 = vpop.permute.xlu0 %2035
        %2037 = vrot.lane.b32.xlu0 %v291, 12
        %v2038 = vpop.permute.xlu0 %2037
        %2039 = vrot.lane.b32.xlu0 %v292, 12
        %v2040 = vpop.permute.xlu0 %2039
        %2041 = vrot.lane.b32.xlu0 %v294, 12
        %v2042 = vpop.permute.xlu0 %2041
        %2043 = vrot.lane.b32.xlu0 %v295, 12
        %v2044 = vpop.permute.xlu0 %2043
        %2045 = vrot.lane.b32.xlu0 %v296, 12
        %v2046 = vpop.permute.xlu0 %2045
        %2047 = vrot.lane.b32.xlu0 %v297, 12
        %v2048 = vpop.permute.xlu0 %2047
        %2049 = vrot.lane.b32.xlu0 %v299, 12
        %v2050 = vpop.permute.xlu0 %2049
        %2051 = vrot.lane.b32.xlu0 %v300, 12
        %v2052 = vpop.permute.xlu0 %2051
        %2053 = vrot.lane.b32.xlu0 %v301, 12
        %v2054 = vpop.permute.xlu0 %2053
        %2055 = vrot.lane.b32.xlu0 %v302, 12
        %v2056 = vpop.permute.xlu0 %2055
        %2057 = vrot.lane.b32.xlu0 %v304, 12
        %v2058 = vpop.permute.xlu0 %2057
        %2059 = vrot.lane.b32.xlu0 %v305, 12
        %v2060 = vpop.permute.xlu0 %2059
        %2061 = vrot.lane.b32.xlu0 %v306, 12
        %v2062 = vpop.permute.xlu0 %2061
        %2063 = vrot.lane.b32.xlu0 %v307, 12
        %v2064 = vpop.permute.xlu0 %2063
        %2065 = vrot.lane.b32.xlu0 %v309, 12
        %v2066 = vpop.permute.xlu0 %2065
        %2067 = vrot.lane.b32.xlu0 %v310, 12
        %v2068 = vpop.permute.xlu0 %2067
        %2069 = vrot.lane.b32.xlu0 %v311, 12
        %v2070 = vpop.permute.xlu0 %2069
        %2071 = vrot.lane.b32.xlu0 %v312, 12
        %v2072 = vpop.permute.xlu0 %2071
        %2073 = vrot.lane.b32.xlu0 %v314, 12
        %v2074 = vpop.permute.xlu0 %2073
        %2075 = vrot.lane.b32.xlu0 %v315, 12
        %v2076 = vpop.permute.xlu0 %2075
        %2077 = vrot.lane.b32.xlu0 %v316, 12
        %v2078 = vpop.permute.xlu0 %2077
        %2079 = vrot.lane.b32.xlu0 %v317, 12
        %v2080 = vpop.permute.xlu0 %2079
        %2081 = vrot.lane.b32.xlu0 %v319, 12
        %v2082 = vpop.permute.xlu0 %2081
        %2083 = vrot.lane.b32.xlu0 %v320, 12
        %v2084 = vpop.permute.xlu0 %2083
        %2085 = vrot.lane.b32.xlu0 %v321, 12
        %v2086 = vpop.permute.xlu0 %2085
        %2087 = vrot.lane.b32.xlu0 %v322, 12
        %v2088 = vpop.permute.xlu0 %2087
        %2089 = vrot.lane.b32.xlu0 %v324, 12
        %v2090 = vpop.permute.xlu0 %2089
        %2091 = vrot.lane.b32.xlu0 %v325, 12
        %v2092 = vpop.permute.xlu0 %2091
        %2093 = vrot.lane.b32.xlu0 %v326, 12
        %v2094 = vpop.permute.xlu0 %2093
        %2095 = vrot.lane.b32.xlu0 %v327, 12
        %v2096 = vpop.permute.xlu0 %2095
        %2097 = vrot.lane.b32.xlu0 %v329, 12
        %v2098 = vpop.permute.xlu0 %2097
        %2099 = vrot.lane.b32.xlu0 %v330, 12
        %v2100 = vpop.permute.xlu0 %2099
        %2101 = vrot.lane.b32.xlu0 %v331, 12
        %v2102 = vpop.permute.xlu0 %2101
        %2103 = vrot.lane.b32.xlu0 %v332, 12
        %v2104 = vpop.permute.xlu0 %2103
        %2105 = vrot.lane.b32.xlu0 %v334, 12
        %v2106 = vpop.permute.xlu0 %2105
        %2107 = vrot.lane.b32.xlu0 %v335, 12
        %v2108 = vpop.permute.xlu0 %2107
        %2109 = vrot.lane.b32.xlu0 %v336, 12
        %v2110 = vpop.permute.xlu0 %2109
        %2111 = vrot.lane.b32.xlu0 %v337, 12
        %v2112 = vpop.permute.xlu0 %2111
        %2113 = vrot.lane.b32.xlu0 %v339, 12
        %v2114 = vpop.permute.xlu0 %2113
        %2115 = vrot.lane.b32.xlu0 %v340, 12
        %v2116 = vpop.permute.xlu0 %2115
        %2117 = vrot.lane.b32.xlu0 %v341, 12
        %v2118 = vpop.permute.xlu0 %2117
        %2119 = vrot.lane.b32.xlu0 %v342, 12
        %v2120 = vpop.permute.xlu0 %2119
        %2121 = vrot.lane.b32.xlu0 %v344, 12
        %v2122 = vpop.permute.xlu0 %2121
        %2123 = vrot.lane.b32.xlu0 %v345, 12
        %v2124 = vpop.permute.xlu0 %2123
        %2125 = vrot.lane.b32.xlu0 %v346, 12
        %v2126 = vpop.permute.xlu0 %2125
        %2127 = vrot.lane.b32.xlu0 %v347, 12
        %v2128 = vpop.permute.xlu0 %2127
        %2129 = vrot.lane.b32.xlu0 %v349, 12
        %v2130 = vpop.permute.xlu0 %2129
        %2131 = vrot.lane.b32.xlu0 %v350, 12
        %v2132 = vpop.permute.xlu0 %2131
        %2133 = vrot.lane.b32.xlu0 %v351, 12
        %v2134 = vpop.permute.xlu0 %2133
        %2135 = vrot.lane.b32.xlu0 %v352, 12
        %v2136 = vpop.permute.xlu0 %2135
        %2137 = vrot.lane.b32.xlu0 %v354, 12
        %v2138 = vpop.permute.xlu0 %2137
        %2139 = vrot.lane.b32.xlu0 %v355, 12
        %v2140 = vpop.permute.xlu0 %2139
        %2141 = vrot.lane.b32.xlu0 %v356, 12
        %v2142 = vpop.permute.xlu0 %2141
        %2143 = vrot.lane.b32.xlu0 %v357, 12
        %v2144 = vpop.permute.xlu0 %2143
        %2145 = vrot.lane.b32.xlu0 %v359, 12
        %v2146 = vpop.permute.xlu0 %2145
        %2147 = vrot.lane.b32.xlu0 %v360, 12
        %v2148 = vpop.permute.xlu0 %2147
        %2149 = vrot.lane.b32.xlu0 %v361, 12
        %v2150 = vpop.permute.xlu0 %2149
        %2151 = vrot.lane.b32.xlu0 %v362, 12
        %v2152 = vpop.permute.xlu0 %2151
        %2153 = vrot.lane.b32.xlu0 %v364, 12
        %v2154 = vpop.permute.xlu0 %2153
        %2155 = vrot.lane.b32.xlu0 %v365, 12
        %v2156 = vpop.permute.xlu0 %2155
        %2157 = vrot.lane.b32.xlu0 %v366, 12
        %v2158 = vpop.permute.xlu0 %2157
        %2159 = vrot.lane.b32.xlu0 %v367, 12
        %v2160 = vpop.permute.xlu0 %2159
        %2161 = vrot.lane.b32.xlu0 %v369, 12
        %v2162 = vpop.permute.xlu0 %2161
        %2163 = vrot.lane.b32.xlu0 %v370, 12
        %v2164 = vpop.permute.xlu0 %2163
        %2165 = vrot.lane.b32.xlu0 %v371, 12
        %v2166 = vpop.permute.xlu0 %2165
        %2167 = vrot.lane.b32.xlu0 %v372, 12
        %v2168 = vpop.permute.xlu0 %2167
        %2169 = vrot.lane.b32.xlu0 %v374, 12
        %v2170 = vpop.permute.xlu0 %2169
        %2171 = vrot.lane.b32.xlu0 %v375, 12
        %v2172 = vpop.permute.xlu0 %2171
        %2173 = vrot.lane.b32.xlu0 %v376, 12
        %v2174 = vpop.permute.xlu0 %2173
        %2175 = vrot.lane.b32.xlu0 %v377, 12
        %v2176 = vpop.permute.xlu0 %2175
        %2177 = vrot.lane.b32.xlu0 %v379, 12
        %v2178 = vpop.permute.xlu0 %2177
        %2179 = vrot.lane.b32.xlu0 %v380, 12
        %v2180 = vpop.permute.xlu0 %2179
        %2181 = vrot.lane.b32.xlu0 %v381, 12
        %v2182 = vpop.permute.xlu0 %2181
        %2183 = vrot.lane.b32.xlu0 %v382, 12
        %v2184 = vpop.permute.xlu0 %2183
        %2185 = vrot.lane.b32.xlu0 %v384, 12
        %v2186 = vpop.permute.xlu0 %2185
        %2187 = vrot.lane.b32.xlu0 %v385, 12
        %v2188 = vpop.permute.xlu0 %2187
        %2189 = vrot.lane.b32.xlu0 %v386, 12
        %v2190 = vpop.permute.xlu0 %2189
        %2191 = vrot.lane.b32.xlu0 %v387, 12
        %v2192 = vpop.permute.xlu0 %2191
        %2193 = vrot.lane.b32.xlu0 %v389, 12
        %v2194 = vpop.permute.xlu0 %2193
        %2195 = vrot.lane.b32.xlu0 %v390, 12
        %v2196 = vpop.permute.xlu0 %2195
        %2197 = vrot.lane.b32.xlu0 %v391, 12
        %v2198 = vpop.permute.xlu0 %2197
        %2199 = vrot.lane.b32.xlu0 %v392, 12
        %v2200 = vpop.permute.xlu0 %2199
        %2201 = vrot.lane.b32.xlu0 %v394, 12
        %v2202 = vpop.permute.xlu0 %2201
        %2203 = vrot.lane.b32.xlu0 %v395, 12
        %v2204 = vpop.permute.xlu0 %2203
        %2205 = vrot.lane.b32.xlu0 %v396, 12
        %v2206 = vpop.permute.xlu0 %2205
        %2207 = vrot.lane.b32.xlu0 %v397, 12
        %v2208 = vpop.permute.xlu0 %2207
        %2209 = vrot.lane.b32.xlu0 %v399, 12
        %v2210 = vpop.permute.xlu0 %2209
        %2211 = vrot.lane.b32.xlu0 %v400, 12
        %v2212 = vpop.permute.xlu0 %2211
        %2213 = vrot.lane.b32.xlu0 %v401, 12
        %v2214 = vpop.permute.xlu0 %2213
        %2215 = vrot.lane.b32.xlu0 %v402, 12
        %v2216 = vpop.permute.xlu0 %2215
        %2345 = vrot.lane.b32.xlu0 %v581, 16
        %v2346 = vpop.permute.xlu0 %2345
        %2347 = vrot.lane.b32.xlu0 %v583, 16
        %v2348 = vpop.permute.xlu0 %2347
        %2349 = vrot.lane.b32.xlu0 %v585, 16
        %v2350 = vpop.permute.xlu0 %2349
        %2351 = vrot.lane.b32.xlu0 %v587, 16
        %v2352 = vpop.permute.xlu0 %2351
        %2353 = vrot.lane.b32.xlu0 %v590, 16
        %v2354 = vpop.permute.xlu0 %2353
        %2355 = vrot.lane.b32.xlu0 %v592, 16
        %v2356 = vpop.permute.xlu0 %2355
        %2357 = vrot.lane.b32.xlu0 %v594, 16
        %v2358 = vpop.permute.xlu0 %2357
        %2359 = vrot.lane.b32.xlu0 %v596, 16
        %v2360 = vpop.permute.xlu0 %2359
        %2361 = vrot.lane.b32.xlu0 %v599, 16
        %v2362 = vpop.permute.xlu0 %2361
        %2363 = vrot.lane.b32.xlu0 %v601, 16
        %v2364 = vpop.permute.xlu0 %2363
        %2365 = vrot.lane.b32.xlu0 %v603, 16
        %v2366 = vpop.permute.xlu0 %2365
        %2367 = vrot.lane.b32.xlu0 %v605, 16
        %v2368 = vpop.permute.xlu0 %2367
        %2369 = vrot.lane.b32.xlu0 %v608, 16
        %v2370 = vpop.permute.xlu0 %2369
        %2371 = vrot.lane.b32.xlu0 %v610, 16
        %v2372 = vpop.permute.xlu0 %2371
        %2373 = vrot.lane.b32.xlu0 %v612, 16
        %v2374 = vpop.permute.xlu0 %2373
        %2375 = vrot.lane.b32.xlu0 %v614, 16
        %v2376 = vpop.permute.xlu0 %2375
        %2377 = vrot.lane.b32.xlu0 %v617, 16
        %v2378 = vpop.permute.xlu0 %2377
        %2379 = vrot.lane.b32.xlu0 %v619, 16
        %v2380 = vpop.permute.xlu0 %2379
        %2381 = vrot.lane.b32.xlu0 %v621, 16
        %v2382 = vpop.permute.xlu0 %2381
        %2383 = vrot.lane.b32.xlu0 %v623, 16
        %v2384 = vpop.permute.xlu0 %2383
        %2385 = vrot.lane.b32.xlu0 %v626, 16
        %v2386 = vpop.permute.xlu0 %2385
        %2387 = vrot.lane.b32.xlu0 %v628, 16
        %v2388 = vpop.permute.xlu0 %2387
        %2389 = vrot.lane.b32.xlu0 %v630, 16
        %v2390 = vpop.permute.xlu0 %2389
        %2391 = vrot.lane.b32.xlu0 %v632, 16
        %v2392 = vpop.permute.xlu0 %2391
        %2393 = vrot.lane.b32.xlu0 %v635, 16
        %v2394 = vpop.permute.xlu0 %2393
        %2395 = vrot.lane.b32.xlu0 %v637, 16
        %v2396 = vpop.permute.xlu0 %2395
        %2397 = vrot.lane.b32.xlu0 %v639, 16
        %v2398 = vpop.permute.xlu0 %2397
        %2399 = vrot.lane.b32.xlu0 %v641, 16
        %v2400 = vpop.permute.xlu0 %2399
        %2401 = vrot.lane.b32.xlu0 %v644, 16
        %v2402 = vpop.permute.xlu0 %2401
        %2403 = vrot.lane.b32.xlu0 %v646, 16
        %v2404 = vpop.permute.xlu0 %2403
        %2405 = vrot.lane.b32.xlu0 %v648, 16
        %v2406 = vpop.permute.xlu0 %2405
        %2407 = vrot.lane.b32.xlu0 %v650, 16
        %v2408 = vpop.permute.xlu0 %2407
        %2409 = vrot.lane.b32.xlu0 %v653, 16
        %v2410 = vpop.permute.xlu0 %2409
        %2411 = vrot.lane.b32.xlu0 %v655, 16
        %v2412 = vpop.permute.xlu0 %2411
        %2413 = vrot.lane.b32.xlu0 %v657, 16
        %v2414 = vpop.permute.xlu0 %2413
        %2415 = vrot.lane.b32.xlu0 %v659, 16
        %v2416 = vpop.permute.xlu0 %2415
        %2417 = vrot.lane.b32.xlu0 %v662, 16
        %v2418 = vpop.permute.xlu0 %2417
        %2419 = vrot.lane.b32.xlu0 %v664, 16
        %v2420 = vpop.permute.xlu0 %2419
        %2421 = vrot.lane.b32.xlu0 %v666, 16
        %v2422 = vpop.permute.xlu0 %2421
        %2423 = vrot.lane.b32.xlu0 %v668, 16
        %v2424 = vpop.permute.xlu0 %2423
        %2425 = vrot.lane.b32.xlu0 %v671, 16
        %v2426 = vpop.permute.xlu0 %2425
        %2427 = vrot.lane.b32.xlu0 %v673, 16
        %v2428 = vpop.permute.xlu0 %2427
        %2429 = vrot.lane.b32.xlu0 %v675, 16
        %v2430 = vpop.permute.xlu0 %2429
        %2431 = vrot.lane.b32.xlu0 %v677, 16
        %v2432 = vpop.permute.xlu0 %2431
        %2433 = vrot.lane.b32.xlu0 %v680, 16
        %v2434 = vpop.permute.xlu0 %2433
        %2435 = vrot.lane.b32.xlu0 %v682, 16
        %v2436 = vpop.permute.xlu0 %2435
        %2437 = vrot.lane.b32.xlu0 %v684, 16
        %v2438 = vpop.permute.xlu0 %2437
        %2439 = vrot.lane.b32.xlu0 %v686, 16
        %v2440 = vpop.permute.xlu0 %2439
        %2441 = vrot.lane.b32.xlu0 %v689, 16
        %v2442 = vpop.permute.xlu0 %2441
        %2443 = vrot.lane.b32.xlu0 %v691, 16
        %v2444 = vpop.permute.xlu0 %2443
        %2445 = vrot.lane.b32.xlu0 %v693, 16
        %v2446 = vpop.permute.xlu0 %2445
        %2447 = vrot.lane.b32.xlu0 %v695, 16
        %v2448 = vpop.permute.xlu0 %2447
        %2449 = vrot.lane.b32.xlu0 %v698, 16
        %v2450 = vpop.permute.xlu0 %2449
        %2451 = vrot.lane.b32.xlu0 %v700, 16
        %v2452 = vpop.permute.xlu0 %2451
        %2453 = vrot.lane.b32.xlu0 %v702, 16
        %v2454 = vpop.permute.xlu0 %2453
        %2455 = vrot.lane.b32.xlu0 %v704, 16
        %v2456 = vpop.permute.xlu0 %2455
        %2457 = vrot.lane.b32.xlu0 %v707, 16
        %v2458 = vpop.permute.xlu0 %2457
        %2459 = vrot.lane.b32.xlu0 %v709, 16
        %v2460 = vpop.permute.xlu0 %2459
        %2461 = vrot.lane.b32.xlu0 %v711, 16
        %v2462 = vpop.permute.xlu0 %2461
        %2463 = vrot.lane.b32.xlu0 %v713, 16
        %v2464 = vpop.permute.xlu0 %2463
        %2465 = vrot.lane.b32.xlu0 %v716, 16
        %v2466 = vpop.permute.xlu0 %2465
        %2467 = vrot.lane.b32.xlu0 %v718, 16
        %v2468 = vpop.permute.xlu0 %2467
        %2469 = vrot.lane.b32.xlu0 %v720, 16
        %v2470 = vpop.permute.xlu0 %2469
        %2471 = vrot.lane.b32.xlu0 %v722, 16
        %v2472 = vpop.permute.xlu0 %2471
        %2473 = vrot.lane.b32.xlu0 %v725, 16
        %v2474 = vpop.permute.xlu0 %2473
        %2475 = vrot.lane.b32.xlu0 %v727, 16
        %v2476 = vpop.permute.xlu0 %2475
        %2477 = vrot.lane.b32.xlu0 %v729, 16
        %v2478 = vpop.permute.xlu0 %2477
        %2479 = vrot.lane.b32.xlu0 %v731, 16
        %v2480 = vpop.permute.xlu0 %2479
        %2481 = vrot.lane.b32.xlu0 %v734, 16
        %v2482 = vpop.permute.xlu0 %2481
        %2483 = vrot.lane.b32.xlu0 %v736, 16
        %v2484 = vpop.permute.xlu0 %2483
        %2485 = vrot.lane.b32.xlu0 %v738, 16
        %v2486 = vpop.permute.xlu0 %2485
        %2487 = vrot.lane.b32.xlu0 %v740, 16
        %v2488 = vpop.permute.xlu0 %2487
        %2489 = vrot.lane.b32.xlu0 %v743, 16
        %v2490 = vpop.permute.xlu0 %2489
        %2491 = vrot.lane.b32.xlu0 %v745, 16
        %v2492 = vpop.permute.xlu0 %2491
        %2493 = vrot.lane.b32.xlu0 %v747, 16
        %v2494 = vpop.permute.xlu0 %2493
        %2495 = vrot.lane.b32.xlu0 %v749, 16
        %v2496 = vpop.permute.xlu0 %2495
        %2497 = vrot.lane.b32.xlu0 %v752, 16
        %v2498 = vpop.permute.xlu0 %2497
        %2499 = vrot.lane.b32.xlu0 %v754, 16
        %v2500 = vpop.permute.xlu0 %2499
        %2501 = vrot.lane.b32.xlu0 %v756, 16
        %v2502 = vpop.permute.xlu0 %2501
        %2503 = vrot.lane.b32.xlu0 %v758, 16
        %v2504 = vpop.permute.xlu0 %2503
        %2505 = vrot.lane.b32.xlu0 %v761, 16
        %v2506 = vpop.permute.xlu0 %2505
        %2507 = vrot.lane.b32.xlu0 %v763, 16
        %v2508 = vpop.permute.xlu0 %2507
        %2509 = vrot.lane.b32.xlu0 %v765, 16
        %v2510 = vpop.permute.xlu0 %2509
        %2511 = vrot.lane.b32.xlu0 %v767, 16
        %v2512 = vpop.permute.xlu0 %2511
        %2513 = vrot.lane.b32.xlu0 %v770, 16
        %v2514 = vpop.permute.xlu0 %2513
        %2515 = vrot.lane.b32.xlu0 %v772, 16
        %v2516 = vpop.permute.xlu0 %2515
        %2517 = vrot.lane.b32.xlu0 %v774, 16
        %v2518 = vpop.permute.xlu0 %2517
        %2519 = vrot.lane.b32.xlu0 %v776, 16
        %v2520 = vpop.permute.xlu0 %2519
        %2521 = vrot.lane.b32.xlu0 %v779, 16
        %v2522 = vpop.permute.xlu0 %2521
        %2523 = vrot.lane.b32.xlu0 %v781, 16
        %v2524 = vpop.permute.xlu0 %2523
        %2525 = vrot.lane.b32.xlu0 %v783, 16
        %v2526 = vpop.permute.xlu0 %2525
        %2527 = vrot.lane.b32.xlu0 %v785, 16
        %v2528 = vpop.permute.xlu0 %2527
        %2529 = vrot.lane.b32.xlu0 %v788, 16
        %v2530 = vpop.permute.xlu0 %2529
        %2531 = vrot.lane.b32.xlu0 %v790, 16
        %v2532 = vpop.permute.xlu0 %2531
        %2533 = vrot.lane.b32.xlu0 %v792, 16
        %v2534 = vpop.permute.xlu0 %2533
        %2535 = vrot.lane.b32.xlu0 %v794, 16
        %v2536 = vpop.permute.xlu0 %2535
        %2537 = vrot.lane.b32.xlu0 %v797, 16
        %v2538 = vpop.permute.xlu0 %2537
        %2539 = vrot.lane.b32.xlu0 %v799, 16
        %v2540 = vpop.permute.xlu0 %2539
        %2541 = vrot.lane.b32.xlu0 %v801, 16
        %v2542 = vpop.permute.xlu0 %2541
        %2543 = vrot.lane.b32.xlu0 %v803, 16
        %v2544 = vpop.permute.xlu0 %2543
        %2545 = vrot.lane.b32.xlu0 %v806, 16
        %v2546 = vpop.permute.xlu0 %2545
        %2547 = vrot.lane.b32.xlu0 %v808, 16
        %v2548 = vpop.permute.xlu0 %2547
        %2549 = vrot.lane.b32.xlu0 %v810, 16
        %v2550 = vpop.permute.xlu0 %2549
        %2551 = vrot.lane.b32.xlu0 %v812, 16
        %v2552 = vpop.permute.xlu0 %2551
        %2553 = vrot.lane.b32.xlu0 %v815, 16
        %v2554 = vpop.permute.xlu0 %2553
        %2555 = vrot.lane.b32.xlu0 %v817, 16
        %v2556 = vpop.permute.xlu0 %2555
        %2557 = vrot.lane.b32.xlu0 %v819, 16
        %v2558 = vpop.permute.xlu0 %2557
        %2559 = vrot.lane.b32.xlu0 %v821, 16
        %v2560 = vpop.permute.xlu0 %2559
        %2561 = vrot.lane.b32.xlu0 %v824, 16
        %v2562 = vpop.permute.xlu0 %2561
        %2563 = vrot.lane.b32.xlu0 %v826, 16
        %v2564 = vpop.permute.xlu0 %2563
        %2565 = vrot.lane.b32.xlu0 %v828, 16
        %v2566 = vpop.permute.xlu0 %2565
        %2567 = vrot.lane.b32.xlu0 %v830, 16
        %v2568 = vpop.permute.xlu0 %2567
        %2569 = vrot.lane.b32.xlu0 %v833, 16
        %v2570 = vpop.permute.xlu0 %2569
        %2571 = vrot.lane.b32.xlu0 %v835, 16
        %v2572 = vpop.permute.xlu0 %2571
        %2573 = vrot.lane.b32.xlu0 %v837, 16
        %v2574 = vpop.permute.xlu0 %2573
        %2575 = vrot.lane.b32.xlu0 %v839, 16
        %v2576 = vpop.permute.xlu0 %2575
        %2577 = vrot.lane.b32.xlu0 %v842, 16
        %v2578 = vpop.permute.xlu0 %2577
        %2579 = vrot.lane.b32.xlu0 %v844, 16
        %v2580 = vpop.permute.xlu0 %2579
        %2581 = vrot.lane.b32.xlu0 %v846, 16
        %v2582 = vpop.permute.xlu0 %2581
        %2583 = vrot.lane.b32.xlu0 %v848, 16
        %v2584 = vpop.permute.xlu0 %2583
        %2585 = vrot.lane.b32.xlu0 %v851, 16
        %v2586 = vpop.permute.xlu0 %2585
        %2587 = vrot.lane.b32.xlu0 %v853, 16
        %v2588 = vpop.permute.xlu0 %2587
        %2589 = vrot.lane.b32.xlu0 %v855, 16
        %v2590 = vpop.permute.xlu0 %2589
        %2591 = vrot.lane.b32.xlu0 %v857, 16
        %v2592 = vpop.permute.xlu0 %2591
        %2593 = vrot.lane.b32.xlu0 %v1154, 16
        %v2594 = vpop.permute.xlu0 %2593
        %2595 = vrot.lane.b32.xlu0 %v1156, 16
        %v2596 = vpop.permute.xlu0 %2595
        %2597 = vrot.lane.b32.xlu0 %v1158, 16
        %v2598 = vpop.permute.xlu0 %2597
        %2599 = vrot.lane.b32.xlu0 %v1160, 16
        %v2600 = vpop.permute.xlu0 %2599
        %2729 = vrot.lane.b32.xlu0 %v870, 20
        %v2730 = vpop.permute.xlu0 %2729
        %2731 = vrot.lane.b32.xlu0 %v872, 20
        %v2732 = vpop.permute.xlu0 %2731
        %2733 = vrot.lane.b32.xlu0 %v874, 20
        %v2734 = vpop.permute.xlu0 %2733
        %2735 = vrot.lane.b32.xlu0 %v876, 20
        %v2736 = vpop.permute.xlu0 %2735
        %2737 = vrot.lane.b32.xlu0 %v879, 20
        %v2738 = vpop.permute.xlu0 %2737
        %2739 = vrot.lane.b32.xlu0 %v881, 20
        %v2740 = vpop.permute.xlu0 %2739
        %2741 = vrot.lane.b32.xlu0 %v883, 20
        %v2742 = vpop.permute.xlu0 %2741
        %2743 = vrot.lane.b32.xlu0 %v885, 20
        %v2744 = vpop.permute.xlu0 %2743
        %2745 = vrot.lane.b32.xlu0 %v888, 20
        %v2746 = vpop.permute.xlu0 %2745
        %2747 = vrot.lane.b32.xlu0 %v890, 20
        %v2748 = vpop.permute.xlu0 %2747
        %2749 = vrot.lane.b32.xlu0 %v892, 20
        %v2750 = vpop.permute.xlu0 %2749
        %2751 = vrot.lane.b32.xlu0 %v894, 20
        %v2752 = vpop.permute.xlu0 %2751
        %2753 = vrot.lane.b32.xlu0 %v897, 20
        %v2754 = vpop.permute.xlu0 %2753
        %2755 = vrot.lane.b32.xlu0 %v899, 20
        %v2756 = vpop.permute.xlu0 %2755
        %2757 = vrot.lane.b32.xlu0 %v901, 20
        %v2758 = vpop.permute.xlu0 %2757
        %2759 = vrot.lane.b32.xlu0 %v903, 20
        %v2760 = vpop.permute.xlu0 %2759
        %2761 = vrot.lane.b32.xlu0 %v906, 20
        %v2762 = vpop.permute.xlu0 %2761
        %2763 = vrot.lane.b32.xlu0 %v908, 20
        %v2764 = vpop.permute.xlu0 %2763
        %2765 = vrot.lane.b32.xlu0 %v910, 20
        %v2766 = vpop.permute.xlu0 %2765
        %2767 = vrot.lane.b32.xlu0 %v912, 20
        %v2768 = vpop.permute.xlu0 %2767
        %2769 = vrot.lane.b32.xlu0 %v915, 20
        %v2770 = vpop.permute.xlu0 %2769
        %2771 = vrot.lane.b32.xlu0 %v917, 20
        %v2772 = vpop.permute.xlu0 %2771
        %2773 = vrot.lane.b32.xlu0 %v919, 20
        %v2774 = vpop.permute.xlu0 %2773
        %2775 = vrot.lane.b32.xlu0 %v921, 20
        %v2776 = vpop.permute.xlu0 %2775
        %2777 = vrot.lane.b32.xlu0 %v924, 20
        %v2778 = vpop.permute.xlu0 %2777
        %2779 = vrot.lane.b32.xlu0 %v926, 20
        %v2780 = vpop.permute.xlu0 %2779
        %2781 = vrot.lane.b32.xlu0 %v928, 20
        %v2782 = vpop.permute.xlu0 %2781
        %2783 = vrot.lane.b32.xlu0 %v930, 20
        %v2784 = vpop.permute.xlu0 %2783
        %2785 = vrot.lane.b32.xlu0 %v933, 20
        %v2786 = vpop.permute.xlu0 %2785
        %2787 = vrot.lane.b32.xlu0 %v935, 20
        %v2788 = vpop.permute.xlu0 %2787
        %2789 = vrot.lane.b32.xlu0 %v937, 20
        %v2790 = vpop.permute.xlu0 %2789
        %2791 = vrot.lane.b32.xlu0 %v939, 20
        %v2792 = vpop.permute.xlu0 %2791
        %2793 = vrot.lane.b32.xlu0 %v942, 20
        %v2794 = vpop.permute.xlu0 %2793
        %2795 = vrot.lane.b32.xlu0 %v944, 20
        %v2796 = vpop.permute.xlu0 %2795
        %2797 = vrot.lane.b32.xlu0 %v946, 20
        %v2798 = vpop.permute.xlu0 %2797
        %2799 = vrot.lane.b32.xlu0 %v948, 20
        %v2800 = vpop.permute.xlu0 %2799
        %2801 = vrot.lane.b32.xlu0 %v951, 20
        %v2802 = vpop.permute.xlu0 %2801
        %2803 = vrot.lane.b32.xlu0 %v953, 20
        %v2804 = vpop.permute.xlu0 %2803
        %2805 = vrot.lane.b32.xlu0 %v955, 20
        %v2806 = vpop.permute.xlu0 %2805
        %2807 = vrot.lane.b32.xlu0 %v957, 20
        %v2808 = vpop.permute.xlu0 %2807
        %2809 = vrot.lane.b32.xlu0 %v960, 20
        %v2810 = vpop.permute.xlu0 %2809
        %2811 = vrot.lane.b32.xlu0 %v962, 20
        %v2812 = vpop.permute.xlu0 %2811
        %2813 = vrot.lane.b32.xlu0 %v964, 20
        %v2814 = vpop.permute.xlu0 %2813
        %2815 = vrot.lane.b32.xlu0 %v966, 20
        %v2816 = vpop.permute.xlu0 %2815
        %2817 = vrot.lane.b32.xlu0 %v969, 20
        %v2818 = vpop.permute.xlu0 %2817
        %2819 = vrot.lane.b32.xlu0 %v971, 20
        %v2820 = vpop.permute.xlu0 %2819
        %2821 = vrot.lane.b32.xlu0 %v973, 20
        %v2822 = vpop.permute.xlu0 %2821
        %2823 = vrot.lane.b32.xlu0 %v975, 20
        %v2824 = vpop.permute.xlu0 %2823
        %2825 = vrot.lane.b32.xlu0 %v978, 20
        %v2826 = vpop.permute.xlu0 %2825
        %2827 = vrot.lane.b32.xlu0 %v980, 20
        %v2828 = vpop.permute.xlu0 %2827
        %2829 = vrot.lane.b32.xlu0 %v982, 20
        %v2830 = vpop.permute.xlu0 %2829
        %2831 = vrot.lane.b32.xlu0 %v984, 20
        %v2832 = vpop.permute.xlu0 %2831
        %2833 = vrot.lane.b32.xlu0 %v987, 20
        %v2834 = vpop.permute.xlu0 %2833
        %2835 = vrot.lane.b32.xlu0 %v989, 20
        %v2836 = vpop.permute.xlu0 %2835
        %2837 = vrot.lane.b32.xlu0 %v991, 20
        %v2838 = vpop.permute.xlu0 %2837
        %2839 = vrot.lane.b32.xlu0 %v993, 20
        %v2840 = vpop.permute.xlu0 %2839
        %2841 = vrot.lane.b32.xlu0 %v996, 20
        %v2842 = vpop.permute.xlu0 %2841
        %2843 = vrot.lane.b32.xlu0 %v998, 20
        %v2844 = vpop.permute.xlu0 %2843
        %2845 = vrot.lane.b32.xlu0 %v1000, 20
        %v2846 = vpop.permute.xlu0 %2845
        %2847 = vrot.lane.b32.xlu0 %v1002, 20
        %v2848 = vpop.permute.xlu0 %2847
        %2849 = vrot.lane.b32.xlu0 %v1005, 20
        %v2850 = vpop.permute.xlu0 %2849
        %2851 = vrot.lane.b32.xlu0 %v1007, 20
        %v2852 = vpop.permute.xlu0 %2851
        %2853 = vrot.lane.b32.xlu0 %v1009, 20
        %v2854 = vpop.permute.xlu0 %2853
        %2855 = vrot.lane.b32.xlu0 %v1011, 20
        %v2856 = vpop.permute.xlu0 %2855
        %2857 = vrot.lane.b32.xlu0 %v1014, 20
        %v2858 = vpop.permute.xlu0 %2857
        %2859 = vrot.lane.b32.xlu0 %v1016, 20
        %v2860 = vpop.permute.xlu0 %2859
        %2861 = vrot.lane.b32.xlu0 %v1018, 20
        %v2862 = vpop.permute.xlu0 %2861
        %2863 = vrot.lane.b32.xlu0 %v1020, 20
        %v2864 = vpop.permute.xlu0 %2863
        %2865 = vrot.lane.b32.xlu0 %v1023, 20
        %v2866 = vpop.permute.xlu0 %2865
        %2867 = vrot.lane.b32.xlu0 %v1025, 20
        %v2868 = vpop.permute.xlu0 %2867
        %2869 = vrot.lane.b32.xlu0 %v1027, 20
        %v2870 = vpop.permute.xlu0 %2869
        %2871 = vrot.lane.b32.xlu0 %v1029, 20
        %v2872 = vpop.permute.xlu0 %2871
        %2873 = vrot.lane.b32.xlu0 %v1032, 20
        %v2874 = vpop.permute.xlu0 %2873
        %2875 = vrot.lane.b32.xlu0 %v1034, 20
        %v2876 = vpop.permute.xlu0 %2875
        %2877 = vrot.lane.b32.xlu0 %v1036, 20
        %v2878 = vpop.permute.xlu0 %2877
        %2879 = vrot.lane.b32.xlu0 %v1038, 20
        %v2880 = vpop.permute.xlu0 %2879
        %2881 = vrot.lane.b32.xlu0 %v1041, 20
        %v2882 = vpop.permute.xlu0 %2881
        %2883 = vrot.lane.b32.xlu0 %v1043, 20
        %v2884 = vpop.permute.xlu0 %2883
        %2885 = vrot.lane.b32.xlu0 %v1045, 20
        %v2886 = vpop.permute.xlu0 %2885
        %2887 = vrot.lane.b32.xlu0 %v1047, 20
        %v2888 = vpop.permute.xlu0 %2887
        %2889 = vrot.lane.b32.xlu0 %v1050, 20
        %v2890 = vpop.permute.xlu0 %2889
        %2891 = vrot.lane.b32.xlu0 %v1052, 20
        %v2892 = vpop.permute.xlu0 %2891
        %2893 = vrot.lane.b32.xlu0 %v1054, 20
        %v2894 = vpop.permute.xlu0 %2893
        %2895 = vrot.lane.b32.xlu0 %v1056, 20
        %v2896 = vpop.permute.xlu0 %2895
        %2897 = vrot.lane.b32.xlu0 %v1059, 20
        %v2898 = vpop.permute.xlu0 %2897
        %2899 = vrot.lane.b32.xlu0 %v1061, 20
        %v2900 = vpop.permute.xlu0 %2899
        %2901 = vrot.lane.b32.xlu0 %v1063, 20
        %v2902 = vpop.permute.xlu0 %2901
        %2903 = vrot.lane.b32.xlu0 %v1065, 20
        %v2904 = vpop.permute.xlu0 %2903
        %2905 = vrot.lane.b32.xlu0 %v1068, 20
        %v2906 = vpop.permute.xlu0 %2905
        %2907 = vrot.lane.b32.xlu0 %v1070, 20
        %v2908 = vpop.permute.xlu0 %2907
        %2909 = vrot.lane.b32.xlu0 %v1072, 20
        %v2910 = vpop.permute.xlu0 %2909
        %2911 = vrot.lane.b32.xlu0 %v1074, 20
        %v2912 = vpop.permute.xlu0 %2911
        %2913 = vrot.lane.b32.xlu0 %v1077, 20
        %v2914 = vpop.permute.xlu0 %2913
        %2915 = vrot.lane.b32.xlu0 %v1079, 20
        %v2916 = vpop.permute.xlu0 %2915
        %2917 = vrot.lane.b32.xlu0 %v1081, 20
        %v2918 = vpop.permute.xlu0 %2917
        %2919 = vrot.lane.b32.xlu0 %v1083, 20
        %v2920 = vpop.permute.xlu0 %2919
        %2921 = vrot.lane.b32.xlu0 %v1086, 20
        %v2922 = vpop.permute.xlu0 %2921
        %2923 = vrot.lane.b32.xlu0 %v1088, 20
        %v2924 = vpop.permute.xlu0 %2923
        %2925 = vrot.lane.b32.xlu0 %v1090, 20
        %v2926 = vpop.permute.xlu0 %2925
        %2927 = vrot.lane.b32.xlu0 %v1092, 20
        %v2928 = vpop.permute.xlu0 %2927
        %2929 = vrot.lane.b32.xlu0 %v1095, 20
        %v2930 = vpop.permute.xlu0 %2929
        %2931 = vrot.lane.b32.xlu0 %v1097, 20
        %v2932 = vpop.permute.xlu0 %2931
        %2933 = vrot.lane.b32.xlu0 %v1099, 20
        %v2934 = vpop.permute.xlu0 %2933
        %2935 = vrot.lane.b32.xlu0 %v1101, 20
        %v2936 = vpop.permute.xlu0 %2935
        %2937 = vrot.lane.b32.xlu0 %v1104, 20
        %v2938 = vpop.permute.xlu0 %2937
        %2939 = vrot.lane.b32.xlu0 %v1106, 20
        %v2940 = vpop.permute.xlu0 %2939
        %2941 = vrot.lane.b32.xlu0 %v1108, 20
        %v2942 = vpop.permute.xlu0 %2941
        %2943 = vrot.lane.b32.xlu0 %v1110, 20
        %v2944 = vpop.permute.xlu0 %2943
        %2945 = vrot.lane.b32.xlu0 %v1113, 20
        %v2946 = vpop.permute.xlu0 %2945
        %2947 = vrot.lane.b32.xlu0 %v1115, 20
        %v2948 = vpop.permute.xlu0 %2947
        %2949 = vrot.lane.b32.xlu0 %v1117, 20
        %v2950 = vpop.permute.xlu0 %2949
        %2951 = vrot.lane.b32.xlu0 %v1119, 20
        %v2952 = vpop.permute.xlu0 %2951
        %2953 = vrot.lane.b32.xlu0 %v1122, 20
        %v2954 = vpop.permute.xlu0 %2953
        %2955 = vrot.lane.b32.xlu0 %v1124, 20
        %v2956 = vpop.permute.xlu0 %2955
        %2957 = vrot.lane.b32.xlu0 %v1126, 20
        %v2958 = vpop.permute.xlu0 %2957
        %2959 = vrot.lane.b32.xlu0 %v1128, 20
        %v2960 = vpop.permute.xlu0 %2959
        %2961 = vrot.lane.b32.xlu0 %v1131, 20
        %v2962 = vpop.permute.xlu0 %2961
        %2963 = vrot.lane.b32.xlu0 %v1133, 20
        %v2964 = vpop.permute.xlu0 %2963
        %2965 = vrot.lane.b32.xlu0 %v1135, 20
        %v2966 = vpop.permute.xlu0 %2965
        %2967 = vrot.lane.b32.xlu0 %v1137, 20
        %v2968 = vpop.permute.xlu0 %2967
        %2969 = vrot.lane.b32.xlu0 %v1140, 20
        %v2970 = vpop.permute.xlu0 %2969
        %2971 = vrot.lane.b32.xlu0 %v1142, 20
        %v2972 = vpop.permute.xlu0 %2971
        %2973 = vrot.lane.b32.xlu0 %v1144, 20
        %v2974 = vpop.permute.xlu0 %2973
        %2975 = vrot.lane.b32.xlu0 %v1146, 20
        %v2976 = vpop.permute.xlu0 %2975
        %2977 = vrot.lane.b32.xlu0 %v1163, 20
        %v2978 = vpop.permute.xlu0 %2977
        %2979 = vrot.lane.b32.xlu0 %v1165, 20
        %v2980 = vpop.permute.xlu0 %2979
        %2981 = vrot.lane.b32.xlu0 %v1167, 20
        %v2982 = vpop.permute.xlu0 %2981
        %2983 = vrot.lane.b32.xlu0 %v1169, 20
        %v2984 = vpop.permute.xlu0 %2983
        %3113 = vrot.lane.b32.xlu0 %v249, 24
        %v3114 = vpop.permute.xlu0 %3113
        %3115 = vrot.lane.b32.xlu0 %v250, 24
        %v3116 = vpop.permute.xlu0 %3115
        %3117 = vrot.lane.b32.xlu0 %v251, 24
        %v3118 = vpop.permute.xlu0 %3117
        %3119 = vrot.lane.b32.xlu0 %v252, 24
        %v3120 = vpop.permute.xlu0 %3119
        %3121 = vrot.lane.b32.xlu0 %v254, 24
        %v3122 = vpop.permute.xlu0 %3121
        %3123 = vrot.lane.b32.xlu0 %v255, 24
        %v3124 = vpop.permute.xlu0 %3123
        %3125 = vrot.lane.b32.xlu0 %v256, 24
        %v3126 = vpop.permute.xlu0 %3125
        %3127 = vrot.lane.b32.xlu0 %v257, 24
        %v3128 = vpop.permute.xlu0 %3127
        %3129 = vrot.lane.b32.xlu0 %v259, 24
        %v3130 = vpop.permute.xlu0 %3129
        %3131 = vrot.lane.b32.xlu0 %v260, 24
        %v3132 = vpop.permute.xlu0 %3131
        %3133 = vrot.lane.b32.xlu0 %v261, 24
        %v3134 = vpop.permute.xlu0 %3133
        %3135 = vrot.lane.b32.xlu0 %v262, 24
        %v3136 = vpop.permute.xlu0 %3135
        %3137 = vrot.lane.b32.xlu0 %v264, 24
        %v3138 = vpop.permute.xlu0 %3137
        %3139 = vrot.lane.b32.xlu0 %v265, 24
        %v3140 = vpop.permute.xlu0 %3139
        %3141 = vrot.lane.b32.xlu0 %v266, 24
        %v3142 = vpop.permute.xlu0 %3141
        %3143 = vrot.lane.b32.xlu0 %v267, 24
        %v3144 = vpop.permute.xlu0 %3143
        %3145 = vrot.lane.b32.xlu0 %v269, 24
        %v3146 = vpop.permute.xlu0 %3145
        %3147 = vrot.lane.b32.xlu0 %v270, 24
        %v3148 = vpop.permute.xlu0 %3147
        %3149 = vrot.lane.b32.xlu0 %v271, 24
        %v3150 = vpop.permute.xlu0 %3149
        %3151 = vrot.lane.b32.xlu0 %v272, 24
        %v3152 = vpop.permute.xlu0 %3151
        %3153 = vrot.lane.b32.xlu0 %v274, 24
        %v3154 = vpop.permute.xlu0 %3153
        %3155 = vrot.lane.b32.xlu0 %v275, 24
        %v3156 = vpop.permute.xlu0 %3155
        %3157 = vrot.lane.b32.xlu0 %v276, 24
        %v3158 = vpop.permute.xlu0 %3157
        %3159 = vrot.lane.b32.xlu0 %v277, 24
        %v3160 = vpop.permute.xlu0 %3159
        %3161 = vrot.lane.b32.xlu0 %v279, 24
        %v3162 = vpop.permute.xlu0 %3161
        %3163 = vrot.lane.b32.xlu0 %v280, 24
        %v3164 = vpop.permute.xlu0 %3163
        %3165 = vrot.lane.b32.xlu0 %v281, 24
        %v3166 = vpop.permute.xlu0 %3165
        %3167 = vrot.lane.b32.xlu0 %v282, 24
        %v3168 = vpop.permute.xlu0 %3167
        %3169 = vrot.lane.b32.xlu0 %v284, 24
        %v3170 = vpop.permute.xlu0 %3169
        %3171 = vrot.lane.b32.xlu0 %v285, 24
        %v3172 = vpop.permute.xlu0 %3171
        %3173 = vrot.lane.b32.xlu0 %v286, 24
        %v3174 = vpop.permute.xlu0 %3173
        %3175 = vrot.lane.b32.xlu0 %v287, 24
        %v3176 = vpop.permute.xlu0 %3175
        %3177 = vrot.lane.b32.xlu0 %v289, 24
        %v3178 = vpop.permute.xlu0 %3177
        %3179 = vrot.lane.b32.xlu0 %v290, 24
        %v3180 = vpop.permute.xlu0 %3179
        %3181 = vrot.lane.b32.xlu0 %v291, 24
        %v3182 = vpop.permute.xlu0 %3181
        %3183 = vrot.lane.b32.xlu0 %v292, 24
        %v3184 = vpop.permute.xlu0 %3183
        %3185 = vrot.lane.b32.xlu0 %v294, 24
        %v3186 = vpop.permute.xlu0 %3185
        %3187 = vrot.lane.b32.xlu0 %v295, 24
        %v3188 = vpop.permute.xlu0 %3187
        %3189 = vrot.lane.b32.xlu0 %v296, 24
        %v3190 = vpop.permute.xlu0 %3189
        %3191 = vrot.lane.b32.xlu0 %v297, 24
        %v3192 = vpop.permute.xlu0 %3191
        %3193 = vrot.lane.b32.xlu0 %v299, 24
        %v3194 = vpop.permute.xlu0 %3193
        %3195 = vrot.lane.b32.xlu0 %v300, 24
        %v3196 = vpop.permute.xlu0 %3195
        %3197 = vrot.lane.b32.xlu0 %v301, 24
        %v3198 = vpop.permute.xlu0 %3197
        %3199 = vrot.lane.b32.xlu0 %v302, 24
        %v3200 = vpop.permute.xlu0 %3199
        %3201 = vrot.lane.b32.xlu0 %v304, 24
        %v3202 = vpop.permute.xlu0 %3201
        %3203 = vrot.lane.b32.xlu0 %v305, 24
        %v3204 = vpop.permute.xlu0 %3203
        %3205 = vrot.lane.b32.xlu0 %v306, 24
        %v3206 = vpop.permute.xlu0 %3205
        %3207 = vrot.lane.b32.xlu0 %v307, 24
        %v3208 = vpop.permute.xlu0 %3207
        %3209 = vrot.lane.b32.xlu0 %v309, 24
        %v3210 = vpop.permute.xlu0 %3209
        %3211 = vrot.lane.b32.xlu0 %v310, 24
        %v3212 = vpop.permute.xlu0 %3211
        %3213 = vrot.lane.b32.xlu0 %v311, 24
        %v3214 = vpop.permute.xlu0 %3213
        %3215 = vrot.lane.b32.xlu0 %v312, 24
        %v3216 = vpop.permute.xlu0 %3215
        %3217 = vrot.lane.b32.xlu0 %v314, 24
        %v3218 = vpop.permute.xlu0 %3217
        %3219 = vrot.lane.b32.xlu0 %v315, 24
        %v3220 = vpop.permute.xlu0 %3219
        %3221 = vrot.lane.b32.xlu0 %v316, 24
        %v3222 = vpop.permute.xlu0 %3221
        %3223 = vrot.lane.b32.xlu0 %v317, 24
        %v3224 = vpop.permute.xlu0 %3223
        %3225 = vrot.lane.b32.xlu0 %v319, 24
        %v3226 = vpop.permute.xlu0 %3225
        %3227 = vrot.lane.b32.xlu0 %v320, 24
        %v3228 = vpop.permute.xlu0 %3227
        %3229 = vrot.lane.b32.xlu0 %v321, 24
        %v3230 = vpop.permute.xlu0 %3229
        %3231 = vrot.lane.b32.xlu0 %v322, 24
        %v3232 = vpop.permute.xlu0 %3231
        %3233 = vrot.lane.b32.xlu0 %v324, 24
        %v3234 = vpop.permute.xlu0 %3233
        %3235 = vrot.lane.b32.xlu0 %v325, 24
        %v3236 = vpop.permute.xlu0 %3235
        %3237 = vrot.lane.b32.xlu0 %v326, 24
        %v3238 = vpop.permute.xlu0 %3237
        %3239 = vrot.lane.b32.xlu0 %v327, 24
        %v3240 = vpop.permute.xlu0 %3239
        %3241 = vrot.lane.b32.xlu0 %v329, 24
        %v3242 = vpop.permute.xlu0 %3241
        %3243 = vrot.lane.b32.xlu0 %v330, 24
        %v3244 = vpop.permute.xlu0 %3243
        %3245 = vrot.lane.b32.xlu0 %v331, 24
        %v3246 = vpop.permute.xlu0 %3245
        %3247 = vrot.lane.b32.xlu0 %v332, 24
        %v3248 = vpop.permute.xlu0 %3247
        %3249 = vrot.lane.b32.xlu0 %v334, 24
        %v3250 = vpop.permute.xlu0 %3249
        %3251 = vrot.lane.b32.xlu0 %v335, 24
        %v3252 = vpop.permute.xlu0 %3251
        %3253 = vrot.lane.b32.xlu0 %v336, 24
        %v3254 = vpop.permute.xlu0 %3253
        %3255 = vrot.lane.b32.xlu0 %v337, 24
        %v3256 = vpop.permute.xlu0 %3255
        %3257 = vrot.lane.b32.xlu0 %v339, 24
        %v3258 = vpop.permute.xlu0 %3257
        %3259 = vrot.lane.b32.xlu0 %v340, 24
        %v3260 = vpop.permute.xlu0 %3259
        %3261 = vrot.lane.b32.xlu0 %v341, 24
        %v3262 = vpop.permute.xlu0 %3261
        %3263 = vrot.lane.b32.xlu0 %v342, 24
        %v3264 = vpop.permute.xlu0 %3263
        %3265 = vrot.lane.b32.xlu0 %v344, 24
        %v3266 = vpop.permute.xlu0 %3265
        %3267 = vrot.lane.b32.xlu0 %v345, 24
        %v3268 = vpop.permute.xlu0 %3267
        %3269 = vrot.lane.b32.xlu0 %v346, 24
        %v3270 = vpop.permute.xlu0 %3269
        %3271 = vrot.lane.b32.xlu0 %v347, 24
        %v3272 = vpop.permute.xlu0 %3271
        %3273 = vrot.lane.b32.xlu0 %v349, 24
        %v3274 = vpop.permute.xlu0 %3273
        %3275 = vrot.lane.b32.xlu0 %v350, 24
        %v3276 = vpop.permute.xlu0 %3275
        %3277 = vrot.lane.b32.xlu0 %v351, 24
        %v3278 = vpop.permute.xlu0 %3277
        %3279 = vrot.lane.b32.xlu0 %v352, 24
        %v3280 = vpop.permute.xlu0 %3279
        %3281 = vrot.lane.b32.xlu0 %v354, 24
        %v3282 = vpop.permute.xlu0 %3281
        %3283 = vrot.lane.b32.xlu0 %v355, 24
        %v3284 = vpop.permute.xlu0 %3283
        %3285 = vrot.lane.b32.xlu0 %v356, 24
        %v3286 = vpop.permute.xlu0 %3285
        %3287 = vrot.lane.b32.xlu0 %v357, 24
        %v3288 = vpop.permute.xlu0 %3287
        %3289 = vrot.lane.b32.xlu0 %v359, 24
        %v3290 = vpop.permute.xlu0 %3289
        %3291 = vrot.lane.b32.xlu0 %v360, 24
        %v3292 = vpop.permute.xlu0 %3291
        %3293 = vrot.lane.b32.xlu0 %v361, 24
        %v3294 = vpop.permute.xlu0 %3293
        %3295 = vrot.lane.b32.xlu0 %v362, 24
        %v3296 = vpop.permute.xlu0 %3295
        %3297 = vrot.lane.b32.xlu0 %v364, 24
        %v3298 = vpop.permute.xlu0 %3297
        %3299 = vrot.lane.b32.xlu0 %v365, 24
        %v3300 = vpop.permute.xlu0 %3299
        %3301 = vrot.lane.b32.xlu0 %v366, 24
        %v3302 = vpop.permute.xlu0 %3301
        %3303 = vrot.lane.b32.xlu0 %v367, 24
        %v3304 = vpop.permute.xlu0 %3303
        %3305 = vrot.lane.b32.xlu0 %v369, 24
        %v3306 = vpop.permute.xlu0 %3305
        %3307 = vrot.lane.b32.xlu0 %v370, 24
        %v3308 = vpop.permute.xlu0 %3307
        %3309 = vrot.lane.b32.xlu0 %v371, 24
        %v3310 = vpop.permute.xlu0 %3309
        %3311 = vrot.lane.b32.xlu0 %v372, 24
        %v3312 = vpop.permute.xlu0 %3311
        %3313 = vrot.lane.b32.xlu0 %v374, 24
        %v3314 = vpop.permute.xlu0 %3313
        %3315 = vrot.lane.b32.xlu0 %v375, 24
        %v3316 = vpop.permute.xlu0 %3315
        %3317 = vrot.lane.b32.xlu0 %v376, 24
        %v3318 = vpop.permute.xlu0 %3317
        %3319 = vrot.lane.b32.xlu0 %v377, 24
        %v3320 = vpop.permute.xlu0 %3319
        %3321 = vrot.lane.b32.xlu0 %v379, 24
        %v3322 = vpop.permute.xlu0 %3321
        %3323 = vrot.lane.b32.xlu0 %v380, 24
        %v3324 = vpop.permute.xlu0 %3323
        %3325 = vrot.lane.b32.xlu0 %v381, 24
        %v3326 = vpop.permute.xlu0 %3325
        %3327 = vrot.lane.b32.xlu0 %v382, 24
        %v3328 = vpop.permute.xlu0 %3327
        %3329 = vrot.lane.b32.xlu0 %v384, 24
        %v3330 = vpop.permute.xlu0 %3329
        %3331 = vrot.lane.b32.xlu0 %v385, 24
        %v3332 = vpop.permute.xlu0 %3331
        %3333 = vrot.lane.b32.xlu0 %v386, 24
        %v3334 = vpop.permute.xlu0 %3333
        %3335 = vrot.lane.b32.xlu0 %v387, 24
        %v3336 = vpop.permute.xlu0 %3335
        %3337 = vrot.lane.b32.xlu0 %v389, 24
        %v3338 = vpop.permute.xlu0 %3337
        %3339 = vrot.lane.b32.xlu0 %v390, 24
        %v3340 = vpop.permute.xlu0 %3339
        %3341 = vrot.lane.b32.xlu0 %v391, 24
        %v3342 = vpop.permute.xlu0 %3341
        %3343 = vrot.lane.b32.xlu0 %v392, 24
        %v3344 = vpop.permute.xlu0 %3343
        %3345 = vrot.lane.b32.xlu0 %v394, 24
        %v3346 = vpop.permute.xlu0 %3345
        %3347 = vrot.lane.b32.xlu0 %v395, 24
        %v3348 = vpop.permute.xlu0 %3347
        %3349 = vrot.lane.b32.xlu0 %v396, 24
        %v3350 = vpop.permute.xlu0 %3349
        %3351 = vrot.lane.b32.xlu0 %v397, 24
        %v3352 = vpop.permute.xlu0 %3351
        %3353 = vrot.lane.b32.xlu0 %v399, 24
        %v3354 = vpop.permute.xlu0 %3353
        %3355 = vrot.lane.b32.xlu0 %v400, 24
        %v3356 = vpop.permute.xlu0 %3355
        %3357 = vrot.lane.b32.xlu0 %v401, 24
        %v3358 = vpop.permute.xlu0 %3357
        %3359 = vrot.lane.b32.xlu0 %v402, 24
        %v3360 = vpop.permute.xlu0 %3359
        %3361 = vrot.lane.b32.xlu0 %v404, 24
        %v3362 = vpop.permute.xlu0 %3361
        %3363 = vrot.lane.b32.xlu0 %v405, 24
        %v3364 = vpop.permute.xlu0 %3363
        %3365 = vrot.lane.b32.xlu0 %v406, 24
        %v3366 = vpop.permute.xlu0 %3365
        %3367 = vrot.lane.b32.xlu0 %v407, 24
        %v3368 = vpop.permute.xlu0 %3367
        %3497 = vrot.lane.b32.xlu0 %v590, 28
        %v3498 = vpop.permute.xlu0 %3497
        %3499 = vrot.lane.b32.xlu0 %v592, 28
        %v3500 = vpop.permute.xlu0 %3499
        %3501 = vrot.lane.b32.xlu0 %v594, 28
        %v3502 = vpop.permute.xlu0 %3501
        %3503 = vrot.lane.b32.xlu0 %v596, 28
        %v3504 = vpop.permute.xlu0 %3503
        %3505 = vrot.lane.b32.xlu0 %v599, 28
        %v3506 = vpop.permute.xlu0 %3505
        %3507 = vrot.lane.b32.xlu0 %v601, 28
        %v3508 = vpop.permute.xlu0 %3507
        %3509 = vrot.lane.b32.xlu0 %v603, 28
        %v3510 = vpop.permute.xlu0 %3509
        %3511 = vrot.lane.b32.xlu0 %v605, 28
        %v3512 = vpop.permute.xlu0 %3511
        %3513 = vrot.lane.b32.xlu0 %v608, 28
        %v3514 = vpop.permute.xlu0 %3513
        %3515 = vrot.lane.b32.xlu0 %v610, 28
        %v3516 = vpop.permute.xlu0 %3515
        %3517 = vrot.lane.b32.xlu0 %v612, 28
        %v3518 = vpop.permute.xlu0 %3517
        %3519 = vrot.lane.b32.xlu0 %v614, 28
        %v3520 = vpop.permute.xlu0 %3519
        %3521 = vrot.lane.b32.xlu0 %v617, 28
        %v3522 = vpop.permute.xlu0 %3521
        %3523 = vrot.lane.b32.xlu0 %v619, 28
        %v3524 = vpop.permute.xlu0 %3523
        %3525 = vrot.lane.b32.xlu0 %v621, 28
        %v3526 = vpop.permute.xlu0 %3525
        %3527 = vrot.lane.b32.xlu0 %v623, 28
        %v3528 = vpop.permute.xlu0 %3527
        %3529 = vrot.lane.b32.xlu0 %v626, 28
        %v3530 = vpop.permute.xlu0 %3529
        %3531 = vrot.lane.b32.xlu0 %v628, 28
        %v3532 = vpop.permute.xlu0 %3531
        %3533 = vrot.lane.b32.xlu0 %v630, 28
        %v3534 = vpop.permute.xlu0 %3533
        %3535 = vrot.lane.b32.xlu0 %v632, 28
        %v3536 = vpop.permute.xlu0 %3535
        %3537 = vrot.lane.b32.xlu0 %v635, 28
        %v3538 = vpop.permute.xlu0 %3537
        %3539 = vrot.lane.b32.xlu0 %v637, 28
        %v3540 = vpop.permute.xlu0 %3539
        %3541 = vrot.lane.b32.xlu0 %v639, 28
        %v3542 = vpop.permute.xlu0 %3541
        %3543 = vrot.lane.b32.xlu0 %v641, 28
        %v3544 = vpop.permute.xlu0 %3543
        %3545 = vrot.lane.b32.xlu0 %v644, 28
        %v3546 = vpop.permute.xlu0 %3545
        %3547 = vrot.lane.b32.xlu0 %v646, 28
        %v3548 = vpop.permute.xlu0 %3547
        %3549 = vrot.lane.b32.xlu0 %v648, 28
        %v3550 = vpop.permute.xlu0 %3549
        %3551 = vrot.lane.b32.xlu0 %v650, 28
        %v3552 = vpop.permute.xlu0 %3551
        %3553 = vrot.lane.b32.xlu0 %v653, 28
        %v3554 = vpop.permute.xlu0 %3553
        %3555 = vrot.lane.b32.xlu0 %v655, 28
        %v3556 = vpop.permute.xlu0 %3555
        %3557 = vrot.lane.b32.xlu0 %v657, 28
        %v3558 = vpop.permute.xlu0 %3557
        %3559 = vrot.lane.b32.xlu0 %v659, 28
        %v3560 = vpop.permute.xlu0 %3559
        %3561 = vrot.lane.b32.xlu0 %v662, 28
        %v3562 = vpop.permute.xlu0 %3561
        %3563 = vrot.lane.b32.xlu0 %v664, 28
        %v3564 = vpop.permute.xlu0 %3563
        %3565 = vrot.lane.b32.xlu0 %v666, 28
        %v3566 = vpop.permute.xlu0 %3565
        %3567 = vrot.lane.b32.xlu0 %v668, 28
        %v3568 = vpop.permute.xlu0 %3567
        %3569 = vrot.lane.b32.xlu0 %v671, 28
        %v3570 = vpop.permute.xlu0 %3569
        %3571 = vrot.lane.b32.xlu0 %v673, 28
        %v3572 = vpop.permute.xlu0 %3571
        %3573 = vrot.lane.b32.xlu0 %v675, 28
        %v3574 = vpop.permute.xlu0 %3573
        %3575 = vrot.lane.b32.xlu0 %v677, 28
        %v3576 = vpop.permute.xlu0 %3575
        %3577 = vrot.lane.b32.xlu0 %v680, 28
        %v3578 = vpop.permute.xlu0 %3577
        %3579 = vrot.lane.b32.xlu0 %v682, 28
        %v3580 = vpop.permute.xlu0 %3579
        %3581 = vrot.lane.b32.xlu0 %v684, 28
        %v3582 = vpop.permute.xlu0 %3581
        %3583 = vrot.lane.b32.xlu0 %v686, 28
        %v3584 = vpop.permute.xlu0 %3583
        %3585 = vrot.lane.b32.xlu0 %v689, 28
        %v3586 = vpop.permute.xlu0 %3585
        %3587 = vrot.lane.b32.xlu0 %v691, 28
        %v3588 = vpop.permute.xlu0 %3587
        %3589 = vrot.lane.b32.xlu0 %v693, 28
        %v3590 = vpop.permute.xlu0 %3589
        %3591 = vrot.lane.b32.xlu0 %v695, 28
        %v3592 = vpop.permute.xlu0 %3591
        %3593 = vrot.lane.b32.xlu0 %v698, 28
        %v3594 = vpop.permute.xlu0 %3593
        %3595 = vrot.lane.b32.xlu0 %v700, 28
        %v3596 = vpop.permute.xlu0 %3595
        %3597 = vrot.lane.b32.xlu0 %v702, 28
        %v3598 = vpop.permute.xlu0 %3597
        %3599 = vrot.lane.b32.xlu0 %v704, 28
        %v3600 = vpop.permute.xlu0 %3599
        %3601 = vrot.lane.b32.xlu0 %v707, 28
        %v3602 = vpop.permute.xlu0 %3601
        %3603 = vrot.lane.b32.xlu0 %v709, 28
        %v3604 = vpop.permute.xlu0 %3603
        %3605 = vrot.lane.b32.xlu0 %v711, 28
        %v3606 = vpop.permute.xlu0 %3605
        %3607 = vrot.lane.b32.xlu0 %v713, 28
        %v3608 = vpop.permute.xlu0 %3607
        %3609 = vrot.lane.b32.xlu0 %v716, 28
        %v3610 = vpop.permute.xlu0 %3609
        %3611 = vrot.lane.b32.xlu0 %v718, 28
        %v3612 = vpop.permute.xlu0 %3611
        %3613 = vrot.lane.b32.xlu0 %v720, 28
        %v3614 = vpop.permute.xlu0 %3613
        %3615 = vrot.lane.b32.xlu0 %v722, 28
        %v3616 = vpop.permute.xlu0 %3615
        %3617 = vrot.lane.b32.xlu0 %v725, 28
        %v3618 = vpop.permute.xlu0 %3617
        %3619 = vrot.lane.b32.xlu0 %v727, 28
        %v3620 = vpop.permute.xlu0 %3619
        %3621 = vrot.lane.b32.xlu0 %v729, 28
        %v3622 = vpop.permute.xlu0 %3621
        %3623 = vrot.lane.b32.xlu0 %v731, 28
        %v3624 = vpop.permute.xlu0 %3623
        %3625 = vrot.lane.b32.xlu0 %v734, 28
        %v3626 = vpop.permute.xlu0 %3625
        %3627 = vrot.lane.b32.xlu0 %v736, 28
        %v3628 = vpop.permute.xlu0 %3627
        %3629 = vrot.lane.b32.xlu0 %v738, 28
        %v3630 = vpop.permute.xlu0 %3629
        %3631 = vrot.lane.b32.xlu0 %v740, 28
        %v3632 = vpop.permute.xlu0 %3631
        %3633 = vrot.lane.b32.xlu0 %v743, 28
        %v3634 = vpop.permute.xlu0 %3633
        %3635 = vrot.lane.b32.xlu0 %v745, 28
        %v3636 = vpop.permute.xlu0 %3635
        %3637 = vrot.lane.b32.xlu0 %v747, 28
        %v3638 = vpop.permute.xlu0 %3637
        %3639 = vrot.lane.b32.xlu0 %v749, 28
        %v3640 = vpop.permute.xlu0 %3639
        %3641 = vrot.lane.b32.xlu0 %v752, 28
        %v3642 = vpop.permute.xlu0 %3641
        %3643 = vrot.lane.b32.xlu0 %v754, 28
        %v3644 = vpop.permute.xlu0 %3643
        %3645 = vrot.lane.b32.xlu0 %v756, 28
        %v3646 = vpop.permute.xlu0 %3645
        %3647 = vrot.lane.b32.xlu0 %v758, 28
        %v3648 = vpop.permute.xlu0 %3647
        %3649 = vrot.lane.b32.xlu0 %v761, 28
        %v3650 = vpop.permute.xlu0 %3649
        %3651 = vrot.lane.b32.xlu0 %v763, 28
        %v3652 = vpop.permute.xlu0 %3651
        %3653 = vrot.lane.b32.xlu0 %v765, 28
        %v3654 = vpop.permute.xlu0 %3653
        %3655 = vrot.lane.b32.xlu0 %v767, 28
        %v3656 = vpop.permute.xlu0 %3655
        %3657 = vrot.lane.b32.xlu0 %v770, 28
        %v3658 = vpop.permute.xlu0 %3657
        %3659 = vrot.lane.b32.xlu0 %v772, 28
        %v3660 = vpop.permute.xlu0 %3659
        %3661 = vrot.lane.b32.xlu0 %v774, 28
        %v3662 = vpop.permute.xlu0 %3661
        %3663 = vrot.lane.b32.xlu0 %v776, 28
        %v3664 = vpop.permute.xlu0 %3663
        %3665 = vrot.lane.b32.xlu0 %v779, 28
        %v3666 = vpop.permute.xlu0 %3665
        %3667 = vrot.lane.b32.xlu0 %v781, 28
        %v3668 = vpop.permute.xlu0 %3667
        %3669 = vrot.lane.b32.xlu0 %v783, 28
        %v3670 = vpop.permute.xlu0 %3669
        %3671 = vrot.lane.b32.xlu0 %v785, 28
        %v3672 = vpop.permute.xlu0 %3671
        %3673 = vrot.lane.b32.xlu0 %v788, 28
        %v3674 = vpop.permute.xlu0 %3673
        %3675 = vrot.lane.b32.xlu0 %v790, 28
        %v3676 = vpop.permute.xlu0 %3675
        %3677 = vrot.lane.b32.xlu0 %v792, 28
        %v3678 = vpop.permute.xlu0 %3677
        %3679 = vrot.lane.b32.xlu0 %v794, 28
        %v3680 = vpop.permute.xlu0 %3679
        %3681 = vrot.lane.b32.xlu0 %v797, 28
        %v3682 = vpop.permute.xlu0 %3681
        %3683 = vrot.lane.b32.xlu0 %v799, 28
        %v3684 = vpop.permute.xlu0 %3683
        %3685 = vrot.lane.b32.xlu0 %v801, 28
        %v3686 = vpop.permute.xlu0 %3685
        %3687 = vrot.lane.b32.xlu0 %v803, 28
        %v3688 = vpop.permute.xlu0 %3687
        %3689 = vrot.lane.b32.xlu0 %v806, 28
        %v3690 = vpop.permute.xlu0 %3689
        %3691 = vrot.lane.b32.xlu0 %v808, 28
        %v3692 = vpop.permute.xlu0 %3691
        %3693 = vrot.lane.b32.xlu0 %v810, 28
        %v3694 = vpop.permute.xlu0 %3693
        %3695 = vrot.lane.b32.xlu0 %v812, 28
        %v3696 = vpop.permute.xlu0 %3695
        %3697 = vrot.lane.b32.xlu0 %v815, 28
        %v3698 = vpop.permute.xlu0 %3697
        %3699 = vrot.lane.b32.xlu0 %v817, 28
        %v3700 = vpop.permute.xlu0 %3699
        %3701 = vrot.lane.b32.xlu0 %v819, 28
        %v3702 = vpop.permute.xlu0 %3701
        %3703 = vrot.lane.b32.xlu0 %v821, 28
        %v3704 = vpop.permute.xlu0 %3703
        %3705 = vrot.lane.b32.xlu0 %v824, 28
        %v3706 = vpop.permute.xlu0 %3705
        %3707 = vrot.lane.b32.xlu0 %v826, 28
        %v3708 = vpop.permute.xlu0 %3707
        %3709 = vrot.lane.b32.xlu0 %v828, 28
        %v3710 = vpop.permute.xlu0 %3709
        %3711 = vrot.lane.b32.xlu0 %v830, 28
        %v3712 = vpop.permute.xlu0 %3711
        %3713 = vrot.lane.b32.xlu0 %v833, 28
        %v3714 = vpop.permute.xlu0 %3713
        %3715 = vrot.lane.b32.xlu0 %v835, 28
        %v3716 = vpop.permute.xlu0 %3715
        %3717 = vrot.lane.b32.xlu0 %v837, 28
        %v3718 = vpop.permute.xlu0 %3717
        %3719 = vrot.lane.b32.xlu0 %v839, 28
        %v3720 = vpop.permute.xlu0 %3719
        %3721 = vrot.lane.b32.xlu0 %v842, 28
        %v3722 = vpop.permute.xlu0 %3721
        %3723 = vrot.lane.b32.xlu0 %v844, 28
        %v3724 = vpop.permute.xlu0 %3723
        %3725 = vrot.lane.b32.xlu0 %v846, 28
        %v3726 = vpop.permute.xlu0 %3725
        %3727 = vrot.lane.b32.xlu0 %v848, 28
        %v3728 = vpop.permute.xlu0 %3727
        %3729 = vrot.lane.b32.xlu0 %v851, 28
        %v3730 = vpop.permute.xlu0 %3729
        %3731 = vrot.lane.b32.xlu0 %v853, 28
        %v3732 = vpop.permute.xlu0 %3731
        %3733 = vrot.lane.b32.xlu0 %v855, 28
        %v3734 = vpop.permute.xlu0 %3733
        %3735 = vrot.lane.b32.xlu0 %v857, 28
        %v3736 = vpop.permute.xlu0 %3735
        %3737 = vrot.lane.b32.xlu0 %v1154, 28
        %v3738 = vpop.permute.xlu0 %3737
        %3739 = vrot.lane.b32.xlu0 %v1156, 28
        %v3740 = vpop.permute.xlu0 %3739
        %3741 = vrot.lane.b32.xlu0 %v1158, 28
        %v3742 = vpop.permute.xlu0 %3741
        %3743 = vrot.lane.b32.xlu0 %v1160, 28
        %v3744 = vpop.permute.xlu0 %3743
        %3745 = vrot.lane.b32.xlu0 %v1177, 28
        %v3746 = vpop.permute.xlu0 %3745
        %3747 = vrot.lane.b32.xlu0 %v1179, 28
        %v3748 = vpop.permute.xlu0 %3747
        %3749 = vrot.lane.b32.xlu0 %v1181, 28
        %v3750 = vpop.permute.xlu0 %3749
        %3751 = vrot.lane.b32.xlu0 %v1183, 28
        %v3752 = vpop.permute.xlu0 %3751
        %3881 = vrot.lane.b32.xlu0 %v879, 32
        %v3882 = vpop.permute.xlu0 %3881
        %3883 = vrot.lane.b32.xlu0 %v881, 32
        %v3884 = vpop.permute.xlu0 %3883
        %3885 = vrot.lane.b32.xlu0 %v883, 32
        %v3886 = vpop.permute.xlu0 %3885
        %3887 = vrot.lane.b32.xlu0 %v885, 32
        %v3888 = vpop.permute.xlu0 %3887
        %3889 = vrot.lane.b32.xlu0 %v888, 32
        %v3890 = vpop.permute.xlu0 %3889
        %3891 = vrot.lane.b32.xlu0 %v890, 32
        %v3892 = vpop.permute.xlu0 %3891
        %3893 = vrot.lane.b32.xlu0 %v892, 32
        %v3894 = vpop.permute.xlu0 %3893
        %3895 = vrot.lane.b32.xlu0 %v894, 32
        %v3896 = vpop.permute.xlu0 %3895
        %3897 = vrot.lane.b32.xlu0 %v897, 32
        %v3898 = vpop.permute.xlu0 %3897
        %3899 = vrot.lane.b32.xlu0 %v899, 32
        %v3900 = vpop.permute.xlu0 %3899
        %3901 = vrot.lane.b32.xlu0 %v901, 32
        %v3902 = vpop.permute.xlu0 %3901
        %3903 = vrot.lane.b32.xlu0 %v903, 32
        %v3904 = vpop.permute.xlu0 %3903
        %3905 = vrot.lane.b32.xlu0 %v906, 32
        %v3906 = vpop.permute.xlu0 %3905
        %3907 = vrot.lane.b32.xlu0 %v908, 32
        %v3908 = vpop.permute.xlu0 %3907
        %3909 = vrot.lane.b32.xlu0 %v910, 32
        %v3910 = vpop.permute.xlu0 %3909
        %3911 = vrot.lane.b32.xlu0 %v912, 32
        %v3912 = vpop.permute.xlu0 %3911
        %3913 = vrot.lane.b32.xlu0 %v915, 32
        %v3914 = vpop.permute.xlu0 %3913
        %3915 = vrot.lane.b32.xlu0 %v917, 32
        %v3916 = vpop.permute.xlu0 %3915
        %3917 = vrot.lane.b32.xlu0 %v919, 32
        %v3918 = vpop.permute.xlu0 %3917
        %3919 = vrot.lane.b32.xlu0 %v921, 32
        %v3920 = vpop.permute.xlu0 %3919
        %3921 = vrot.lane.b32.xlu0 %v924, 32
        %v3922 = vpop.permute.xlu0 %3921
        %3923 = vrot.lane.b32.xlu0 %v926, 32
        %v3924 = vpop.permute.xlu0 %3923
        %3925 = vrot.lane.b32.xlu0 %v928, 32
        %v3926 = vpop.permute.xlu0 %3925
        %3927 = vrot.lane.b32.xlu0 %v930, 32
        %v3928 = vpop.permute.xlu0 %3927
        %3929 = vrot.lane.b32.xlu0 %v933, 32
        %v3930 = vpop.permute.xlu0 %3929
        %3931 = vrot.lane.b32.xlu0 %v935, 32
        %v3932 = vpop.permute.xlu0 %3931
        %3933 = vrot.lane.b32.xlu0 %v937, 32
        %v3934 = vpop.permute.xlu0 %3933
        %3935 = vrot.lane.b32.xlu0 %v939, 32
        %v3936 = vpop.permute.xlu0 %3935
        %3937 = vrot.lane.b32.xlu0 %v942, 32
        %v3938 = vpop.permute.xlu0 %3937
        %3939 = vrot.lane.b32.xlu0 %v944, 32
        %v3940 = vpop.permute.xlu0 %3939
        %3941 = vrot.lane.b32.xlu0 %v946, 32
        %v3942 = vpop.permute.xlu0 %3941
        %3943 = vrot.lane.b32.xlu0 %v948, 32
        %v3944 = vpop.permute.xlu0 %3943
        %3945 = vrot.lane.b32.xlu0 %v951, 32
        %v3946 = vpop.permute.xlu0 %3945
        %3947 = vrot.lane.b32.xlu0 %v953, 32
        %v3948 = vpop.permute.xlu0 %3947
        %3949 = vrot.lane.b32.xlu0 %v955, 32
        %v3950 = vpop.permute.xlu0 %3949
        %3951 = vrot.lane.b32.xlu0 %v957, 32
        %v3952 = vpop.permute.xlu0 %3951
        %3953 = vrot.lane.b32.xlu0 %v960, 32
        %v3954 = vpop.permute.xlu0 %3953
        %3955 = vrot.lane.b32.xlu0 %v962, 32
        %v3956 = vpop.permute.xlu0 %3955
        %3957 = vrot.lane.b32.xlu0 %v964, 32
        %v3958 = vpop.permute.xlu0 %3957
        %3959 = vrot.lane.b32.xlu0 %v966, 32
        %v3960 = vpop.permute.xlu0 %3959
        %3961 = vrot.lane.b32.xlu0 %v969, 32
        %v3962 = vpop.permute.xlu0 %3961
        %3963 = vrot.lane.b32.xlu0 %v971, 32
        %v3964 = vpop.permute.xlu0 %3963
        %3965 = vrot.lane.b32.xlu0 %v973, 32
        %v3966 = vpop.permute.xlu0 %3965
        %3967 = vrot.lane.b32.xlu0 %v975, 32
        %v3968 = vpop.permute.xlu0 %3967
        %3969 = vrot.lane.b32.xlu0 %v978, 32
        %v3970 = vpop.permute.xlu0 %3969
        %3971 = vrot.lane.b32.xlu0 %v980, 32
        %v3972 = vpop.permute.xlu0 %3971
        %3973 = vrot.lane.b32.xlu0 %v982, 32
        %v3974 = vpop.permute.xlu0 %3973
        %3975 = vrot.lane.b32.xlu0 %v984, 32
        %v3976 = vpop.permute.xlu0 %3975
        %3977 = vrot.lane.b32.xlu0 %v987, 32
        %v3978 = vpop.permute.xlu0 %3977
        %3979 = vrot.lane.b32.xlu0 %v989, 32
        %v3980 = vpop.permute.xlu0 %3979
        %3981 = vrot.lane.b32.xlu0 %v991, 32
        %v3982 = vpop.permute.xlu0 %3981
        %3983 = vrot.lane.b32.xlu0 %v993, 32
        %v3984 = vpop.permute.xlu0 %3983
        %3985 = vrot.lane.b32.xlu0 %v996, 32
        %v3986 = vpop.permute.xlu0 %3985
        %3987 = vrot.lane.b32.xlu0 %v998, 32
        %v3988 = vpop.permute.xlu0 %3987
        %3989 = vrot.lane.b32.xlu0 %v1000, 32
        %v3990 = vpop.permute.xlu0 %3989
        %3991 = vrot.lane.b32.xlu0 %v1002, 32
        %v3992 = vpop.permute.xlu0 %3991
        %3993 = vrot.lane.b32.xlu0 %v1005, 32
        %v3994 = vpop.permute.xlu0 %3993
        %3995 = vrot.lane.b32.xlu0 %v1007, 32
        %v3996 = vpop.permute.xlu0 %3995
        %3997 = vrot.lane.b32.xlu0 %v1009, 32
        %v3998 = vpop.permute.xlu0 %3997
        %3999 = vrot.lane.b32.xlu0 %v1011, 32
        %v4000 = vpop.permute.xlu0 %3999
        %4001 = vrot.lane.b32.xlu0 %v1014, 32
        %v4002 = vpop.permute.xlu0 %4001
        %4003 = vrot.lane.b32.xlu0 %v1016, 32
        %v4004 = vpop.permute.xlu0 %4003
        %4005 = vrot.lane.b32.xlu0 %v1018, 32
        %v4006 = vpop.permute.xlu0 %4005
        %4007 = vrot.lane.b32.xlu0 %v1020, 32
        %v4008 = vpop.permute.xlu0 %4007
        %4009 = vrot.lane.b32.xlu0 %v1023, 32
        %v4010 = vpop.permute.xlu0 %4009
        %4011 = vrot.lane.b32.xlu0 %v1025, 32
        %v4012 = vpop.permute.xlu0 %4011
        %4013 = vrot.lane.b32.xlu0 %v1027, 32
        %v4014 = vpop.permute.xlu0 %4013
        %4015 = vrot.lane.b32.xlu0 %v1029, 32
        %v4016 = vpop.permute.xlu0 %4015
        %4017 = vrot.lane.b32.xlu0 %v1032, 32
        %v4018 = vpop.permute.xlu0 %4017
        %4019 = vrot.lane.b32.xlu0 %v1034, 32
        %v4020 = vpop.permute.xlu0 %4019
        %4021 = vrot.lane.b32.xlu0 %v1036, 32
        %v4022 = vpop.permute.xlu0 %4021
        %4023 = vrot.lane.b32.xlu0 %v1038, 32
        %v4024 = vpop.permute.xlu0 %4023
        %4025 = vrot.lane.b32.xlu0 %v1041, 32
        %v4026 = vpop.permute.xlu0 %4025
        %4027 = vrot.lane.b32.xlu0 %v1043, 32
        %v4028 = vpop.permute.xlu0 %4027
        %4029 = vrot.lane.b32.xlu0 %v1045, 32
        %v4030 = vpop.permute.xlu0 %4029
        %4031 = vrot.lane.b32.xlu0 %v1047, 32
        %v4032 = vpop.permute.xlu0 %4031
        %4033 = vrot.lane.b32.xlu0 %v1050, 32
        %v4034 = vpop.permute.xlu0 %4033
        %4035 = vrot.lane.b32.xlu0 %v1052, 32
        %v4036 = vpop.permute.xlu0 %4035
        %4037 = vrot.lane.b32.xlu0 %v1054, 32
        %v4038 = vpop.permute.xlu0 %4037
        %4039 = vrot.lane.b32.xlu0 %v1056, 32
        %v4040 = vpop.permute.xlu0 %4039
        %4041 = vrot.lane.b32.xlu0 %v1059, 32
        %v4042 = vpop.permute.xlu0 %4041
        %4043 = vrot.lane.b32.xlu0 %v1061, 32
        %v4044 = vpop.permute.xlu0 %4043
        %4045 = vrot.lane.b32.xlu0 %v1063, 32
        %v4046 = vpop.permute.xlu0 %4045
        %4047 = vrot.lane.b32.xlu0 %v1065, 32
        %v4048 = vpop.permute.xlu0 %4047
        %4049 = vrot.lane.b32.xlu0 %v1068, 32
        %v4050 = vpop.permute.xlu0 %4049
        %4051 = vrot.lane.b32.xlu0 %v1070, 32
        %v4052 = vpop.permute.xlu0 %4051
        %4053 = vrot.lane.b32.xlu0 %v1072, 32
        %v4054 = vpop.permute.xlu0 %4053
        %4055 = vrot.lane.b32.xlu0 %v1074, 32
        %v4056 = vpop.permute.xlu0 %4055
        %4057 = vrot.lane.b32.xlu0 %v1077, 32
        %v4058 = vpop.permute.xlu0 %4057
        %4059 = vrot.lane.b32.xlu0 %v1079, 32
        %v4060 = vpop.permute.xlu0 %4059
        %4061 = vrot.lane.b32.xlu0 %v1081, 32
        %v4062 = vpop.permute.xlu0 %4061
        %4063 = vrot.lane.b32.xlu0 %v1083, 32
        %v4064 = vpop.permute.xlu0 %4063
        %4065 = vrot.lane.b32.xlu0 %v1086, 32
        %v4066 = vpop.permute.xlu0 %4065
        %4067 = vrot.lane.b32.xlu0 %v1088, 32
        %v4068 = vpop.permute.xlu0 %4067
        %4069 = vrot.lane.b32.xlu0 %v1090, 32
        %v4070 = vpop.permute.xlu0 %4069
        %4071 = vrot.lane.b32.xlu0 %v1092, 32
        %v4072 = vpop.permute.xlu0 %4071
        %4073 = vrot.lane.b32.xlu0 %v1095, 32
        %v4074 = vpop.permute.xlu0 %4073
        %4075 = vrot.lane.b32.xlu0 %v1097, 32
        %v4076 = vpop.permute.xlu0 %4075
        %4077 = vrot.lane.b32.xlu0 %v1099, 32
        %v4078 = vpop.permute.xlu0 %4077
        %4079 = vrot.lane.b32.xlu0 %v1101, 32
        %v4080 = vpop.permute.xlu0 %4079
        %4081 = vrot.lane.b32.xlu0 %v1104, 32
        %v4082 = vpop.permute.xlu0 %4081
        %4083 = vrot.lane.b32.xlu0 %v1106, 32
        %v4084 = vpop.permute.xlu0 %4083
        %4085 = vrot.lane.b32.xlu0 %v1108, 32
        %v4086 = vpop.permute.xlu0 %4085
        %4087 = vrot.lane.b32.xlu0 %v1110, 32
        %v4088 = vpop.permute.xlu0 %4087
        %4089 = vrot.lane.b32.xlu0 %v1113, 32
        %v4090 = vpop.permute.xlu0 %4089
        %4091 = vrot.lane.b32.xlu0 %v1115, 32
        %v4092 = vpop.permute.xlu0 %4091
        %4093 = vrot.lane.b32.xlu0 %v1117, 32
        %v4094 = vpop.permute.xlu0 %4093
        %4095 = vrot.lane.b32.xlu0 %v1119, 32
        %v4096 = vpop.permute.xlu0 %4095
        %4097 = vrot.lane.b32.xlu0 %v1122, 32
        %v4098 = vpop.permute.xlu0 %4097
        %4099 = vrot.lane.b32.xlu0 %v1124, 32
        %v4100 = vpop.permute.xlu0 %4099
        %4101 = vrot.lane.b32.xlu0 %v1126, 32
        %v4102 = vpop.permute.xlu0 %4101
        %4103 = vrot.lane.b32.xlu0 %v1128, 32
        %v4104 = vpop.permute.xlu0 %4103
        %4105 = vrot.lane.b32.xlu0 %v1131, 32
        %v4106 = vpop.permute.xlu0 %4105
        %4107 = vrot.lane.b32.xlu0 %v1133, 32
        %v4108 = vpop.permute.xlu0 %4107
        %4109 = vrot.lane.b32.xlu0 %v1135, 32
        %v4110 = vpop.permute.xlu0 %4109
        %4111 = vrot.lane.b32.xlu0 %v1137, 32
        %v4112 = vpop.permute.xlu0 %4111
        %4113 = vrot.lane.b32.xlu0 %v1140, 32
        %v4114 = vpop.permute.xlu0 %4113
        %4115 = vrot.lane.b32.xlu0 %v1142, 32
        %v4116 = vpop.permute.xlu0 %4115
        %4117 = vrot.lane.b32.xlu0 %v1144, 32
        %v4118 = vpop.permute.xlu0 %4117
        %4119 = vrot.lane.b32.xlu0 %v1146, 32
        %v4120 = vpop.permute.xlu0 %4119
        %4121 = vrot.lane.b32.xlu0 %v1163, 32
        %v4122 = vpop.permute.xlu0 %4121
        %4123 = vrot.lane.b32.xlu0 %v1165, 32
        %v4124 = vpop.permute.xlu0 %4123
        %4125 = vrot.lane.b32.xlu0 %v1167, 32
        %v4126 = vpop.permute.xlu0 %4125
        %4127 = vrot.lane.b32.xlu0 %v1169, 32
        %v4128 = vpop.permute.xlu0 %4127
        %4129 = vrot.lane.b32.xlu0 %v1186, 32
        %v4130 = vpop.permute.xlu0 %4129
        %4131 = vrot.lane.b32.xlu0 %v1188, 32
        %v4132 = vpop.permute.xlu0 %4131
        %4133 = vrot.lane.b32.xlu0 %v1190, 32
        %v4134 = vpop.permute.xlu0 %4133
        %4135 = vrot.lane.b32.xlu0 %v1192, 32
        %v4136 = vpop.permute.xlu0 %4135
        %vm4265 = vcmask 31744
        %v4266 = vsel %vm4265, %v239, %v1194
        %v4267 = vsel %vm4265, %v240, %v1196
        %v4268 = vsel %vm4265, %v241, %v1198
        %v4269 = vsel %vm4265, %v242, %v1200
        %v4270 = vsel %vm4265, %v244, %v1202
        %v4271 = vsel %vm4265, %v245, %v1204
        %v4272 = vsel %vm4265, %v246, %v1206
        %v4273 = vsel %vm4265, %v247, %v1208
        %v4274 = vsel %vm4265, %v249, %v1210
        %v4275 = vsel %vm4265, %v250, %v1212
        %v4276 = vsel %vm4265, %v251, %v1214
        %v4277 = vsel %vm4265, %v252, %v1216
        %v4278 = vsel %vm4265, %v254, %v1218
        %v4279 = vsel %vm4265, %v255, %v1220
        %v4280 = vsel %vm4265, %v256, %v1222
        %v4281 = vsel %vm4265, %v257, %v1224
        %v4282 = vsel %vm4265, %v259, %v1226
        %v4283 = vsel %vm4265, %v260, %v1228
        %v4284 = vsel %vm4265, %v261, %v1230
        %v4285 = vsel %vm4265, %v262, %v1232
        %v4286 = vsel %vm4265, %v264, %v1234
        %v4287 = vsel %vm4265, %v265, %v1236
        %v4288 = vsel %vm4265, %v266, %v1238
        %v4289 = vsel %vm4265, %v267, %v1240
        %v4290 = vsel %vm4265, %v269, %v1242
        %v4291 = vsel %vm4265, %v270, %v1244
        %v4292 = vsel %vm4265, %v271, %v1246
        %v4293 = vsel %vm4265, %v272, %v1248
        %v4294 = vsel %vm4265, %v274, %v1250
        %v4295 = vsel %vm4265, %v275, %v1252
        %v4296 = vsel %vm4265, %v276, %v1254
        %v4297 = vsel %vm4265, %v277, %v1256
        %v4298 = vsel %vm4265, %v279, %v1258
        %v4299 = vsel %vm4265, %v280, %v1260
        %v4300 = vsel %vm4265, %v281, %v1262
        %v4301 = vsel %vm4265, %v282, %v1264
        %v4302 = vsel %vm4265, %v284, %v1266
        %v4303 = vsel %vm4265, %v285, %v1268
        %v4304 = vsel %vm4265, %v286, %v1270
        %v4305 = vsel %vm4265, %v287, %v1272
        %v4306 = vsel %vm4265, %v289, %v1274
        %v4307 = vsel %vm4265, %v290, %v1276
        %v4308 = vsel %vm4265, %v291, %v1278
        %v4309 = vsel %vm4265, %v292, %v1280
        %v4310 = vsel %vm4265, %v294, %v1282
        %v4311 = vsel %vm4265, %v295, %v1284
        %v4312 = vsel %vm4265, %v296, %v1286
        %v4313 = vsel %vm4265, %v297, %v1288
        %v4314 = vsel %vm4265, %v299, %v1290
        %v4315 = vsel %vm4265, %v300, %v1292
        %v4316 = vsel %vm4265, %v301, %v1294
        %v4317 = vsel %vm4265, %v302, %v1296
        %v4318 = vsel %vm4265, %v304, %v1298
        %v4319 = vsel %vm4265, %v305, %v1300
        %v4320 = vsel %vm4265, %v306, %v1302
        %v4321 = vsel %vm4265, %v307, %v1304
        %v4322 = vsel %vm4265, %v309, %v1306
        %v4323 = vsel %vm4265, %v310, %v1308
        %v4324 = vsel %vm4265, %v311, %v1310
        %v4325 = vsel %vm4265, %v312, %v1312
        %v4326 = vsel %vm4265, %v314, %v1314
        %v4327 = vsel %vm4265, %v315, %v1316
        %v4328 = vsel %vm4265, %v316, %v1318
        %v4329 = vsel %vm4265, %v317, %v1320
        %v4330 = vsel %vm4265, %v319, %v1322
        %v4331 = vsel %vm4265, %v320, %v1324
        %v4332 = vsel %vm4265, %v321, %v1326
        %v4333 = vsel %vm4265, %v322, %v1328
        %v4334 = vsel %vm4265, %v324, %v1330
        %v4335 = vsel %vm4265, %v325, %v1332
        %v4336 = vsel %vm4265, %v326, %v1334
        %v4337 = vsel %vm4265, %v327, %v1336
        %v4338 = vsel %vm4265, %v329, %v1338
        %v4339 = vsel %vm4265, %v330, %v1340
        %v4340 = vsel %vm4265, %v331, %v1342
        %v4341 = vsel %vm4265, %v332, %v1344
        %v4342 = vsel %vm4265, %v334, %v1346
        %v4343 = vsel %vm4265, %v335, %v1348
        %v4344 = vsel %vm4265, %v336, %v1350
        %v4345 = vsel %vm4265, %v337, %v1352
        %v4346 = vsel %vm4265, %v339, %v1354
        %v4347 = vsel %vm4265, %v340, %v1356
        %v4348 = vsel %vm4265, %v341, %v1358
        %v4349 = vsel %vm4265, %v342, %v1360
        %v4350 = vsel %vm4265, %v344, %v1362
        %v4351 = vsel %vm4265, %v345, %v1364
        %v4352 = vsel %vm4265, %v346, %v1366
        %v4353 = vsel %vm4265, %v347, %v1368
        %v4354 = vsel %vm4265, %v349, %v1370
        %v4355 = vsel %vm4265, %v350, %v1372
        %v4356 = vsel %vm4265, %v351, %v1374
        %v4357 = vsel %vm4265, %v352, %v1376
        %v4358 = vsel %vm4265, %v354, %v1378
        %v4359 = vsel %vm4265, %v355, %v1380
        %v4360 = vsel %vm4265, %v356, %v1382
        %v4361 = vsel %vm4265, %v357, %v1384
        %v4362 = vsel %vm4265, %v359, %v1386
        %v4363 = vsel %vm4265, %v360, %v1388
        %v4364 = vsel %vm4265, %v361, %v1390
        %v4365 = vsel %vm4265, %v362, %v1392
        %v4366 = vsel %vm4265, %v364, %v1394
        %v4367 = vsel %vm4265, %v365, %v1396
        %v4368 = vsel %vm4265, %v366, %v1398
        %v4369 = vsel %vm4265, %v367, %v1400
        %v4370 = vsel %vm4265, %v369, %v1402
        %v4371 = vsel %vm4265, %v370, %v1404
        %v4372 = vsel %vm4265, %v371, %v1406
        %v4373 = vsel %vm4265, %v372, %v1408
        %v4374 = vsel %vm4265, %v374, %v1410
        %v4375 = vsel %vm4265, %v375, %v1412
        %v4376 = vsel %vm4265, %v376, %v1414
        %v4377 = vsel %vm4265, %v377, %v1416
        %v4378 = vsel %vm4265, %v379, %v1418
        %v4379 = vsel %vm4265, %v380, %v1420
        %v4380 = vsel %vm4265, %v381, %v1422
        %v4381 = vsel %vm4265, %v382, %v1424
        %v4382 = vsel %vm4265, %v384, %v1426
        %v4383 = vsel %vm4265, %v385, %v1428
        %v4384 = vsel %vm4265, %v386, %v1430
        %v4385 = vsel %vm4265, %v387, %v1432
        %v4386 = vsel %vm4265, %v389, %v1434
        %v4387 = vsel %vm4265, %v390, %v1436
        %v4388 = vsel %vm4265, %v391, %v1438
        %v4389 = vsel %vm4265, %v392, %v1440
        %v4390 = vsel %vm4265, %v394, %v1442
        %v4391 = vsel %vm4265, %v395, %v1444
        %v4392 = vsel %vm4265, %v396, %v1446
        %v4393 = vsel %vm4265, %v397, %v1448
        %vm4394 = vcmask 64512
        %v4395 = vsel %vm4394, %v4266, %v1578
        %v4396 = vsel %vm4394, %v4267, %v1580
        %v4397 = vsel %vm4394, %v4268, %v1582
        %v4398 = vsel %vm4394, %v4269, %v1584
        %v4399 = vsel %vm4394, %v4270, %v1586
        %v4400 = vsel %vm4394, %v4271, %v1588
        %v4401 = vsel %vm4394, %v4272, %v1590
        %v4402 = vsel %vm4394, %v4273, %v1592
        %v4403 = vsel %vm4394, %v4274, %v1594
        %v4404 = vsel %vm4394, %v4275, %v1596
        %v4405 = vsel %vm4394, %v4276, %v1598
        %v4406 = vsel %vm4394, %v4277, %v1600
        %v4407 = vsel %vm4394, %v4278, %v1602
        %v4408 = vsel %vm4394, %v4279, %v1604
        %v4409 = vsel %vm4394, %v4280, %v1606
        %v4410 = vsel %vm4394, %v4281, %v1608
        %v4411 = vsel %vm4394, %v4282, %v1610
        %v4412 = vsel %vm4394, %v4283, %v1612
        %v4413 = vsel %vm4394, %v4284, %v1614
        %v4414 = vsel %vm4394, %v4285, %v1616
        %v4415 = vsel %vm4394, %v4286, %v1618
        %v4416 = vsel %vm4394, %v4287, %v1620
        %v4417 = vsel %vm4394, %v4288, %v1622
        %v4418 = vsel %vm4394, %v4289, %v1624
        %v4419 = vsel %vm4394, %v4290, %v1626
        %v4420 = vsel %vm4394, %v4291, %v1628
        %v4421 = vsel %vm4394, %v4292, %v1630
        %v4422 = vsel %vm4394, %v4293, %v1632
        %v4423 = vsel %vm4394, %v4294, %v1634
        %v4424 = vsel %vm4394, %v4295, %v1636
        %v4425 = vsel %vm4394, %v4296, %v1638
        %v4426 = vsel %vm4394, %v4297, %v1640
        %v4427 = vsel %vm4394, %v4298, %v1642
        %v4428 = vsel %vm4394, %v4299, %v1644
        %v4429 = vsel %vm4394, %v4300, %v1646
        %v4430 = vsel %vm4394, %v4301, %v1648
        %v4431 = vsel %vm4394, %v4302, %v1650
        %v4432 = vsel %vm4394, %v4303, %v1652
        %v4433 = vsel %vm4394, %v4304, %v1654
        %v4434 = vsel %vm4394, %v4305, %v1656
        %v4435 = vsel %vm4394, %v4306, %v1658
        %v4436 = vsel %vm4394, %v4307, %v1660
        %v4437 = vsel %vm4394, %v4308, %v1662
        %v4438 = vsel %vm4394, %v4309, %v1664
        %v4439 = vsel %vm4394, %v4310, %v1666
        %v4440 = vsel %vm4394, %v4311, %v1668
        %v4441 = vsel %vm4394, %v4312, %v1670
        %v4442 = vsel %vm4394, %v4313, %v1672
        %v4443 = vsel %vm4394, %v4314, %v1674
        %v4444 = vsel %vm4394, %v4315, %v1676
        %v4445 = vsel %vm4394, %v4316, %v1678
        %v4446 = vsel %vm4394, %v4317, %v1680
        %v4447 = vsel %vm4394, %v4318, %v1682
        %v4448 = vsel %vm4394, %v4319, %v1684
        %v4449 = vsel %vm4394, %v4320, %v1686
        %v4450 = vsel %vm4394, %v4321, %v1688
        %v4451 = vsel %vm4394, %v4322, %v1690
        %v4452 = vsel %vm4394, %v4323, %v1692
        %v4453 = vsel %vm4394, %v4324, %v1694
        %v4454 = vsel %vm4394, %v4325, %v1696
        %v4455 = vsel %vm4394, %v4326, %v1698
        %v4456 = vsel %vm4394, %v4327, %v1700
        %v4457 = vsel %vm4394, %v4328, %v1702
        %v4458 = vsel %vm4394, %v4329, %v1704
        %v4459 = vsel %vm4394, %v4330, %v1706
        %v4460 = vsel %vm4394, %v4331, %v1708
        %v4461 = vsel %vm4394, %v4332, %v1710
        %v4462 = vsel %vm4394, %v4333, %v1712
        %v4463 = vsel %vm4394, %v4334, %v1714
        %v4464 = vsel %vm4394, %v4335, %v1716
        %v4465 = vsel %vm4394, %v4336, %v1718
        %v4466 = vsel %vm4394, %v4337, %v1720
        %v4467 = vsel %vm4394, %v4338, %v1722
        %v4468 = vsel %vm4394, %v4339, %v1724
        %v4469 = vsel %vm4394, %v4340, %v1726
        %v4470 = vsel %vm4394, %v4341, %v1728
        %v4471 = vsel %vm4394, %v4342, %v1730
        %v4472 = vsel %vm4394, %v4343, %v1732
        %v4473 = vsel %vm4394, %v4344, %v1734
        %v4474 = vsel %vm4394, %v4345, %v1736
        %v4475 = vsel %vm4394, %v4346, %v1738
        %v4476 = vsel %vm4394, %v4347, %v1740
        %v4477 = vsel %vm4394, %v4348, %v1742
        %v4478 = vsel %vm4394, %v4349, %v1744
        %v4479 = vsel %vm4394, %v4350, %v1746
        %v4480 = vsel %vm4394, %v4351, %v1748
        %v4481 = vsel %vm4394, %v4352, %v1750
        %v4482 = vsel %vm4394, %v4353, %v1752
        %v4483 = vsel %vm4394, %v4354, %v1754
        %v4484 = vsel %vm4394, %v4355, %v1756
        %v4485 = vsel %vm4394, %v4356, %v1758
        %v4486 = vsel %vm4394, %v4357, %v1760
        %v4487 = vsel %vm4394, %v4358, %v1762
        %v4488 = vsel %vm4394, %v4359, %v1764
        %v4489 = vsel %vm4394, %v4360, %v1766
        %v4490 = vsel %vm4394, %v4361, %v1768
        %v4491 = vsel %vm4394, %v4362, %v1770
        %v4492 = vsel %vm4394, %v4363, %v1772
        %v4493 = vsel %vm4394, %v4364, %v1774
        %v4494 = vsel %vm4394, %v4365, %v1776
        %v4495 = vsel %vm4394, %v4366, %v1778
        %v4496 = vsel %vm4394, %v4367, %v1780
        %v4497 = vsel %vm4394, %v4368, %v1782
        %v4498 = vsel %vm4394, %v4369, %v1784
        %v4499 = vsel %vm4394, %v4370, %v1786
        %v4500 = vsel %vm4394, %v4371, %v1788
        %v4501 = vsel %vm4394, %v4372, %v1790
        %v4502 = vsel %vm4394, %v4373, %v1792
        %v4503 = vsel %vm4394, %v4374, %v1794
        %v4504 = vsel %vm4394, %v4375, %v1796
        %v4505 = vsel %vm4394, %v4376, %v1798
        %v4506 = vsel %vm4394, %v4377, %v1800
        %v4507 = vsel %vm4394, %v4378, %v1802
        %v4508 = vsel %vm4394, %v4379, %v1804
        %v4509 = vsel %vm4394, %v4380, %v1806
        %v4510 = vsel %vm4394, %v4381, %v1808
        %v4511 = vsel %vm4394, %v4382, %v1810
        %v4512 = vsel %vm4394, %v4383, %v1812
        %v4513 = vsel %vm4394, %v4384, %v1814
        %v4514 = vsel %vm4394, %v4385, %v1816
        %v4515 = vsel %vm4394, %v4386, %v1818
        %v4516 = vsel %vm4394, %v4387, %v1820
        %v4517 = vsel %vm4394, %v4388, %v1822
        %v4518 = vsel %vm4394, %v4389, %v1824
        %v4519 = vsel %vm4394, %v4390, %v1826
        %v4520 = vsel %vm4394, %v4391, %v1828
        %v4521 = vsel %vm4394, %v4392, %v1830
        %v4522 = vsel %vm4394, %v4393, %v1832
        %vm4523 = vcmask 97280
        %v4524 = vsel %vm4523, %v4395, %v1962
        %v4525 = vsel %vm4523, %v4396, %v1964
        %v4526 = vsel %vm4523, %v4397, %v1966
        %v4527 = vsel %vm4523, %v4398, %v1968
        %v4528 = vsel %vm4523, %v4399, %v1970
        %v4529 = vsel %vm4523, %v4400, %v1972
        %v4530 = vsel %vm4523, %v4401, %v1974
        %v4531 = vsel %vm4523, %v4402, %v1976
        %v4532 = vsel %vm4523, %v4403, %v1978
        %v4533 = vsel %vm4523, %v4404, %v1980
        %v4534 = vsel %vm4523, %v4405, %v1982
        %v4535 = vsel %vm4523, %v4406, %v1984
        %v4536 = vsel %vm4523, %v4407, %v1986
        %v4537 = vsel %vm4523, %v4408, %v1988
        %v4538 = vsel %vm4523, %v4409, %v1990
        %v4539 = vsel %vm4523, %v4410, %v1992
        %v4540 = vsel %vm4523, %v4411, %v1994
        %v4541 = vsel %vm4523, %v4412, %v1996
        %v4542 = vsel %vm4523, %v4413, %v1998
        %v4543 = vsel %vm4523, %v4414, %v2000
        %v4544 = vsel %vm4523, %v4415, %v2002
        %v4545 = vsel %vm4523, %v4416, %v2004
        %v4546 = vsel %vm4523, %v4417, %v2006
        %v4547 = vsel %vm4523, %v4418, %v2008
        %v4548 = vsel %vm4523, %v4419, %v2010
        %v4549 = vsel %vm4523, %v4420, %v2012
        %v4550 = vsel %vm4523, %v4421, %v2014
        %v4551 = vsel %vm4523, %v4422, %v2016
        %v4552 = vsel %vm4523, %v4423, %v2018
        %v4553 = vsel %vm4523, %v4424, %v2020
        %v4554 = vsel %vm4523, %v4425, %v2022
        %v4555 = vsel %vm4523, %v4426, %v2024
        %v4556 = vsel %vm4523, %v4427, %v2026
        %v4557 = vsel %vm4523, %v4428, %v2028
        %v4558 = vsel %vm4523, %v4429, %v2030
        %v4559 = vsel %vm4523, %v4430, %v2032
        %v4560 = vsel %vm4523, %v4431, %v2034
        %v4561 = vsel %vm4523, %v4432, %v2036
        %v4562 = vsel %vm4523, %v4433, %v2038
        %v4563 = vsel %vm4523, %v4434, %v2040
        %v4564 = vsel %vm4523, %v4435, %v2042
        %v4565 = vsel %vm4523, %v4436, %v2044
        %v4566 = vsel %vm4523, %v4437, %v2046
        %v4567 = vsel %vm4523, %v4438, %v2048
        %v4568 = vsel %vm4523, %v4439, %v2050
        %v4569 = vsel %vm4523, %v4440, %v2052
        %v4570 = vsel %vm4523, %v4441, %v2054
        %v4571 = vsel %vm4523, %v4442, %v2056
        %v4572 = vsel %vm4523, %v4443, %v2058
        %v4573 = vsel %vm4523, %v4444, %v2060
        %v4574 = vsel %vm4523, %v4445, %v2062
        %v4575 = vsel %vm4523, %v4446, %v2064
        %v4576 = vsel %vm4523, %v4447, %v2066
        %v4577 = vsel %vm4523, %v4448, %v2068
        %v4578 = vsel %vm4523, %v4449, %v2070
        %v4579 = vsel %vm4523, %v4450, %v2072
        %v4580 = vsel %vm4523, %v4451, %v2074
        %v4581 = vsel %vm4523, %v4452, %v2076
        %v4582 = vsel %vm4523, %v4453, %v2078
        %v4583 = vsel %vm4523, %v4454, %v2080
        %v4584 = vsel %vm4523, %v4455, %v2082
        %v4585 = vsel %vm4523, %v4456, %v2084
        %v4586 = vsel %vm4523, %v4457, %v2086
        %v4587 = vsel %vm4523, %v4458, %v2088
        %v4588 = vsel %vm4523, %v4459, %v2090
        %v4589 = vsel %vm4523, %v4460, %v2092
        %v4590 = vsel %vm4523, %v4461, %v2094
        %v4591 = vsel %vm4523, %v4462, %v2096
        %v4592 = vsel %vm4523, %v4463, %v2098
        %v4593 = vsel %vm4523, %v4464, %v2100
        %v4594 = vsel %vm4523, %v4465, %v2102
        %v4595 = vsel %vm4523, %v4466, %v2104
        %v4596 = vsel %vm4523, %v4467, %v2106
        %v4597 = vsel %vm4523, %v4468, %v2108
        %v4598 = vsel %vm4523, %v4469, %v2110
        %v4599 = vsel %vm4523, %v4470, %v2112
        %v4600 = vsel %vm4523, %v4471, %v2114
        %v4601 = vsel %vm4523, %v4472, %v2116
        %v4602 = vsel %vm4523, %v4473, %v2118
        %v4603 = vsel %vm4523, %v4474, %v2120
        %v4604 = vsel %vm4523, %v4475, %v2122
        %v4605 = vsel %vm4523, %v4476, %v2124
        %v4606 = vsel %vm4523, %v4477, %v2126
        %v4607 = vsel %vm4523, %v4478, %v2128
        %v4608 = vsel %vm4523, %v4479, %v2130
        %v4609 = vsel %vm4523, %v4480, %v2132
        %v4610 = vsel %vm4523, %v4481, %v2134
        %v4611 = vsel %vm4523, %v4482, %v2136
        %v4612 = vsel %vm4523, %v4483, %v2138
        %v4613 = vsel %vm4523, %v4484, %v2140
        %v4614 = vsel %vm4523, %v4485, %v2142
        %v4615 = vsel %vm4523, %v4486, %v2144
        %v4616 = vsel %vm4523, %v4487, %v2146
        %v4617 = vsel %vm4523, %v4488, %v2148
        %v4618 = vsel %vm4523, %v4489, %v2150
        %v4619 = vsel %vm4523, %v4490, %v2152
        %v4620 = vsel %vm4523, %v4491, %v2154
        %v4621 = vsel %vm4523, %v4492, %v2156
        %v4622 = vsel %vm4523, %v4493, %v2158
        %v4623 = vsel %vm4523, %v4494, %v2160
        %v4624 = vsel %vm4523, %v4495, %v2162
        %v4625 = vsel %vm4523, %v4496, %v2164
        %v4626 = vsel %vm4523, %v4497, %v2166
        %v4627 = vsel %vm4523, %v4498, %v2168
        %v4628 = vsel %vm4523, %v4499, %v2170
        %v4629 = vsel %vm4523, %v4500, %v2172
        %v4630 = vsel %vm4523, %v4501, %v2174
        %v4631 = vsel %vm4523, %v4502, %v2176
        %v4632 = vsel %vm4523, %v4503, %v2178
        %v4633 = vsel %vm4523, %v4504, %v2180
        %v4634 = vsel %vm4523, %v4505, %v2182
        %v4635 = vsel %vm4523, %v4506, %v2184
        %v4636 = vsel %vm4523, %v4507, %v2186
        %v4637 = vsel %vm4523, %v4508, %v2188
        %v4638 = vsel %vm4523, %v4509, %v2190
        %v4639 = vsel %vm4523, %v4510, %v2192
        %v4640 = vsel %vm4523, %v4511, %v2194
        %v4641 = vsel %vm4523, %v4512, %v2196
        %v4642 = vsel %vm4523, %v4513, %v2198
        %v4643 = vsel %vm4523, %v4514, %v2200
        %v4644 = vsel %vm4523, %v4515, %v2202
        %v4645 = vsel %vm4523, %v4516, %v2204
        %v4646 = vsel %vm4523, %v4517, %v2206
        %v4647 = vsel %vm4523, %v4518, %v2208
        %v4648 = vsel %vm4523, %v4519, %v2210
        %v4649 = vsel %vm4523, %v4520, %v2212
        %v4650 = vsel %vm4523, %v4521, %v2214
        %v4651 = vsel %vm4523, %v4522, %v2216
        %vm4652 = vcmask 130048
        %v4653 = vsel %vm4652, %v4524, %v2346
        %v4654 = vsel %vm4652, %v4525, %v2348
        %v4655 = vsel %vm4652, %v4526, %v2350
        %v4656 = vsel %vm4652, %v4527, %v2352
        %v4657 = vsel %vm4652, %v4528, %v2354
        %v4658 = vsel %vm4652, %v4529, %v2356
        %v4659 = vsel %vm4652, %v4530, %v2358
        %v4660 = vsel %vm4652, %v4531, %v2360
        %v4661 = vsel %vm4652, %v4532, %v2362
        %v4662 = vsel %vm4652, %v4533, %v2364
        %v4663 = vsel %vm4652, %v4534, %v2366
        %v4664 = vsel %vm4652, %v4535, %v2368
        %v4665 = vsel %vm4652, %v4536, %v2370
        %v4666 = vsel %vm4652, %v4537, %v2372
        %v4667 = vsel %vm4652, %v4538, %v2374
        %v4668 = vsel %vm4652, %v4539, %v2376
        %v4669 = vsel %vm4652, %v4540, %v2378
        %v4670 = vsel %vm4652, %v4541, %v2380
        %v4671 = vsel %vm4652, %v4542, %v2382
        %v4672 = vsel %vm4652, %v4543, %v2384
        %v4673 = vsel %vm4652, %v4544, %v2386
        %v4674 = vsel %vm4652, %v4545, %v2388
        %v4675 = vsel %vm4652, %v4546, %v2390
        %v4676 = vsel %vm4652, %v4547, %v2392
        %v4677 = vsel %vm4652, %v4548, %v2394
        %v4678 = vsel %vm4652, %v4549, %v2396
        %v4679 = vsel %vm4652, %v4550, %v2398
        %v4680 = vsel %vm4652, %v4551, %v2400
        %v4681 = vsel %vm4652, %v4552, %v2402
        %v4682 = vsel %vm4652, %v4553, %v2404
        %v4683 = vsel %vm4652, %v4554, %v2406
        %v4684 = vsel %vm4652, %v4555, %v2408
        %v4685 = vsel %vm4652, %v4556, %v2410
        %v4686 = vsel %vm4652, %v4557, %v2412
        %v4687 = vsel %vm4652, %v4558, %v2414
        %v4688 = vsel %vm4652, %v4559, %v2416
        %v4689 = vsel %vm4652, %v4560, %v2418
        %v4690 = vsel %vm4652, %v4561, %v2420
        %v4691 = vsel %vm4652, %v4562, %v2422
        %v4692 = vsel %vm4652, %v4563, %v2424
        %v4693 = vsel %vm4652, %v4564, %v2426
        %v4694 = vsel %vm4652, %v4565, %v2428
        %v4695 = vsel %vm4652, %v4566, %v2430
        %v4696 = vsel %vm4652, %v4567, %v2432
        %v4697 = vsel %vm4652, %v4568, %v2434
        %v4698 = vsel %vm4652, %v4569, %v2436
        %v4699 = vsel %vm4652, %v4570, %v2438
        %v4700 = vsel %vm4652, %v4571, %v2440
        %v4701 = vsel %vm4652, %v4572, %v2442
        %v4702 = vsel %vm4652, %v4573, %v2444
        %v4703 = vsel %vm4652, %v4574, %v2446
        %v4704 = vsel %vm4652, %v4575, %v2448
        %v4705 = vsel %vm4652, %v4576, %v2450
        %v4706 = vsel %vm4652, %v4577, %v2452
        %v4707 = vsel %vm4652, %v4578, %v2454
        %v4708 = vsel %vm4652, %v4579, %v2456
        %v4709 = vsel %vm4652, %v4580, %v2458
        %v4710 = vsel %vm4652, %v4581, %v2460
        %v4711 = vsel %vm4652, %v4582, %v2462
        %v4712 = vsel %vm4652, %v4583, %v2464
        %v4713 = vsel %vm4652, %v4584, %v2466
        %v4714 = vsel %vm4652, %v4585, %v2468
        %v4715 = vsel %vm4652, %v4586, %v2470
        %v4716 = vsel %vm4652, %v4587, %v2472
        %v4717 = vsel %vm4652, %v4588, %v2474
        %v4718 = vsel %vm4652, %v4589, %v2476
        %v4719 = vsel %vm4652, %v4590, %v2478
        %v4720 = vsel %vm4652, %v4591, %v2480
        %v4721 = vsel %vm4652, %v4592, %v2482
        %v4722 = vsel %vm4652, %v4593, %v2484
        %v4723 = vsel %vm4652, %v4594, %v2486
        %v4724 = vsel %vm4652, %v4595, %v2488
        %v4725 = vsel %vm4652, %v4596, %v2490
        %v4726 = vsel %vm4652, %v4597, %v2492
        %v4727 = vsel %vm4652, %v4598, %v2494
        %v4728 = vsel %vm4652, %v4599, %v2496
        %v4729 = vsel %vm4652, %v4600, %v2498
        %v4730 = vsel %vm4652, %v4601, %v2500
        %v4731 = vsel %vm4652, %v4602, %v2502
        %v4732 = vsel %vm4652, %v4603, %v2504
        %v4733 = vsel %vm4652, %v4604, %v2506
        %v4734 = vsel %vm4652, %v4605, %v2508
        %v4735 = vsel %vm4652, %v4606, %v2510
        %v4736 = vsel %vm4652, %v4607, %v2512
        %v4737 = vsel %vm4652, %v4608, %v2514
        %v4738 = vsel %vm4652, %v4609, %v2516
        %v4739 = vsel %vm4652, %v4610, %v2518
        %v4740 = vsel %vm4652, %v4611, %v2520
        %v4741 = vsel %vm4652, %v4612, %v2522
        %v4742 = vsel %vm4652, %v4613, %v2524
        %v4743 = vsel %vm4652, %v4614, %v2526
        %v4744 = vsel %vm4652, %v4615, %v2528
        %v4745 = vsel %vm4652, %v4616, %v2530
        %v4746 = vsel %vm4652, %v4617, %v2532
        %v4747 = vsel %vm4652, %v4618, %v2534
        %v4748 = vsel %vm4652, %v4619, %v2536
        %v4749 = vsel %vm4652, %v4620, %v2538
        %v4750 = vsel %vm4652, %v4621, %v2540
        %v4751 = vsel %vm4652, %v4622, %v2542
        %v4752 = vsel %vm4652, %v4623, %v2544
        %v4753 = vsel %vm4652, %v4624, %v2546
        %v4754 = vsel %vm4652, %v4625, %v2548
        %v4755 = vsel %vm4652, %v4626, %v2550
        %v4756 = vsel %vm4652, %v4627, %v2552
        %v4757 = vsel %vm4652, %v4628, %v2554
        %v4758 = vsel %vm4652, %v4629, %v2556
        %v4759 = vsel %vm4652, %v4630, %v2558
        %v4760 = vsel %vm4652, %v4631, %v2560
        %v4761 = vsel %vm4652, %v4632, %v2562
        %v4762 = vsel %vm4652, %v4633, %v2564
        %v4763 = vsel %vm4652, %v4634, %v2566
        %v4764 = vsel %vm4652, %v4635, %v2568
        %v4765 = vsel %vm4652, %v4636, %v2570
        %v4766 = vsel %vm4652, %v4637, %v2572
        %v4767 = vsel %vm4652, %v4638, %v2574
        %v4768 = vsel %vm4652, %v4639, %v2576
        %v4769 = vsel %vm4652, %v4640, %v2578
        %v4770 = vsel %vm4652, %v4641, %v2580
        %v4771 = vsel %vm4652, %v4642, %v2582
        %v4772 = vsel %vm4652, %v4643, %v2584
        %v4773 = vsel %vm4652, %v4644, %v2586
        %v4774 = vsel %vm4652, %v4645, %v2588
        %v4775 = vsel %vm4652, %v4646, %v2590
        %v4776 = vsel %vm4652, %v4647, %v2592
        %v4777 = vsel %vm4652, %v4648, %v2594
        %v4778 = vsel %vm4652, %v4649, %v2596
        %v4779 = vsel %vm4652, %v4650, %v2598
        %v4780 = vsel %vm4652, %v4651, %v2600
        %vm4781 = vcmask 162816
        %v4782 = vsel %vm4781, %v4653, %v2730
        %v4783 = vsel %vm4781, %v4654, %v2732
        %v4784 = vsel %vm4781, %v4655, %v2734
        %v4785 = vsel %vm4781, %v4656, %v2736
        %v4786 = vsel %vm4781, %v4657, %v2738
        %v4787 = vsel %vm4781, %v4658, %v2740
        %v4788 = vsel %vm4781, %v4659, %v2742
        %v4789 = vsel %vm4781, %v4660, %v2744
        %v4790 = vsel %vm4781, %v4661, %v2746
        %v4791 = vsel %vm4781, %v4662, %v2748
        %v4792 = vsel %vm4781, %v4663, %v2750
        %v4793 = vsel %vm4781, %v4664, %v2752
        %v4794 = vsel %vm4781, %v4665, %v2754
        %v4795 = vsel %vm4781, %v4666, %v2756
        %v4796 = vsel %vm4781, %v4667, %v2758
        %v4797 = vsel %vm4781, %v4668, %v2760
        %v4798 = vsel %vm4781, %v4669, %v2762
        %v4799 = vsel %vm4781, %v4670, %v2764
        %v4800 = vsel %vm4781, %v4671, %v2766
        %v4801 = vsel %vm4781, %v4672, %v2768
        %v4802 = vsel %vm4781, %v4673, %v2770
        %v4803 = vsel %vm4781, %v4674, %v2772
        %v4804 = vsel %vm4781, %v4675, %v2774
        %v4805 = vsel %vm4781, %v4676, %v2776
        %v4806 = vsel %vm4781, %v4677, %v2778
        %v4807 = vsel %vm4781, %v4678, %v2780
        %v4808 = vsel %vm4781, %v4679, %v2782
        %v4809 = vsel %vm4781, %v4680, %v2784
        %v4810 = vsel %vm4781, %v4681, %v2786
        %v4811 = vsel %vm4781, %v4682, %v2788
        %v4812 = vsel %vm4781, %v4683, %v2790
        %v4813 = vsel %vm4781, %v4684, %v2792
        %v4814 = vsel %vm4781, %v4685, %v2794
        %v4815 = vsel %vm4781, %v4686, %v2796
        %v4816 = vsel %vm4781, %v4687, %v2798
        %v4817 = vsel %vm4781, %v4688, %v2800
        %v4818 = vsel %vm4781, %v4689, %v2802
        %v4819 = vsel %vm4781, %v4690, %v2804
        %v4820 = vsel %vm4781, %v4691, %v2806
        %v4821 = vsel %vm4781, %v4692, %v2808
        %v4822 = vsel %vm4781, %v4693, %v2810
        %v4823 = vsel %vm4781, %v4694, %v2812
        %v4824 = vsel %vm4781, %v4695, %v2814
        %v4825 = vsel %vm4781, %v4696, %v2816
        %v4826 = vsel %vm4781, %v4697, %v2818
        %v4827 = vsel %vm4781, %v4698, %v2820
        %v4828 = vsel %vm4781, %v4699, %v2822
        %v4829 = vsel %vm4781, %v4700, %v2824
        %v4830 = vsel %vm4781, %v4701, %v2826
        %v4831 = vsel %vm4781, %v4702, %v2828
        %v4832 = vsel %vm4781, %v4703, %v2830
        %v4833 = vsel %vm4781, %v4704, %v2832
        %v4834 = vsel %vm4781, %v4705, %v2834
        %v4835 = vsel %vm4781, %v4706, %v2836
        %v4836 = vsel %vm4781, %v4707, %v2838
        %v4837 = vsel %vm4781, %v4708, %v2840
        %v4838 = vsel %vm4781, %v4709, %v2842
        %v4839 = vsel %vm4781, %v4710, %v2844
        %v4840 = vsel %vm4781, %v4711, %v2846
        %v4841 = vsel %vm4781, %v4712, %v2848
        %v4842 = vsel %vm4781, %v4713, %v2850
        %v4843 = vsel %vm4781, %v4714, %v2852
        %v4844 = vsel %vm4781, %v4715, %v2854
        %v4845 = vsel %vm4781, %v4716, %v2856
        %v4846 = vsel %vm4781, %v4717, %v2858
        %v4847 = vsel %vm4781, %v4718, %v2860
        %v4848 = vsel %vm4781, %v4719, %v2862
        %v4849 = vsel %vm4781, %v4720, %v2864
        %v4850 = vsel %vm4781, %v4721, %v2866
        %v4851 = vsel %vm4781, %v4722, %v2868
        %v4852 = vsel %vm4781, %v4723, %v2870
        %v4853 = vsel %vm4781, %v4724, %v2872
        %v4854 = vsel %vm4781, %v4725, %v2874
        %v4855 = vsel %vm4781, %v4726, %v2876
        %v4856 = vsel %vm4781, %v4727, %v2878
        %v4857 = vsel %vm4781, %v4728, %v2880
        %v4858 = vsel %vm4781, %v4729, %v2882
        %v4859 = vsel %vm4781, %v4730, %v2884
        %v4860 = vsel %vm4781, %v4731, %v2886
        %v4861 = vsel %vm4781, %v4732, %v2888
        %v4862 = vsel %vm4781, %v4733, %v2890
        %v4863 = vsel %vm4781, %v4734, %v2892
        %v4864 = vsel %vm4781, %v4735, %v2894
        %v4865 = vsel %vm4781, %v4736, %v2896
        %v4866 = vsel %vm4781, %v4737, %v2898
        %v4867 = vsel %vm4781, %v4738, %v2900
        %v4868 = vsel %vm4781, %v4739, %v2902
        %v4869 = vsel %vm4781, %v4740, %v2904
        %v4870 = vsel %vm4781, %v4741, %v2906
        %v4871 = vsel %vm4781, %v4742, %v2908
        %v4872 = vsel %vm4781, %v4743, %v2910
        %v4873 = vsel %vm4781, %v4744, %v2912
        %v4874 = vsel %vm4781, %v4745, %v2914
        %v4875 = vsel %vm4781, %v4746, %v2916
        %v4876 = vsel %vm4781, %v4747, %v2918
        %v4877 = vsel %vm4781, %v4748, %v2920
        %v4878 = vsel %vm4781, %v4749, %v2922
        %v4879 = vsel %vm4781, %v4750, %v2924
        %v4880 = vsel %vm4781, %v4751, %v2926
        %v4881 = vsel %vm4781, %v4752, %v2928
        %v4882 = vsel %vm4781, %v4753, %v2930
        %v4883 = vsel %vm4781, %v4754, %v2932
        %v4884 = vsel %vm4781, %v4755, %v2934
        %v4885 = vsel %vm4781, %v4756, %v2936
        %v4886 = vsel %vm4781, %v4757, %v2938
        %v4887 = vsel %vm4781, %v4758, %v2940
        %v4888 = vsel %vm4781, %v4759, %v2942
        %v4889 = vsel %vm4781, %v4760, %v2944
        %v4890 = vsel %vm4781, %v4761, %v2946
        %v4891 = vsel %vm4781, %v4762, %v2948
        %v4892 = vsel %vm4781, %v4763, %v2950
        %v4893 = vsel %vm4781, %v4764, %v2952
        %v4894 = vsel %vm4781, %v4765, %v2954
        %v4895 = vsel %vm4781, %v4766, %v2956
        %v4896 = vsel %vm4781, %v4767, %v2958
        %v4897 = vsel %vm4781, %v4768, %v2960
        %v4898 = vsel %vm4781, %v4769, %v2962
        %v4899 = vsel %vm4781, %v4770, %v2964
        %v4900 = vsel %vm4781, %v4771, %v2966
        %v4901 = vsel %vm4781, %v4772, %v2968
        %v4902 = vsel %vm4781, %v4773, %v2970
        %v4903 = vsel %vm4781, %v4774, %v2972
        %v4904 = vsel %vm4781, %v4775, %v2974
        %v4905 = vsel %vm4781, %v4776, %v2976
        %v4906 = vsel %vm4781, %v4777, %v2978
        %v4907 = vsel %vm4781, %v4778, %v2980
        %v4908 = vsel %vm4781, %v4779, %v2982
        %v4909 = vsel %vm4781, %v4780, %v2984
        %vm4910 = vcmask 195584
        %v4911 = vsel %vm4910, %v4782, %v3114
        %v4912 = vsel %vm4910, %v4783, %v3116
        %v4913 = vsel %vm4910, %v4784, %v3118
        %v4914 = vsel %vm4910, %v4785, %v3120
        %v4915 = vsel %vm4910, %v4786, %v3122
        %v4916 = vsel %vm4910, %v4787, %v3124
        %v4917 = vsel %vm4910, %v4788, %v3126
        %v4918 = vsel %vm4910, %v4789, %v3128
        %v4919 = vsel %vm4910, %v4790, %v3130
        %v4920 = vsel %vm4910, %v4791, %v3132
        %v4921 = vsel %vm4910, %v4792, %v3134
        %v4922 = vsel %vm4910, %v4793, %v3136
        %v4923 = vsel %vm4910, %v4794, %v3138
        %v4924 = vsel %vm4910, %v4795, %v3140
        %v4925 = vsel %vm4910, %v4796, %v3142
        %v4926 = vsel %vm4910, %v4797, %v3144
        %v4927 = vsel %vm4910, %v4798, %v3146
        %v4928 = vsel %vm4910, %v4799, %v3148
        %v4929 = vsel %vm4910, %v4800, %v3150
        %v4930 = vsel %vm4910, %v4801, %v3152
        %v4931 = vsel %vm4910, %v4802, %v3154
        %v4932 = vsel %vm4910, %v4803, %v3156
        %v4933 = vsel %vm4910, %v4804, %v3158
        %v4934 = vsel %vm4910, %v4805, %v3160
        %v4935 = vsel %vm4910, %v4806, %v3162
        %v4936 = vsel %vm4910, %v4807, %v3164
        %v4937 = vsel %vm4910, %v4808, %v3166
        %v4938 = vsel %vm4910, %v4809, %v3168
        %v4939 = vsel %vm4910, %v4810, %v3170
        %v4940 = vsel %vm4910, %v4811, %v3172
        %v4941 = vsel %vm4910, %v4812, %v3174
        %v4942 = vsel %vm4910, %v4813, %v3176
        %v4943 = vsel %vm4910, %v4814, %v3178
        %v4944 = vsel %vm4910, %v4815, %v3180
        %v4945 = vsel %vm4910, %v4816, %v3182
        %v4946 = vsel %vm4910, %v4817, %v3184
        %v4947 = vsel %vm4910, %v4818, %v3186
        %v4948 = vsel %vm4910, %v4819, %v3188
        %v4949 = vsel %vm4910, %v4820, %v3190
        %v4950 = vsel %vm4910, %v4821, %v3192
        %v4951 = vsel %vm4910, %v4822, %v3194
        %v4952 = vsel %vm4910, %v4823, %v3196
        %v4953 = vsel %vm4910, %v4824, %v3198
        %v4954 = vsel %vm4910, %v4825, %v3200
        %v4955 = vsel %vm4910, %v4826, %v3202
        %v4956 = vsel %vm4910, %v4827, %v3204
        %v4957 = vsel %vm4910, %v4828, %v3206
        %v4958 = vsel %vm4910, %v4829, %v3208
        %v4959 = vsel %vm4910, %v4830, %v3210
        %v4960 = vsel %vm4910, %v4831, %v3212
        %v4961 = vsel %vm4910, %v4832, %v3214
        %v4962 = vsel %vm4910, %v4833, %v3216
        %v4963 = vsel %vm4910, %v4834, %v3218
        %v4964 = vsel %vm4910, %v4835, %v3220
        %v4965 = vsel %vm4910, %v4836, %v3222
        %v4966 = vsel %vm4910, %v4837, %v3224
        %v4967 = vsel %vm4910, %v4838, %v3226
        %v4968 = vsel %vm4910, %v4839, %v3228
        %v4969 = vsel %vm4910, %v4840, %v3230
        %v4970 = vsel %vm4910, %v4841, %v3232
        %v4971 = vsel %vm4910, %v4842, %v3234
        %v4972 = vsel %vm4910, %v4843, %v3236
        %v4973 = vsel %vm4910, %v4844, %v3238
        %v4974 = vsel %vm4910, %v4845, %v3240
        %v4975 = vsel %vm4910, %v4846, %v3242
        %v4976 = vsel %vm4910, %v4847, %v3244
        %v4977 = vsel %vm4910, %v4848, %v3246
        %v4978 = vsel %vm4910, %v4849, %v3248
        %v4979 = vsel %vm4910, %v4850, %v3250
        %v4980 = vsel %vm4910, %v4851, %v3252
        %v4981 = vsel %vm4910, %v4852, %v3254
        %v4982 = vsel %vm4910, %v4853, %v3256
        %v4983 = vsel %vm4910, %v4854, %v3258
        %v4984 = vsel %vm4910, %v4855, %v3260
        %v4985 = vsel %vm4910, %v4856, %v3262
        %v4986 = vsel %vm4910, %v4857, %v3264
        %v4987 = vsel %vm4910, %v4858, %v3266
        %v4988 = vsel %vm4910, %v4859, %v3268
        %v4989 = vsel %vm4910, %v4860, %v3270
        %v4990 = vsel %vm4910, %v4861, %v3272
        %v4991 = vsel %vm4910, %v4862, %v3274
        %v4992 = vsel %vm4910, %v4863, %v3276
        %v4993 = vsel %vm4910, %v4864, %v3278
        %v4994 = vsel %vm4910, %v4865, %v3280
        %v4995 = vsel %vm4910, %v4866, %v3282
        %v4996 = vsel %vm4910, %v4867, %v3284
        %v4997 = vsel %vm4910, %v4868, %v3286
        %v4998 = vsel %vm4910, %v4869, %v3288
        %v4999 = vsel %vm4910, %v4870, %v3290
        %v5000 = vsel %vm4910, %v4871, %v3292
        %v5001 = vsel %vm4910, %v4872, %v3294
        %v5002 = vsel %vm4910, %v4873, %v3296
        %v5003 = vsel %vm4910, %v4874, %v3298
        %v5004 = vsel %vm4910, %v4875, %v3300
        %v5005 = vsel %vm4910, %v4876, %v3302
        %v5006 = vsel %vm4910, %v4877, %v3304
        %v5007 = vsel %vm4910, %v4878, %v3306
        %v5008 = vsel %vm4910, %v4879, %v3308
        %v5009 = vsel %vm4910, %v4880, %v3310
        %v5010 = vsel %vm4910, %v4881, %v3312
        %v5011 = vsel %vm4910, %v4882, %v3314
        %v5012 = vsel %vm4910, %v4883, %v3316
        %v5013 = vsel %vm4910, %v4884, %v3318
        %v5014 = vsel %vm4910, %v4885, %v3320
        %v5015 = vsel %vm4910, %v4886, %v3322
        %v5016 = vsel %vm4910, %v4887, %v3324
        %v5017 = vsel %vm4910, %v4888, %v3326
        %v5018 = vsel %vm4910, %v4889, %v3328
        %v5019 = vsel %vm4910, %v4890, %v3330
        %v5020 = vsel %vm4910, %v4891, %v3332
        %v5021 = vsel %vm4910, %v4892, %v3334
        %v5022 = vsel %vm4910, %v4893, %v3336
        %v5023 = vsel %vm4910, %v4894, %v3338
        %v5024 = vsel %vm4910, %v4895, %v3340
        %v5025 = vsel %vm4910, %v4896, %v3342
        %v5026 = vsel %vm4910, %v4897, %v3344
        %v5027 = vsel %vm4910, %v4898, %v3346
        %v5028 = vsel %vm4910, %v4899, %v3348
        %v5029 = vsel %vm4910, %v4900, %v3350
        %v5030 = vsel %vm4910, %v4901, %v3352
        %v5031 = vsel %vm4910, %v4902, %v3354
        %v5032 = vsel %vm4910, %v4903, %v3356
        %v5033 = vsel %vm4910, %v4904, %v3358
        %v5034 = vsel %vm4910, %v4905, %v3360
        %v5035 = vsel %vm4910, %v4906, %v3362
        %v5036 = vsel %vm4910, %v4907, %v3364
        %v5037 = vsel %vm4910, %v4908, %v3366
        %v5038 = vsel %vm4910, %v4909, %v3368
        %vm5039 = vcmask 228352
        %v5040 = vsel %vm5039, %v4911, %v3498
        %v5041 = vsel %vm5039, %v4912, %v3500
        %v5042 = vsel %vm5039, %v4913, %v3502
        %v5043 = vsel %vm5039, %v4914, %v3504
        %v5044 = vsel %vm5039, %v4915, %v3506
        %v5045 = vsel %vm5039, %v4916, %v3508
        %v5046 = vsel %vm5039, %v4917, %v3510
        %v5047 = vsel %vm5039, %v4918, %v3512
        %v5048 = vsel %vm5039, %v4919, %v3514
        %v5049 = vsel %vm5039, %v4920, %v3516
        %v5050 = vsel %vm5039, %v4921, %v3518
        %v5051 = vsel %vm5039, %v4922, %v3520
        %v5052 = vsel %vm5039, %v4923, %v3522
        %v5053 = vsel %vm5039, %v4924, %v3524
        %v5054 = vsel %vm5039, %v4925, %v3526
        %v5055 = vsel %vm5039, %v4926, %v3528
        %v5056 = vsel %vm5039, %v4927, %v3530
        %v5057 = vsel %vm5039, %v4928, %v3532
        %v5058 = vsel %vm5039, %v4929, %v3534
        %v5059 = vsel %vm5039, %v4930, %v3536
        %v5060 = vsel %vm5039, %v4931, %v3538
        %v5061 = vsel %vm5039, %v4932, %v3540
        %v5062 = vsel %vm5039, %v4933, %v3542
        %v5063 = vsel %vm5039, %v4934, %v3544
        %v5064 = vsel %vm5039, %v4935, %v3546
        %v5065 = vsel %vm5039, %v4936, %v3548
        %v5066 = vsel %vm5039, %v4937, %v3550
        %v5067 = vsel %vm5039, %v4938, %v3552
        %v5068 = vsel %vm5039, %v4939, %v3554
        %v5069 = vsel %vm5039, %v4940, %v3556
        %v5070 = vsel %vm5039, %v4941, %v3558
        %v5071 = vsel %vm5039, %v4942, %v3560
        %v5072 = vsel %vm5039, %v4943, %v3562
        %v5073 = vsel %vm5039, %v4944, %v3564
        %v5074 = vsel %vm5039, %v4945, %v3566
        %v5075 = vsel %vm5039, %v4946, %v3568
        %v5076 = vsel %vm5039, %v4947, %v3570
        %v5077 = vsel %vm5039, %v4948, %v3572
        %v5078 = vsel %vm5039, %v4949, %v3574
        %v5079 = vsel %vm5039, %v4950, %v3576
        %v5080 = vsel %vm5039, %v4951, %v3578
        %v5081 = vsel %vm5039, %v4952, %v3580
        %v5082 = vsel %vm5039, %v4953, %v3582
        %v5083 = vsel %vm5039, %v4954, %v3584
        %v5084 = vsel %vm5039, %v4955, %v3586
        %v5085 = vsel %vm5039, %v4956, %v3588
        %v5086 = vsel %vm5039, %v4957, %v3590
        %v5087 = vsel %vm5039, %v4958, %v3592
        %v5088 = vsel %vm5039, %v4959, %v3594
        %v5089 = vsel %vm5039, %v4960, %v3596
        %v5090 = vsel %vm5039, %v4961, %v3598
        %v5091 = vsel %vm5039, %v4962, %v3600
        %v5092 = vsel %vm5039, %v4963, %v3602
        %v5093 = vsel %vm5039, %v4964, %v3604
        %v5094 = vsel %vm5039, %v4965, %v3606
        %v5095 = vsel %vm5039, %v4966, %v3608
        %v5096 = vsel %vm5039, %v4967, %v3610
        %v5097 = vsel %vm5039, %v4968, %v3612
        %v5098 = vsel %vm5039, %v4969, %v3614
        %v5099 = vsel %vm5039, %v4970, %v3616
        %v5100 = vsel %vm5039, %v4971, %v3618
        %v5101 = vsel %vm5039, %v4972, %v3620
        %v5102 = vsel %vm5039, %v4973, %v3622
        %v5103 = vsel %vm5039, %v4974, %v3624
        %v5104 = vsel %vm5039, %v4975, %v3626
        %v5105 = vsel %vm5039, %v4976, %v3628
        %v5106 = vsel %vm5039, %v4977, %v3630
        %v5107 = vsel %vm5039, %v4978, %v3632
        %v5108 = vsel %vm5039, %v4979, %v3634
        %v5109 = vsel %vm5039, %v4980, %v3636
        %v5110 = vsel %vm5039, %v4981, %v3638
        %v5111 = vsel %vm5039, %v4982, %v3640
        %v5112 = vsel %vm5039, %v4983, %v3642
        %v5113 = vsel %vm5039, %v4984, %v3644
        %v5114 = vsel %vm5039, %v4985, %v3646
        %v5115 = vsel %vm5039, %v4986, %v3648
        %v5116 = vsel %vm5039, %v4987, %v3650
        %v5117 = vsel %vm5039, %v4988, %v3652
        %v5118 = vsel %vm5039, %v4989, %v3654
        %v5119 = vsel %vm5039, %v4990, %v3656
        %v5120 = vsel %vm5039, %v4991, %v3658
        %v5121 = vsel %vm5039, %v4992, %v3660
        %v5122 = vsel %vm5039, %v4993, %v3662
        %v5123 = vsel %vm5039, %v4994, %v3664
        %v5124 = vsel %vm5039, %v4995, %v3666
        %v5125 = vsel %vm5039, %v4996, %v3668
        %v5126 = vsel %vm5039, %v4997, %v3670
        %v5127 = vsel %vm5039, %v4998, %v3672
        %v5128 = vsel %vm5039, %v4999, %v3674
        %v5129 = vsel %vm5039, %v5000, %v3676
        %v5130 = vsel %vm5039, %v5001, %v3678
        %v5131 = vsel %vm5039, %v5002, %v3680
        %v5132 = vsel %vm5039, %v5003, %v3682
        %v5133 = vsel %vm5039, %v5004, %v3684
        %v5134 = vsel %vm5039, %v5005, %v3686
        %v5135 = vsel %vm5039, %v5006, %v3688
        %v5136 = vsel %vm5039, %v5007, %v3690
        %v5137 = vsel %vm5039, %v5008, %v3692
        %v5138 = vsel %vm5039, %v5009, %v3694
        %v5139 = vsel %vm5039, %v5010, %v3696
        %v5140 = vsel %vm5039, %v5011, %v3698
        %v5141 = vsel %vm5039, %v5012, %v3700
        %v5142 = vsel %vm5039, %v5013, %v3702
        %v5143 = vsel %vm5039, %v5014, %v3704
        %v5144 = vsel %vm5039, %v5015, %v3706
        %v5145 = vsel %vm5039, %v5016, %v3708
        %v5146 = vsel %vm5039, %v5017, %v3710
        %v5147 = vsel %vm5039, %v5018, %v3712
        %v5148 = vsel %vm5039, %v5019, %v3714
        %v5149 = vsel %vm5039, %v5020, %v3716
        %v5150 = vsel %vm5039, %v5021, %v3718
        %v5151 = vsel %vm5039, %v5022, %v3720
        %v5152 = vsel %vm5039, %v5023, %v3722
        %v5153 = vsel %vm5039, %v5024, %v3724
        %v5154 = vsel %vm5039, %v5025, %v3726
        %v5155 = vsel %vm5039, %v5026, %v3728
        %v5156 = vsel %vm5039, %v5027, %v3730
        %v5157 = vsel %vm5039, %v5028, %v3732
        %v5158 = vsel %vm5039, %v5029, %v3734
        %v5159 = vsel %vm5039, %v5030, %v3736
        %v5160 = vsel %vm5039, %v5031, %v3738
        %v5161 = vsel %vm5039, %v5032, %v3740
        %v5162 = vsel %vm5039, %v5033, %v3742
        %v5163 = vsel %vm5039, %v5034, %v3744
        %v5164 = vsel %vm5039, %v5035, %v3746
        %v5165 = vsel %vm5039, %v5036, %v3748
        %v5166 = vsel %vm5039, %v5037, %v3750
        %v5167 = vsel %vm5039, %v5038, %v3752
        %vm5168 = vcmask 261120
        %v5169 = vsel %vm5168, %v5040, %v3882
        %v5170 = vsel %vm5168, %v5041, %v3884
        %v5171 = vsel %vm5168, %v5042, %v3886
        %v5172 = vsel %vm5168, %v5043, %v3888
        %v5173 = vsel %vm5168, %v5044, %v3890
        %v5174 = vsel %vm5168, %v5045, %v3892
        %v5175 = vsel %vm5168, %v5046, %v3894
        %v5176 = vsel %vm5168, %v5047, %v3896
        %v5177 = vsel %vm5168, %v5048, %v3898
        %v5178 = vsel %vm5168, %v5049, %v3900
        %v5179 = vsel %vm5168, %v5050, %v3902
        %v5180 = vsel %vm5168, %v5051, %v3904
        %v5181 = vsel %vm5168, %v5052, %v3906
        %v5182 = vsel %vm5168, %v5053, %v3908
        %v5183 = vsel %vm5168, %v5054, %v3910
        %v5184 = vsel %vm5168, %v5055, %v3912
        %v5185 = vsel %vm5168, %v5056, %v3914
        %v5186 = vsel %vm5168, %v5057, %v3916
        %v5187 = vsel %vm5168, %v5058, %v3918
        %v5188 = vsel %vm5168, %v5059, %v3920
        %v5189 = vsel %vm5168, %v5060, %v3922
        %v5190 = vsel %vm5168, %v5061, %v3924
        %v5191 = vsel %vm5168, %v5062, %v3926
        %v5192 = vsel %vm5168, %v5063, %v3928
        %v5193 = vsel %vm5168, %v5064, %v3930
        %v5194 = vsel %vm5168, %v5065, %v3932
        %v5195 = vsel %vm5168, %v5066, %v3934
        %v5196 = vsel %vm5168, %v5067, %v3936
        %v5197 = vsel %vm5168, %v5068, %v3938
        %v5198 = vsel %vm5168, %v5069, %v3940
        %v5199 = vsel %vm5168, %v5070, %v3942
        %v5200 = vsel %vm5168, %v5071, %v3944
        %v5201 = vsel %vm5168, %v5072, %v3946
        %v5202 = vsel %vm5168, %v5073, %v3948
        %v5203 = vsel %vm5168, %v5074, %v3950
        %v5204 = vsel %vm5168, %v5075, %v3952
        %v5205 = vsel %vm5168, %v5076, %v3954
        %v5206 = vsel %vm5168, %v5077, %v3956
        %v5207 = vsel %vm5168, %v5078, %v3958
        %v5208 = vsel %vm5168, %v5079, %v3960
        %v5209 = vsel %vm5168, %v5080, %v3962
        %v5210 = vsel %vm5168, %v5081, %v3964
        %v5211 = vsel %vm5168, %v5082, %v3966
        %v5212 = vsel %vm5168, %v5083, %v3968
        %v5213 = vsel %vm5168, %v5084, %v3970
        %v5214 = vsel %vm5168, %v5085, %v3972
        %v5215 = vsel %vm5168, %v5086, %v3974
        %v5216 = vsel %vm5168, %v5087, %v3976
        %v5217 = vsel %vm5168, %v5088, %v3978
        %v5218 = vsel %vm5168, %v5089, %v3980
        %v5219 = vsel %vm5168, %v5090, %v3982
        %v5220 = vsel %vm5168, %v5091, %v3984
        %v5221 = vsel %vm5168, %v5092, %v3986
        %v5222 = vsel %vm5168, %v5093, %v3988
        %v5223 = vsel %vm5168, %v5094, %v3990
        %v5224 = vsel %vm5168, %v5095, %v3992
        %v5225 = vsel %vm5168, %v5096, %v3994
        %v5226 = vsel %vm5168, %v5097, %v3996
        %v5227 = vsel %vm5168, %v5098, %v3998
        %v5228 = vsel %vm5168, %v5099, %v4000
        %v5229 = vsel %vm5168, %v5100, %v4002
        %v5230 = vsel %vm5168, %v5101, %v4004
        %v5231 = vsel %vm5168, %v5102, %v4006
        %v5232 = vsel %vm5168, %v5103, %v4008
        %v5233 = vsel %vm5168, %v5104, %v4010
        %v5234 = vsel %vm5168, %v5105, %v4012
        %v5235 = vsel %vm5168, %v5106, %v4014
        %v5236 = vsel %vm5168, %v5107, %v4016
        %v5237 = vsel %vm5168, %v5108, %v4018
        %v5238 = vsel %vm5168, %v5109, %v4020
        %v5239 = vsel %vm5168, %v5110, %v4022
        %v5240 = vsel %vm5168, %v5111, %v4024
        %v5241 = vsel %vm5168, %v5112, %v4026
        %v5242 = vsel %vm5168, %v5113, %v4028
        %v5243 = vsel %vm5168, %v5114, %v4030
        %v5244 = vsel %vm5168, %v5115, %v4032
        %v5245 = vsel %vm5168, %v5116, %v4034
        %v5246 = vsel %vm5168, %v5117, %v4036
        %v5247 = vsel %vm5168, %v5118, %v4038
        %v5248 = vsel %vm5168, %v5119, %v4040
        %v5249 = vsel %vm5168, %v5120, %v4042
        %v5250 = vsel %vm5168, %v5121, %v4044
        %v5251 = vsel %vm5168, %v5122, %v4046
        %v5252 = vsel %vm5168, %v5123, %v4048
        %v5253 = vsel %vm5168, %v5124, %v4050
        %v5254 = vsel %vm5168, %v5125, %v4052
        %v5255 = vsel %vm5168, %v5126, %v4054
        %v5256 = vsel %vm5168, %v5127, %v4056
        %v5257 = vsel %vm5168, %v5128, %v4058
        %v5258 = vsel %vm5168, %v5129, %v4060
        %v5259 = vsel %vm5168, %v5130, %v4062
        %v5260 = vsel %vm5168, %v5131, %v4064
        %v5261 = vsel %vm5168, %v5132, %v4066
        %v5262 = vsel %vm5168, %v5133, %v4068
        %v5263 = vsel %vm5168, %v5134, %v4070
        %v5264 = vsel %vm5168, %v5135, %v4072
        %v5265 = vsel %vm5168, %v5136, %v4074
        %v5266 = vsel %vm5168, %v5137, %v4076
        %v5267 = vsel %vm5168, %v5138, %v4078
        %v5268 = vsel %vm5168, %v5139, %v4080
        %v5269 = vsel %vm5168, %v5140, %v4082
        %v5270 = vsel %vm5168, %v5141, %v4084
        %v5271 = vsel %vm5168, %v5142, %v4086
        %v5272 = vsel %vm5168, %v5143, %v4088
        %v5273 = vsel %vm5168, %v5144, %v4090
        %v5274 = vsel %vm5168, %v5145, %v4092
        %v5275 = vsel %vm5168, %v5146, %v4094
        %v5276 = vsel %vm5168, %v5147, %v4096
        %v5277 = vsel %vm5168, %v5148, %v4098
        %v5278 = vsel %vm5168, %v5149, %v4100
        %v5279 = vsel %vm5168, %v5150, %v4102
        %v5280 = vsel %vm5168, %v5151, %v4104
        %v5281 = vsel %vm5168, %v5152, %v4106
        %v5282 = vsel %vm5168, %v5153, %v4108
        %v5283 = vsel %vm5168, %v5154, %v4110
        %v5284 = vsel %vm5168, %v5155, %v4112
        %v5285 = vsel %vm5168, %v5156, %v4114
        %v5286 = vsel %vm5168, %v5157, %v4116
        %v5287 = vsel %vm5168, %v5158, %v4118
        %v5288 = vsel %vm5168, %v5159, %v4120
        %v5289 = vsel %vm5168, %v5160, %v4122
        %v5290 = vsel %vm5168, %v5161, %v4124
        %v5291 = vsel %vm5168, %v5162, %v4126
        %v5292 = vsel %vm5168, %v5163, %v4128
        %v5293 = vsel %vm5168, %v5164, %v4130
        %v5294 = vsel %vm5168, %v5165, %v4132
        %v5295 = vsel %vm5168, %v5166, %v4134
        %v5296 = vsel %vm5168, %v5167, %v4136
        %v5297 = vld [vmem:[%s1] sm:$0xff]
        %v5298 = vld [vmem:[%s1 + $0x8] sm:$0xff]
        %v5299 = vld [vmem:[%s1 + $0x10] sm:$0xff]
        %v5300 = vld [vmem:[%s1 + $0x18] sm:$0xff]
        %v5301 = vld [vmem:[%s1 + $0x20] sm:$0xf]
        %v5302 = vld [vmem:[%s2] sm:$0x1]
        %v5304 = vlaneseq
        %v5305 = vshrl.u32 %v5304, 7
        %v5306 = vsub.s32 0, %v5305
        %v5307 = vrot.slane %v5302, %v5306
        %vm5309 = vcmask 293888
        %v5311 = vsel %vm5309, %v5169, 0
        %v5314 = vsel %vm5309, %v5170, 0
        %v5317 = vsel %vm5309, %v5171, 0
        %v5320 = vsel %vm5309, %v5172, 0
        %v5323 = vsel %vm5309, %v5173, 0
        %v5326 = vsel %vm5309, %v5174, 0
        %v5329 = vsel %vm5309, %v5175, 0
        %v5332 = vsel %vm5309, %v5176, 0
        %v5335 = vsel %vm5309, %v5177, 0
        %v5338 = vsel %vm5309, %v5178, 0
        %v5341 = vsel %vm5309, %v5179, 0
        %v5344 = vsel %vm5309, %v5180, 0
        %v5347 = vsel %vm5309, %v5181, 0
        %v5350 = vsel %vm5309, %v5182, 0
        %v5353 = vsel %vm5309, %v5183, 0
        %v5356 = vsel %vm5309, %v5184, 0
        %v5359 = vsel %vm5309, %v5185, 0
        %v5362 = vsel %vm5309, %v5186, 0
        %v5365 = vsel %vm5309, %v5187, 0
        %v5368 = vsel %vm5309, %v5188, 0
        %v5371 = vsel %vm5309, %v5189, 0
        %v5374 = vsel %vm5309, %v5190, 0
        %v5377 = vsel %vm5309, %v5191, 0
        %v5380 = vsel %vm5309, %v5192, 0
        %v5383 = vsel %vm5309, %v5193, 0
        %v5386 = vsel %vm5309, %v5194, 0
        %v5389 = vsel %vm5309, %v5195, 0
        %v5392 = vsel %vm5309, %v5196, 0
        %v5395 = vsel %vm5309, %v5197, 0
        %v5398 = vsel %vm5309, %v5198, 0
        %v5401 = vsel %vm5309, %v5199, 0
        %v5404 = vsel %vm5309, %v5200, 0
        %v5407 = vsel %vm5309, %v5201, 0
        %v5410 = vsel %vm5309, %v5202, 0
        %v5413 = vsel %vm5309, %v5203, 0
        %v5416 = vsel %vm5309, %v5204, 0
        %v5419 = vsel %vm5309, %v5205, 0
        %v5422 = vsel %vm5309, %v5206, 0
        %v5425 = vsel %vm5309, %v5207, 0
        %v5428 = vsel %vm5309, %v5208, 0
        %v5431 = vsel %vm5309, %v5209, 0
        %v5434 = vsel %vm5309, %v5210, 0
        %v5437 = vsel %vm5309, %v5211, 0
        %v5440 = vsel %vm5309, %v5212, 0
        %v5443 = vsel %vm5309, %v5213, 0
        %v5446 = vsel %vm5309, %v5214, 0
        %v5449 = vsel %vm5309, %v5215, 0
        %v5452 = vsel %vm5309, %v5216, 0
        %v5455 = vsel %vm5309, %v5217, 0
        %v5458 = vsel %vm5309, %v5218, 0
        %v5461 = vsel %vm5309, %v5219, 0
        %v5464 = vsel %vm5309, %v5220, 0
        %v5467 = vsel %vm5309, %v5221, 0
        %v5470 = vsel %vm5309, %v5222, 0
        %v5473 = vsel %vm5309, %v5223, 0
        %v5476 = vsel %vm5309, %v5224, 0
        %v5479 = vsel %vm5309, %v5225, 0
        %v5482 = vsel %vm5309, %v5226, 0
        %v5485 = vsel %vm5309, %v5227, 0
        %v5488 = vsel %vm5309, %v5228, 0
        %v5491 = vsel %vm5309, %v5229, 0
        %v5494 = vsel %vm5309, %v5230, 0
        %v5497 = vsel %vm5309, %v5231, 0
        %v5500 = vsel %vm5309, %v5232, 0
        %v5503 = vsel %vm5309, %v5233, 0
        %v5506 = vsel %vm5309, %v5234, 0
        %v5509 = vsel %vm5309, %v5235, 0
        %v5512 = vsel %vm5309, %v5236, 0
        %v5515 = vsel %vm5309, %v5237, 0
        %v5518 = vsel %vm5309, %v5238, 0
        %v5521 = vsel %vm5309, %v5239, 0
        %v5524 = vsel %vm5309, %v5240, 0
        %v5527 = vsel %vm5309, %v5241, 0
        %v5530 = vsel %vm5309, %v5242, 0
        %v5533 = vsel %vm5309, %v5243, 0
        %v5536 = vsel %vm5309, %v5244, 0
        %v5539 = vsel %vm5309, %v5245, 0
        %v5542 = vsel %vm5309, %v5246, 0
        %v5545 = vsel %vm5309, %v5247, 0
        %v5548 = vsel %vm5309, %v5248, 0
        %v5551 = vsel %vm5309, %v5249, 0
        %v5554 = vsel %vm5309, %v5250, 0
        %v5557 = vsel %vm5309, %v5251, 0
        %v5560 = vsel %vm5309, %v5252, 0
        %v5563 = vsel %vm5309, %v5253, 0
        %v5566 = vsel %vm5309, %v5254, 0
        %v5569 = vsel %vm5309, %v5255, 0
        %v5572 = vsel %vm5309, %v5256, 0
        %v5575 = vsel %vm5309, %v5257, 0
        %v5578 = vsel %vm5309, %v5258, 0
        %v5581 = vsel %vm5309, %v5259, 0
        %v5584 = vsel %vm5309, %v5260, 0
        %v5587 = vsel %vm5309, %v5261, 0
        %v5590 = vsel %vm5309, %v5262, 0
        %v5593 = vsel %vm5309, %v5263, 0
        %v5596 = vsel %vm5309, %v5264, 0
        %v5599 = vsel %vm5309, %v5265, 0
        %v5602 = vsel %vm5309, %v5266, 0
        %v5605 = vsel %vm5309, %v5267, 0
        %v5608 = vsel %vm5309, %v5268, 0
        %v5611 = vsel %vm5309, %v5269, 0
        %v5614 = vsel %vm5309, %v5270, 0
        %v5617 = vsel %vm5309, %v5271, 0
        %v5620 = vsel %vm5309, %v5272, 0
        %v5623 = vsel %vm5309, %v5273, 0
        %v5626 = vsel %vm5309, %v5274, 0
        %v5629 = vsel %vm5309, %v5275, 0
        %v5632 = vsel %vm5309, %v5276, 0
        %v5635 = vsel %vm5309, %v5277, 0
        %v5638 = vsel %vm5309, %v5278, 0
        %v5641 = vsel %vm5309, %v5279, 0
        %v5644 = vsel %vm5309, %v5280, 0
        %v5647 = vsel %vm5309, %v5281, 0
        %v5650 = vsel %vm5309, %v5282, 0
        %v5653 = vsel %vm5309, %v5283, 0
        %v5656 = vsel %vm5309, %v5284, 0
        %v5659 = vsel %vm5309, %v5285, 0
        %v5662 = vsel %vm5309, %v5286, 0
        %v5665 = vsel %vm5309, %v5287, 0
        %v5668 = vsel %vm5309, %v5288, 0
        %v5671 = vsel %vm5309, %v5289, 0
        %v5674 = vsel %vm5309, %v5290, 0
        %v5677 = vsel %vm5309, %v5291, 0
        %v5680 = vsel %vm5309, %v5292, 0
        %v5683 = vsel %vm5309, %v5293, 0
        %v5686 = vsel %vm5309, %v5294, 0
        %v5689 = vsel %vm5309, %v5295, 0
        %v5692 = vsel %vm5309, %v5296, 0
        %vm5694 = vcmask 1043456
        %v5696 = vsel %vm5694, %v5301, 0
        %5698 = vmatprep.subr.mxu0 0.0
        %5699 = vmatpush1.msra.mxu0 %v5297
        %5700 = vmatprep.subr.mxu0 0.0
        %5701 = vmatpush1.msra.mxu0 %v5298
        %5702 = vmatprep.subr.mxu0 0.0
        %5703 = vmatpush1.msra.mxu0 %v5299
        %5704 = vmatprep.subr.mxu0 0.0
        %5705 = vmatpush1.msra.mxu0 %v5300
        %5706 = vmatprep.subr.mxu0 0.0
        %5707 = vmatpush1.msra.mxu0 %v5696
        %5708 = vmatprep.subr.mxu0 0.0
        %5709 = vmatpush1.msra.mxu0 0.0
        %5710 = vmatprep.subr.mxu0 0.0
        %5711 = vmatpush1.msra.mxu0 0.0
        %5712 = vmatprep.subr.mxu0 0.0
        %5713 = vmatpush1.msra.mxu0 0.0
        %5714 = vmatprep.subr.mxu0 0.0
        %5715 = vmatpush1.msra.mxu0 0.0
        %5716 = vmatprep.subr.mxu0 0.0
        %5717 = vmatpush1.msra.mxu0 0.0
        %5718 = vmatprep.subr.mxu0 0.0
        %5719 = vmatpush1.msra.mxu0 0.0
        %5720 = vmatprep.subr.mxu0 0.0
        %5721 = vmatpush1.msra.mxu0 0.0
        %5722 = vmatprep.subr.mxu0 0.0
        %5723 = vmatpush1.msra.mxu0 0.0
        %5724 = vmatprep.subr.mxu0 0.0
        %5725 = vmatpush1.msra.mxu0 0.0
        %5726 = vmatprep.subr.mxu0 0.0
        %5727 = vmatpush1.msra.mxu0 0.0
        %5728 = vmatprep.subr.mxu0 0.0
        %5729 = vmatpush1.msra.mxu0 0.0
        %5730 = vmatprep.subr.mxu0 0.0
        %5731 = vmatpush1.msra.mxu0 0.0
        %5732 = vmatprep.subr.mxu0 0.0
        %5733 = vmatpush1.msra.mxu0 0.0
        %5734 = vmatprep.subr.mxu0 0.0
        %5735 = vmatpush1.msra.mxu0 0.0
        %5736 = vmatprep.subr.mxu0 0.0
        %5737 = vmatpush1.msra.mxu0 0.0
        %5738 = vmatprep.subr.mxu0 0.0
        %5739 = vmatpush1.msra.mxu0 0.0
        %5740 = vmatprep.subr.mxu0 0.0
        %5741 = vmatpush1.msra.mxu0 0.0
        %5742 = vmatprep.subr.mxu0 0.0
        %5743 = vmatpush1.msra.mxu0 0.0
        %5744 = vmatprep.subr.mxu0 0.0
        %5745 = vmatpush1.msra.mxu0 0.0
        %5746 = vmatprep.subr.mxu0 0.0
        %5747 = vmatpush1.msra.mxu0 0.0
        %5748 = vmatprep.subr.mxu0 0.0
        %5749 = vmatpush1.msra.mxu0 0.0
        %5750 = vmatprep.subr.mxu0 0.0
        %5751 = vmatpush1.msra.mxu0 0.0
        %5752 = vmatprep.subr.mxu0 0.0
        %5753 = vmatpush1.msra.mxu0 0.0
        %5754 = vmatprep.subr.mxu0 0.0
        %5755 = vmatpush1.msra.mxu0 0.0
        %5756 = vmatprep.subr.mxu0 0.0
        %5757 = vmatpush1.msra.mxu0 0.0
        %5758 = vmatprep.subr.mxu0 0.0
        %5759 = vmatpush1.msra.mxu0 0.0
        %5760 = vmatprep.subr.mxu0 0.0
        %5761 = vmatpush1.msra.mxu0 0.0
        %5762 = vmatprep.mubr.f32.mxu0 0.0
        %5763 = vmatmul.mubr.f32.gmra.mrb[0].mxu0 %v5311
        %v5764 = vpop.f32.mrb[0].mxu0
        %v5765 = vadd.f32 %v5307, %v5764
        %v5766 = vpop.f32.mrb[0].mxu0
        %5767 = vmatprep.mubr.f32.mxu0 0.0
        %5768 = vmatmul.mubr.f32.gmra.mrb[0].mxu0 %v5314
        %v5769 = vpop.f32.mrb[0].mxu0
        %v5770 = vadd.f32 %v5307, %v5769
        %v5771 = vpop.f32.mrb[0].mxu0
        %5772 = vmatprep.mubr.f32.mxu0 0.0
        %5773 = vmatmul.mubr.f32.gmra.mrb[0].mxu0 %v5317
        %v5774 = vpop.f32.mrb[0].mxu0
        %v5775 = vadd.f32 %v5307, %v5774
        %v5776 = vpop.f32.mrb[0].mxu0
        %5777 = vmatprep.mubr.f32.mxu0 0.0
        %5778 = vmatmul.mubr.f32.gmra.mrb[0].mxu0 %v5320
        %v5779 = vpop.f32.mrb[0].mxu0
        %v5780 = vadd.f32 %v5307, %v5779
        %v5781 = vpop.f32.mrb[0].mxu0
        %5782 = vmatprep.mubr.f32.mxu0 0.0
        %5783 = vmatmul.mubr.f32.gmra.mrb[0].mxu0 %v5323
        %v5784 = vpop.f32.mrb[0].mxu0
        %v5785 = vadd.f32 %v5307, %v5784
        %v5786 = vpop.f32.mrb[0].mxu0
        %5787 = vmatprep.mubr.f32.mxu0 0.0
        %5788 = vmatmul.mubr.f32.gmra.mrb[0].mxu0 %v5326
        %v5789 = vpop.f32.mrb[0].mxu0
        %v5790 = vadd.f32 %v5307, %v5789
        %v5791 = vpop.f32.mrb[0].mxu0
        %5792 = vmatprep.mubr.f32.mxu0 0.0
        %5793 = vmatmul.mubr.f32.gmra.mrb[0].mxu0 %v5329
        %v5794 = vpop.f32.mrb[0].mxu0
        %v5795 = vadd.f32 %v5307, %v5794
        %v5796 = vpop.f32.mrb[0].mxu0
        %5797 = vmatprep.mubr.f32.mxu0 0.0
        %5798 = vmatmul.mubr.f32.gmra.mrb[0].mxu0 %v5332
        %v5799 = vpop.f32.mrb[0].mxu0
        %v5800 = vadd.f32 %v5307, %v5799
        %v5801 = vpop.f32.mrb[0].mxu0
        %5802 = vmatprep.mubr.f32.mxu0 0.0
        %5803 = vmatmul.mubr.f32.gmra.mrb[0].mxu0 %v5335
        %v5804 = vpop.f32.mrb[0].mxu0
        %v5805 = vadd.f32 %v5307, %v5804
        %v5806 = vpop.f32.mrb[0].mxu0
        %5807 = vmatprep.mubr.f32.mxu0 0.0
        %5808 = vmatmul.mubr.f32.gmra.mrb[0].mxu0 %v5338
        %v5809 = vpop.f32.mrb[0].mxu0
        %v5810 = vadd.f32 %v5307, %v5809
        %v5811 = vpop.f32.mrb[0].mxu0
        %5812 = vmatprep.mubr.f32.mxu0 0.0
        %5813 = vmatmul.mubr.f32.gmra.mrb[0].mxu0 %v5341
        %v5814 = vpop.f32.mrb[0].mxu0
        %v5815 = vadd.f32 %v5307, %v5814
        %v5816 = vpop.f32.mrb[0].mxu0
        %5817 = vmatprep.mubr.f32.mxu0 0.0
        %5818 = vmatmul.mubr.f32.gmra.mrb[0].mxu0 %v5344
        %v5819 = vpop.f32.mrb[0].mxu0
        %v5820 = vadd.f32 %v5307, %v5819
        %v5821 = vpop.f32.mrb[0].mxu0
        %5822 = vmatprep.mubr.f32.mxu0 0.0
        %5823 = vmatmul.mubr.f32.gmra.mrb[0].mxu0 %v5347
        %v5824 = vpop.f32.mrb[0].mxu0
        %v5825 = vadd.f32 %v5307, %v5824
        %v5826 = vpop.f32.mrb[0].mxu0
        %5827 = vmatprep.mubr.f32.mxu0 0.0
        %5828 = vmatmul.mubr.f32.gmra.mrb[0].mxu0 %v5350
        %v5829 = vpop.f32.mrb[0].mxu0
        %v5830 = vadd.f32 %v5307, %v5829
        %v5831 = vpop.f32.mrb[0].mxu0
        %5832 = vmatprep.mubr.f32.mxu0 0.0
        %5833 = vmatmul.mubr.f32.gmra.mrb[0].mxu0 %v5353
        %v5834 = vpop.f32.mrb[0].mxu0
        %v5835 = vadd.f32 %v5307, %v5834
        %v5836 = vpop.f32.mrb[0].mxu0
        %5837 = vmatprep.mubr.f32.mxu0 0.0
        %5838 = vmatmul.mubr.f32.gmra.mrb[0].mxu0 %v5356
        %v5839 = vpop.f32.mrb[0].mxu0
        %v5840 = vadd.f32 %v5307, %v5839
        %v5841 = vpop.f32.mrb[0].mxu0
        %5842 = vmatprep.mubr.f32.mxu0 0.0
        %5843 = vmatmul.mubr.f32.gmra.mrb[0].mxu0 %v5359
        %v5844 = vpop.f32.mrb[0].mxu0
        %v5845 = vadd.f32 %v5307, %v5844
        %v5846 = vpop.f32.mrb[0].mxu0
        %5847 = vmatprep.mubr.f32.mxu0 0.0
        %5848 = vmatmul.mubr.f32.gmra.mrb[0].mxu0 %v5362
        %v5849 = vpop.f32.mrb[0].mxu0
        %v5850 = vadd.f32 %v5307, %v5849
        %v5851 = vpop.f32.mrb[0].mxu0
        %5852 = vmatprep.mubr.f32.mxu0 0.0
        %5853 = vmatmul.mubr.f32.gmra.mrb[0].mxu0 %v5365
        %v5854 = vpop.f32.mrb[0].mxu0
        %v5855 = vadd.f32 %v5307, %v5854
        %v5856 = vpop.f32.mrb[0].mxu0
        %5857 = vmatprep.mubr.f32.mxu0 0.0
        %5858 = vmatmul.mubr.f32.gmra.mrb[0].mxu0 %v5368
        %v5859 = vpop.f32.mrb[0].mxu0
        %v5860 = vadd.f32 %v5307, %v5859
        %v5861 = vpop.f32.mrb[0].mxu0
        %5862 = vmatprep.mubr.f32.mxu0 0.0
        %5863 = vmatmul.mubr.f32.gmra.mrb[0].mxu0 %v5371
        %v5864 = vpop.f32.mrb[0].mxu0
        %v5865 = vadd.f32 %v5307, %v5864
        %v5866 = vpop.f32.mrb[0].mxu0
        %5867 = vmatprep.mubr.f32.mxu0 0.0
        %5868 = vmatmul.mubr.f32.gmra.mrb[0].mxu0 %v5374
        %v5869 = vpop.f32.mrb[0].mxu0
        %v5870 = vadd.f32 %v5307, %v5869
        %v5871 = vpop.f32.mrb[0].mxu0
        %5872 = vmatprep.mubr.f32.mxu0 0.0
        %5873 = vmatmul.mubr.f32.gmra.mrb[0].mxu0 %v5377
        %v5874 = vpop.f32.mrb[0].mxu0
        %v5875 = vadd.f32 %v5307, %v5874
        %v5876 = vpop.f32.mrb[0].mxu0
        %5877 = vmatprep.mubr.f32.mxu0 0.0
        %5878 = vmatmul.mubr.f32.gmra.mrb[0].mxu0 %v5380
        %v5879 = vpop.f32.mrb[0].mxu0
        %v5880 = vadd.f32 %v5307, %v5879
        %v5881 = vpop.f32.mrb[0].mxu0
        %5882 = vmatprep.mubr.f32.mxu0 0.0
        %5883 = vmatmul.mubr.f32.gmra.mrb[0].mxu0 %v5383
        %v5884 = vpop.f32.mrb[0].mxu0
        %v5885 = vadd.f32 %v5307, %v5884
        %v5886 = vpop.f32.mrb[0].mxu0
        %5887 = vmatprep.mubr.f32.mxu0 0.0
        %5888 = vmatmul.mubr.f32.gmra.mrb[0].mxu0 %v5386
        %v5889 = vpop.f32.mrb[0].mxu0
        %v5890 = vadd.f32 %v5307, %v5889
        %v5891 = vpop.f32.mrb[0].mxu0
        %5892 = vmatprep.mubr.f32.mxu0 0.0
        %5893 = vmatmul.mubr.f32.gmra.mrb[0].mxu0 %v5389
        %v5894 = vpop.f32.mrb[0].mxu0
        %v5895 = vadd.f32 %v5307, %v5894
        %v5896 = vpop.f32.mrb[0].mxu0
        %5897 = vmatprep.mubr.f32.mxu0 0.0
        %5898 = vmatmul.mubr.f32.gmra.mrb[0].mxu0 %v5392
        %v5899 = vpop.f32.mrb[0].mxu0
        %v5900 = vadd.f32 %v5307, %v5899
        %v5901 = vpop.f32.mrb[0].mxu0
        %5902 = vmatprep.mubr.f32.mxu0 0.0
        %5903 = vmatmul.mubr.f32.gmra.mrb[0].mxu0 %v5395
        %v5904 = vpop.f32.mrb[0].mxu0
        %v5905 = vadd.f32 %v5307, %v5904
        %v5906 = vpop.f32.mrb[0].mxu0
        %5907 = vmatprep.mubr.f32.mxu0 0.0
        %5908 = vmatmul.mubr.f32.gmra.mrb[0].mxu0 %v5398
        %v5909 = vpop.f32.mrb[0].mxu0
        %v5910 = vadd.f32 %v5307, %v5909
        %v5911 = vpop.f32.mrb[0].mxu0
        %5912 = vmatprep.mubr.f32.mxu0 0.0
        %5913 = vmatmul.mubr.f32.gmra.mrb[0].mxu0 %v5401
        %v5914 = vpop.f32.mrb[0].mxu0
        %v5915 = vadd.f32 %v5307, %v5914
        %v5916 = vpop.f32.mrb[0].mxu0
        %5917 = vmatprep.mubr.f32.mxu0 0.0
        %5918 = vmatmul.mubr.f32.gmra.mrb[0].mxu0 %v5404
        %v5919 = vpop.f32.mrb[0].mxu0
        %v5920 = vadd.f32 %v5307, %v5919
        %v5921 = vpop.f32.mrb[0].mxu0
        %5922 = vmatprep.mubr.f32.mxu0 0.0
        %5923 = vmatmul.mubr.f32.gmra.mrb[0].mxu0 %v5407
        %v5924 = vpop.f32.mrb[0].mxu0
        %v5925 = vadd.f32 %v5307, %v5924
        %v5926 = vpop.f32.mrb[0].mxu0
        %5927 = vmatprep.mubr.f32.mxu0 0.0
        %5928 = vmatmul.mubr.f32.gmra.mrb[0].mxu0 %v5410
        %v5929 = vpop.f32.mrb[0].mxu0
        %v5930 = vadd.f32 %v5307, %v5929
        %v5931 = vpop.f32.mrb[0].mxu0
        %5932 = vmatprep.mubr.f32.mxu0 0.0
        %5933 = vmatmul.mubr.f32.gmra.mrb[0].mxu0 %v5413
        %v5934 = vpop.f32.mrb[0].mxu0
        %v5935 = vadd.f32 %v5307, %v5934
        %v5936 = vpop.f32.mrb[0].mxu0
        %5937 = vmatprep.mubr.f32.mxu0 0.0
        %5938 = vmatmul.mubr.f32.gmra.mrb[0].mxu0 %v5416
        %v5939 = vpop.f32.mrb[0].mxu0
        %v5940 = vadd.f32 %v5307, %v5939
        %v5941 = vpop.f32.mrb[0].mxu0
        %5942 = vmatprep.mubr.f32.mxu0 0.0
        %5943 = vmatmul.mubr.f32.gmra.mrb[0].mxu0 %v5419
        %v5944 = vpop.f32.mrb[0].mxu0
        %v5945 = vadd.f32 %v5307, %v5944
        %v5946 = vpop.f32.mrb[0].mxu0
        %5947 = vmatprep.mubr.f32.mxu0 0.0
        %5948 = vmatmul.mubr.f32.gmra.mrb[0].mxu0 %v5422
        %v5949 = vpop.f32.mrb[0].mxu0
        %v5950 = vadd.f32 %v5307, %v5949
        %v5951 = vpop.f32.mrb[0].mxu0
        %5952 = vmatprep.mubr.f32.mxu0 0.0
        %5953 = vmatmul.mubr.f32.gmra.mrb[0].mxu0 %v5425
        %v5954 = vpop.f32.mrb[0].mxu0
        %v5955 = vadd.f32 %v5307, %v5954
        %v5956 = vpop.f32.mrb[0].mxu0
        %5957 = vmatprep.mubr.f32.mxu0 0.0
        %5958 = vmatmul.mubr.f32.gmra.mrb[0].mxu0 %v5428
        %v5959 = vpop.f32.mrb[0].mxu0
        %v5960 = vadd.f32 %v5307, %v5959
        %v5961 = vpop.f32.mrb[0].mxu0
        %5962 = vmatprep.mubr.f32.mxu0 0.0
        %5963 = vmatmul.mubr.f32.gmra.mrb[0].mxu0 %v5431
        %v5964 = vpop.f32.mrb[0].mxu0
        %v5965 = vadd.f32 %v5307, %v5964
        %v5966 = vpop.f32.mrb[0].mxu0
        %5967 = vmatprep.mubr.f32.mxu0 0.0
        %5968 = vmatmul.mubr.f32.gmra.mrb[0].mxu0 %v5434
        %v5969 = vpop.f32.mrb[0].mxu0
        %v5970 = vadd.f32 %v5307, %v5969
        %v5971 = vpop.f32.mrb[0].mxu0
        %5972 = vmatprep.mubr.f32.mxu0 0.0
        %5973 = vmatmul.mubr.f32.gmra.mrb[0].mxu0 %v5437
        %v5974 = vpop.f32.mrb[0].mxu0
        %v5975 = vadd.f32 %v5307, %v5974
        %v5976 = vpop.f32.mrb[0].mxu0
        %5977 = vmatprep.mubr.f32.mxu0 0.0
        %5978 = vmatmul.mubr.f32.gmra.mrb[0].mxu0 %v5440
        %v5979 = vpop.f32.mrb[0].mxu0
        %v5980 = vadd.f32 %v5307, %v5979
        %v5981 = vpop.f32.mrb[0].mxu0
        %5982 = vmatprep.mubr.f32.mxu0 0.0
        %5983 = vmatmul.mubr.f32.gmra.mrb[0].mxu0 %v5443
        %v5984 = vpop.f32.mrb[0].mxu0
        %v5985 = vadd.f32 %v5307, %v5984
        %v5986 = vpop.f32.mrb[0].mxu0
        %5987 = vmatprep.mubr.f32.mxu0 0.0
        %5988 = vmatmul.mubr.f32.gmra.mrb[0].mxu0 %v5446
        %v5989 = vpop.f32.mrb[0].mxu0
        %v5990 = vadd.f32 %v5307, %v5989
        %v5991 = vpop.f32.mrb[0].mxu0
        %5992 = vmatprep.mubr.f32.mxu0 0.0
        %5993 = vmatmul.mubr.f32.gmra.mrb[0].mxu0 %v5449
        %v5994 = vpop.f32.mrb[0].mxu0
        %v5995 = vadd.f32 %v5307, %v5994
        %v5996 = vpop.f32.mrb[0].mxu0
        %5997 = vmatprep.mubr.f32.mxu0 0.0
        %5998 = vmatmul.mubr.f32.gmra.mrb[0].mxu0 %v5452
        %v5999 = vpop.f32.mrb[0].mxu0
        %v6000 = vadd.f32 %v5307, %v5999
        %v6001 = vpop.f32.mrb[0].mxu0
        %6002 = vmatprep.mubr.f32.mxu0 0.0
        %6003 = vmatmul.mubr.f32.gmra.mrb[0].mxu0 %v5455
        %v6004 = vpop.f32.mrb[0].mxu0
        %v6005 = vadd.f32 %v5307, %v6004
        %v6006 = vpop.f32.mrb[0].mxu0
        %6007 = vmatprep.mubr.f32.mxu0 0.0
        %6008 = vmatmul.mubr.f32.gmra.mrb[0].mxu0 %v5458
        %v6009 = vpop.f32.mrb[0].mxu0
        %v6010 = vadd.f32 %v5307, %v6009
        %v6011 = vpop.f32.mrb[0].mxu0
        %6012 = vmatprep.mubr.f32.mxu0 0.0
        %6013 = vmatmul.mubr.f32.gmra.mrb[0].mxu0 %v5461
        %v6014 = vpop.f32.mrb[0].mxu0
        %v6015 = vadd.f32 %v5307, %v6014
        %v6016 = vpop.f32.mrb[0].mxu0
        %6017 = vmatprep.mubr.f32.mxu0 0.0
        %6018 = vmatmul.mubr.f32.gmra.mrb[0].mxu0 %v5464
        %v6019 = vpop.f32.mrb[0].mxu0
        %v6020 = vadd.f32 %v5307, %v6019
        %v6021 = vpop.f32.mrb[0].mxu0
        %6022 = vmatprep.mubr.f32.mxu0 0.0
        %6023 = vmatmul.mubr.f32.gmra.mrb[0].mxu0 %v5467
        %v6024 = vpop.f32.mrb[0].mxu0
        %v6025 = vadd.f32 %v5307, %v6024
        %v6026 = vpop.f32.mrb[0].mxu0
        %6027 = vmatprep.mubr.f32.mxu0 0.0
        %6028 = vmatmul.mubr.f32.gmra.mrb[0].mxu0 %v5470
        %v6029 = vpop.f32.mrb[0].mxu0
        %v6030 = vadd.f32 %v5307, %v6029
        %v6031 = vpop.f32.mrb[0].mxu0
        %6032 = vmatprep.mubr.f32.mxu0 0.0
        %6033 = vmatmul.mubr.f32.gmra.mrb[0].mxu0 %v5473
        %v6034 = vpop.f32.mrb[0].mxu0
        %v6035 = vadd.f32 %v5307, %v6034
        %v6036 = vpop.f32.mrb[0].mxu0
        %6037 = vmatprep.mubr.f32.mxu0 0.0
        %6038 = vmatmul.mubr.f32.gmra.mrb[0].mxu0 %v5476
        %v6039 = vpop.f32.mrb[0].mxu0
        %v6040 = vadd.f32 %v5307, %v6039
        %v6041 = vpop.f32.mrb[0].mxu0
        %6042 = vmatprep.mubr.f32.mxu0 0.0
        %6043 = vmatmul.mubr.f32.gmra.mrb[0].mxu0 %v5479
        %v6044 = vpop.f32.mrb[0].mxu0
        %v6045 = vadd.f32 %v5307, %v6044
        %v6046 = vpop.f32.mrb[0].mxu0
        %6047 = vmatprep.mubr.f32.mxu0 0.0
        %6048 = vmatmul.mubr.f32.gmra.mrb[0].mxu0 %v5482
        %v6049 = vpop.f32.mrb[0].mxu0
        %v6050 = vadd.f32 %v5307, %v6049
        %v6051 = vpop.f32.mrb[0].mxu0
        %6052 = vmatprep.mubr.f32.mxu0 0.0
        %6053 = vmatmul.mubr.f32.gmra.mrb[0].mxu0 %v5485
        %v6054 = vpop.f32.mrb[0].mxu0
        %v6055 = vadd.f32 %v5307, %v6054
        %v6056 = vpop.f32.mrb[0].mxu0
        %6057 = vmatprep.mubr.f32.mxu0 0.0
        %6058 = vmatmul.mubr.f32.gmra.mrb[0].mxu0 %v5488
        %v6059 = vpop.f32.mrb[0].mxu0
        %v6060 = vadd.f32 %v5307, %v6059
        %v6061 = vpop.f32.mrb[0].mxu0
        %6062 = vmatprep.mubr.f32.mxu0 0.0
        %6063 = vmatmul.mubr.f32.gmra.mrb[0].mxu0 %v5491
        %v6064 = vpop.f32.mrb[0].mxu0
        %v6065 = vadd.f32 %v5307, %v6064
        %v6066 = vpop.f32.mrb[0].mxu0
        %6067 = vmatprep.mubr.f32.mxu0 0.0
        %6068 = vmatmul.mubr.f32.gmra.mrb[0].mxu0 %v5494
        %v6069 = vpop.f32.mrb[0].mxu0
        %v6070 = vadd.f32 %v5307, %v6069
        %v6071 = vpop.f32.mrb[0].mxu0
        %6072 = vmatprep.mubr.f32.mxu0 0.0
        %6073 = vmatmul.mubr.f32.gmra.mrb[0].mxu0 %v5497
        %v6074 = vpop.f32.mrb[0].mxu0
        %v6075 = vadd.f32 %v5307, %v6074
        %v6076 = vpop.f32.mrb[0].mxu0
        %6077 = vmatprep.mubr.f32.mxu0 0.0
        %6078 = vmatmul.mubr.f32.gmra.mrb[0].mxu0 %v5500
        %v6079 = vpop.f32.mrb[0].mxu0
        %v6080 = vadd.f32 %v5307, %v6079
        %v6081 = vpop.f32.mrb[0].mxu0
        %6082 = vmatprep.mubr.f32.mxu0 0.0
        %6083 = vmatmul.mubr.f32.gmra.mrb[0].mxu0 %v5503
        %v6084 = vpop.f32.mrb[0].mxu0
        %v6085 = vadd.f32 %v5307, %v6084
        %v6086 = vpop.f32.mrb[0].mxu0
        %6087 = vmatprep.mubr.f32.mxu0 0.0
        %6088 = vmatmul.mubr.f32.gmra.mrb[0].mxu0 %v5506
        %v6089 = vpop.f32.mrb[0].mxu0
        %v6090 = vadd.f32 %v5307, %v6089
        %v6091 = vpop.f32.mrb[0].mxu0
        %6092 = vmatprep.mubr.f32.mxu0 0.0
        %6093 = vmatmul.mubr.f32.gmra.mrb[0].mxu0 %v5509
        %v6094 = vpop.f32.mrb[0].mxu0
        %v6095 = vadd.f32 %v5307, %v6094
        %v6096 = vpop.f32.mrb[0].mxu0
        %6097 = vmatprep.mubr.f32.mxu0 0.0
        %6098 = vmatmul.mubr.f32.gmra.mrb[0].mxu0 %v5512
        %v6099 = vpop.f32.mrb[0].mxu0
        %v6100 = vadd.f32 %v5307, %v6099
        %v6101 = vpop.f32.mrb[0].mxu0
        %6102 = vmatprep.mubr.f32.mxu0 0.0
        %6103 = vmatmul.mubr.f32.gmra.mrb[0].mxu0 %v5515
        %v6104 = vpop.f32.mrb[0].mxu0
        %v6105 = vadd.f32 %v5307, %v6104
        %v6106 = vpop.f32.mrb[0].mxu0
        %6107 = vmatprep.mubr.f32.mxu0 0.0
        %6108 = vmatmul.mubr.f32.gmra.mrb[0].mxu0 %v5518
        %v6109 = vpop.f32.mrb[0].mxu0
        %v6110 = vadd.f32 %v5307, %v6109
        %v6111 = vpop.f32.mrb[0].mxu0
        %6112 = vmatprep.mubr.f32.mxu0 0.0
        %6113 = vmatmul.mubr.f32.gmra.mrb[0].mxu0 %v5521
        %v6114 = vpop.f32.mrb[0].mxu0
        %v6115 = vadd.f32 %v5307, %v6114
        %v6116 = vpop.f32.mrb[0].mxu0
        %6117 = vmatprep.mubr.f32.mxu0 0.0
        %6118 = vmatmul.mubr.f32.gmra.mrb[0].mxu0 %v5524
        %v6119 = vpop.f32.mrb[0].mxu0
        %v6120 = vadd.f32 %v5307, %v6119
        %v6121 = vpop.f32.mrb[0].mxu0
        %6122 = vmatprep.mubr.f32.mxu0 0.0
        %6123 = vmatmul.mubr.f32.gmra.mrb[0].mxu0 %v5527
        %v6124 = vpop.f32.mrb[0].mxu0
        %v6125 = vadd.f32 %v5307, %v6124
        %v6126 = vpop.f32.mrb[0].mxu0
        %6127 = vmatprep.mubr.f32.mxu0 0.0
        %6128 = vmatmul.mubr.f32.gmra.mrb[0].mxu0 %v5530
        %v6129 = vpop.f32.mrb[0].mxu0
        %v6130 = vadd.f32 %v5307, %v6129
        %v6131 = vpop.f32.mrb[0].mxu0
        %6132 = vmatprep.mubr.f32.mxu0 0.0
        %6133 = vmatmul.mubr.f32.gmra.mrb[0].mxu0 %v5533
        %v6134 = vpop.f32.mrb[0].mxu0
        %v6135 = vadd.f32 %v5307, %v6134
        %v6136 = vpop.f32.mrb[0].mxu0
        %6137 = vmatprep.mubr.f32.mxu0 0.0
        %6138 = vmatmul.mubr.f32.gmra.mrb[0].mxu0 %v5536
        %v6139 = vpop.f32.mrb[0].mxu0
        %v6140 = vadd.f32 %v5307, %v6139
        %v6141 = vpop.f32.mrb[0].mxu0
        %6142 = vmatprep.mubr.f32.mxu0 0.0
        %6143 = vmatmul.mubr.f32.gmra.mrb[0].mxu0 %v5539
        %v6144 = vpop.f32.mrb[0].mxu0
        %v6145 = vadd.f32 %v5307, %v6144
        %v6146 = vpop.f32.mrb[0].mxu0
        %6147 = vmatprep.mubr.f32.mxu0 0.0
        %6148 = vmatmul.mubr.f32.gmra.mrb[0].mxu0 %v5542
        %v6149 = vpop.f32.mrb[0].mxu0
        %v6150 = vadd.f32 %v5307, %v6149
        %v6151 = vpop.f32.mrb[0].mxu0
        %6152 = vmatprep.mubr.f32.mxu0 0.0
        %6153 = vmatmul.mubr.f32.gmra.mrb[0].mxu0 %v5545
        %v6154 = vpop.f32.mrb[0].mxu0
        %v6155 = vadd.f32 %v5307, %v6154
        %v6156 = vpop.f32.mrb[0].mxu0
        %6157 = vmatprep.mubr.f32.mxu0 0.0
        %6158 = vmatmul.mubr.f32.gmra.mrb[0].mxu0 %v5548
        %v6159 = vpop.f32.mrb[0].mxu0
        %v6160 = vadd.f32 %v5307, %v6159
        %v6161 = vpop.f32.mrb[0].mxu0
        %6162 = vmatprep.mubr.f32.mxu0 0.0
        %6163 = vmatmul.mubr.f32.gmra.mrb[0].mxu0 %v5551
        %v6164 = vpop.f32.mrb[0].mxu0
        %v6165 = vadd.f32 %v5307, %v6164
        %v6166 = vpop.f32.mrb[0].mxu0
        %6167 = vmatprep.mubr.f32.mxu0 0.0
        %6168 = vmatmul.mubr.f32.gmra.mrb[0].mxu0 %v5554
        %v6169 = vpop.f32.mrb[0].mxu0
        %v6170 = vadd.f32 %v5307, %v6169
        %v6171 = vpop.f32.mrb[0].mxu0
        %6172 = vmatprep.mubr.f32.mxu0 0.0
        %6173 = vmatmul.mubr.f32.gmra.mrb[0].mxu0 %v5557
        %v6174 = vpop.f32.mrb[0].mxu0
        %v6175 = vadd.f32 %v5307, %v6174
        %v6176 = vpop.f32.mrb[0].mxu0
        %6177 = vmatprep.mubr.f32.mxu0 0.0
        %6178 = vmatmul.mubr.f32.gmra.mrb[0].mxu0 %v5560
        %v6179 = vpop.f32.mrb[0].mxu0
        %v6180 = vadd.f32 %v5307, %v6179
        %v6181 = vpop.f32.mrb[0].mxu0
        %6182 = vmatprep.mubr.f32.mxu0 0.0
        %6183 = vmatmul.mubr.f32.gmra.mrb[0].mxu0 %v5563
        %v6184 = vpop.f32.mrb[0].mxu0
        %v6185 = vadd.f32 %v5307, %v6184
        %v6186 = vpop.f32.mrb[0].mxu0
        %6187 = vmatprep.mubr.f32.mxu0 0.0
        %6188 = vmatmul.mubr.f32.gmra.mrb[0].mxu0 %v5566
        %v6189 = vpop.f32.mrb[0].mxu0
        %v6190 = vadd.f32 %v5307, %v6189
        %v6191 = vpop.f32.mrb[0].mxu0
        %6192 = vmatprep.mubr.f32.mxu0 0.0
        %6193 = vmatmul.mubr.f32.gmra.mrb[0].mxu0 %v5569
        %v6194 = vpop.f32.mrb[0].mxu0
        %v6195 = vadd.f32 %v5307, %v6194
        %v6196 = vpop.f32.mrb[0].mxu0
        %6197 = vmatprep.mubr.f32.mxu0 0.0
        %6198 = vmatmul.mubr.f32.gmra.mrb[0].mxu0 %v5572
        %v6199 = vpop.f32.mrb[0].mxu0
        %v6200 = vadd.f32 %v5307, %v6199
        %v6201 = vpop.f32.mrb[0].mxu0
        %6202 = vmatprep.mubr.f32.mxu0 0.0
        %6203 = vmatmul.mubr.f32.gmra.mrb[0].mxu0 %v5575
        %v6204 = vpop.f32.mrb[0].mxu0
        %v6205 = vadd.f32 %v5307, %v6204
        %v6206 = vpop.f32.mrb[0].mxu0
        %6207 = vmatprep.mubr.f32.mxu0 0.0
        %6208 = vmatmul.mubr.f32.gmra.mrb[0].mxu0 %v5578
        %v6209 = vpop.f32.mrb[0].mxu0
        %v6210 = vadd.f32 %v5307, %v6209
        %v6211 = vpop.f32.mrb[0].mxu0
        %6212 = vmatprep.mubr.f32.mxu0 0.0
        %6213 = vmatmul.mubr.f32.gmra.mrb[0].mxu0 %v5581
        %v6214 = vpop.f32.mrb[0].mxu0
        %v6215 = vadd.f32 %v5307, %v6214
        %v6216 = vpop.f32.mrb[0].mxu0
        %6217 = vmatprep.mubr.f32.mxu0 0.0
        %6218 = vmatmul.mubr.f32.gmra.mrb[0].mxu0 %v5584
        %v6219 = vpop.f32.mrb[0].mxu0
        %v6220 = vadd.f32 %v5307, %v6219
        %v6221 = vpop.f32.mrb[0].mxu0
        %6222 = vmatprep.mubr.f32.mxu0 0.0
        %6223 = vmatmul.mubr.f32.gmra.mrb[0].mxu0 %v5587
        %v6224 = vpop.f32.mrb[0].mxu0
        %v6225 = vadd.f32 %v5307, %v6224
        %v6226 = vpop.f32.mrb[0].mxu0
        %6227 = vmatprep.mubr.f32.mxu0 0.0
        %6228 = vmatmul.mubr.f32.gmra.mrb[0].mxu0 %v5590
        %v6229 = vpop.f32.mrb[0].mxu0
        %v6230 = vadd.f32 %v5307, %v6229
        %v6231 = vpop.f32.mrb[0].mxu0
        %6232 = vmatprep.mubr.f32.mxu0 0.0
        %6233 = vmatmul.mubr.f32.gmra.mrb[0].mxu0 %v5593
        %v6234 = vpop.f32.mrb[0].mxu0
        %v6235 = vadd.f32 %v5307, %v6234
        %v6236 = vpop.f32.mrb[0].mxu0
        %6237 = vmatprep.mubr.f32.mxu0 0.0
        %6238 = vmatmul.mubr.f32.gmra.mrb[0].mxu0 %v5596
        %v6239 = vpop.f32.mrb[0].mxu0
        %v6240 = vadd.f32 %v5307, %v6239
        %v6241 = vpop.f32.mrb[0].mxu0
        %6242 = vmatprep.mubr.f32.mxu0 0.0
        %6243 = vmatmul.mubr.f32.gmra.mrb[0].mxu0 %v5599
        %v6244 = vpop.f32.mrb[0].mxu0
        %v6245 = vadd.f32 %v5307, %v6244
        %v6246 = vpop.f32.mrb[0].mxu0
        %6247 = vmatprep.mubr.f32.mxu0 0.0
        %6248 = vmatmul.mubr.f32.gmra.mrb[0].mxu0 %v5602
        %v6249 = vpop.f32.mrb[0].mxu0
        %v6250 = vadd.f32 %v5307, %v6249
        %v6251 = vpop.f32.mrb[0].mxu0
        %6252 = vmatprep.mubr.f32.mxu0 0.0
        %6253 = vmatmul.mubr.f32.gmra.mrb[0].mxu0 %v5605
        %v6254 = vpop.f32.mrb[0].mxu0
        %v6255 = vadd.f32 %v5307, %v6254
        %v6256 = vpop.f32.mrb[0].mxu0
        %6257 = vmatprep.mubr.f32.mxu0 0.0
        %6258 = vmatmul.mubr.f32.gmra.mrb[0].mxu0 %v5608
        %v6259 = vpop.f32.mrb[0].mxu0
        %v6260 = vadd.f32 %v5307, %v6259
        %v6261 = vpop.f32.mrb[0].mxu0
        %6262 = vmatprep.mubr.f32.mxu0 0.0
        %6263 = vmatmul.mubr.f32.gmra.mrb[0].mxu0 %v5611
        %v6264 = vpop.f32.mrb[0].mxu0
        %v6265 = vadd.f32 %v5307, %v6264
        %v6266 = vpop.f32.mrb[0].mxu0
        %6267 = vmatprep.mubr.f32.mxu0 0.0
        %6268 = vmatmul.mubr.f32.gmra.mrb[0].mxu0 %v5614
        %v6269 = vpop.f32.mrb[0].mxu0
        %v6270 = vadd.f32 %v5307, %v6269
        %v6271 = vpop.f32.mrb[0].mxu0
        %6272 = vmatprep.mubr.f32.mxu0 0.0
        %6273 = vmatmul.mubr.f32.gmra.mrb[0].mxu0 %v5617
        %v6274 = vpop.f32.mrb[0].mxu0
        %v6275 = vadd.f32 %v5307, %v6274
        %v6276 = vpop.f32.mrb[0].mxu0
        %6277 = vmatprep.mubr.f32.mxu0 0.0
        %6278 = vmatmul.mubr.f32.gmra.mrb[0].mxu0 %v5620
        %v6279 = vpop.f32.mrb[0].mxu0
        %v6280 = vadd.f32 %v5307, %v6279
        %v6281 = vpop.f32.mrb[0].mxu0
        %6282 = vmatprep.mubr.f32.mxu0 0.0
        %6283 = vmatmul.mubr.f32.gmra.mrb[0].mxu0 %v5623
        %v6284 = vpop.f32.mrb[0].mxu0
        %v6285 = vadd.f32 %v5307, %v6284
        %v6286 = vpop.f32.mrb[0].mxu0
        %6287 = vmatprep.mubr.f32.mxu0 0.0
        %6288 = vmatmul.mubr.f32.gmra.mrb[0].mxu0 %v5626
        %v6289 = vpop.f32.mrb[0].mxu0
        %v6290 = vadd.f32 %v5307, %v6289
        %v6291 = vpop.f32.mrb[0].mxu0
        %6292 = vmatprep.mubr.f32.mxu0 0.0
        %6293 = vmatmul.mubr.f32.gmra.mrb[0].mxu0 %v5629
        %v6294 = vpop.f32.mrb[0].mxu0
        %v6295 = vadd.f32 %v5307, %v6294
        %v6296 = vpop.f32.mrb[0].mxu0
        %6297 = vmatprep.mubr.f32.mxu0 0.0
        %6298 = vmatmul.mubr.f32.gmra.mrb[0].mxu0 %v5632
        %v6299 = vpop.f32.mrb[0].mxu0
        %v6300 = vadd.f32 %v5307, %v6299
        %v6301 = vpop.f32.mrb[0].mxu0
        %6302 = vmatprep.mubr.f32.mxu0 0.0
        %6303 = vmatmul.mubr.f32.gmra.mrb[0].mxu0 %v5635
        %v6304 = vpop.f32.mrb[0].mxu0
        %v6305 = vadd.f32 %v5307, %v6304
        %v6306 = vpop.f32.mrb[0].mxu0
        %6307 = vmatprep.mubr.f32.mxu0 0.0
        %6308 = vmatmul.mubr.f32.gmra.mrb[0].mxu0 %v5638
        %v6309 = vpop.f32.mrb[0].mxu0
        %v6310 = vadd.f32 %v5307, %v6309
        %v6311 = vpop.f32.mrb[0].mxu0
        %6312 = vmatprep.mubr.f32.mxu0 0.0
        %6313 = vmatmul.mubr.f32.gmra.mrb[0].mxu0 %v5641
        %v6314 = vpop.f32.mrb[0].mxu0
        %v6315 = vadd.f32 %v5307, %v6314
        %v6316 = vpop.f32.mrb[0].mxu0
        %6317 = vmatprep.mubr.f32.mxu0 0.0
        %6318 = vmatmul.mubr.f32.gmra.mrb[0].mxu0 %v5644
        %v6319 = vpop.f32.mrb[0].mxu0
        %v6320 = vadd.f32 %v5307, %v6319
        %v6321 = vpop.f32.mrb[0].mxu0
        %6322 = vmatprep.mubr.f32.mxu0 0.0
        %6323 = vmatmul.mubr.f32.gmra.mrb[0].mxu0 %v5647
        %v6324 = vpop.f32.mrb[0].mxu0
        %v6325 = vadd.f32 %v5307, %v6324
        %v6326 = vpop.f32.mrb[0].mxu0
        %6327 = vmatprep.mubr.f32.mxu0 0.0
        %6328 = vmatmul.mubr.f32.gmra.mrb[0].mxu0 %v5650
        %v6329 = vpop.f32.mrb[0].mxu0
        %v6330 = vadd.f32 %v5307, %v6329
        %v6331 = vpop.f32.mrb[0].mxu0
        %6332 = vmatprep.mubr.f32.mxu0 0.0
        %6333 = vmatmul.mubr.f32.gmra.mrb[0].mxu0 %v5653
        %v6334 = vpop.f32.mrb[0].mxu0
        %v6335 = vadd.f32 %v5307, %v6334
        %v6336 = vpop.f32.mrb[0].mxu0
        %6337 = vmatprep.mubr.f32.mxu0 0.0
        %6338 = vmatmul.mubr.f32.gmra.mrb[0].mxu0 %v5656
        %v6339 = vpop.f32.mrb[0].mxu0
        %v6340 = vadd.f32 %v5307, %v6339
        %v6341 = vpop.f32.mrb[0].mxu0
        %6342 = vmatprep.mubr.f32.mxu0 0.0
        %6343 = vmatmul.mubr.f32.gmra.mrb[0].mxu0 %v5659
        %v6344 = vpop.f32.mrb[0].mxu0
        %v6345 = vadd.f32 %v5307, %v6344
        %v6346 = vpop.f32.mrb[0].mxu0
        %6347 = vmatprep.mubr.f32.mxu0 0.0
        %6348 = vmatmul.mubr.f32.gmra.mrb[0].mxu0 %v5662
        %v6349 = vpop.f32.mrb[0].mxu0
        %v6350 = vadd.f32 %v5307, %v6349
        %v6351 = vpop.f32.mrb[0].mxu0
        %6352 = vmatprep.mubr.f32.mxu0 0.0
        %6353 = vmatmul.mubr.f32.gmra.mrb[0].mxu0 %v5665
        %v6354 = vpop.f32.mrb[0].mxu0
        %v6355 = vadd.f32 %v5307, %v6354
        %v6356 = vpop.f32.mrb[0].mxu0
        %6357 = vmatprep.mubr.f32.mxu0 0.0
        %6358 = vmatmul.mubr.f32.gmra.mrb[0].mxu0 %v5668
        %v6359 = vpop.f32.mrb[0].mxu0
        %v6360 = vadd.f32 %v5307, %v6359
        %v6361 = vpop.f32.mrb[0].mxu0
        %6362 = vmatprep.mubr.f32.mxu0 0.0
        %6363 = vmatmul.mubr.f32.gmra.mrb[0].mxu0 %v5671
        %v6364 = vpop.f32.mrb[0].mxu0
        %v6365 = vadd.f32 %v5307, %v6364
        %v6366 = vpop.f32.mrb[0].mxu0
        %6367 = vmatprep.mubr.f32.mxu0 0.0
        %6368 = vmatmul.mubr.f32.gmra.mrb[0].mxu0 %v5674
        %v6369 = vpop.f32.mrb[0].mxu0
        %v6370 = vadd.f32 %v5307, %v6369
        %v6371 = vpop.f32.mrb[0].mxu0
        %6372 = vmatprep.mubr.f32.mxu0 0.0
        %6373 = vmatmul.mubr.f32.gmra.mrb[0].mxu0 %v5677
        %v6374 = vpop.f32.mrb[0].mxu0
        %v6375 = vadd.f32 %v5307, %v6374
        %v6376 = vpop.f32.mrb[0].mxu0
        %6377 = vmatprep.mubr.f32.mxu0 0.0
        %6378 = vmatmul.mubr.f32.gmra.mrb[0].mxu0 %v5680
        %v6379 = vpop.f32.mrb[0].mxu0
        %v6380 = vadd.f32 %v5307, %v6379
        %v6381 = vpop.f32.mrb[0].mxu0
        %6382 = vmatprep.mubr.f32.mxu0 0.0
        %6383 = vmatmul.mubr.f32.gmra.mrb[0].mxu0 %v5683
        %v6384 = vpop.f32.mrb[0].mxu0
        %v6385 = vadd.f32 %v5307, %v6384
        %v6386 = vpop.f32.mrb[0].mxu0
        %6387 = vmatprep.mubr.f32.mxu0 0.0
        %6388 = vmatmul.mubr.f32.gmra.mrb[0].mxu0 %v5686
        %v6389 = vpop.f32.mrb[0].mxu0
        %v6390 = vadd.f32 %v5307, %v6389
        %v6391 = vpop.f32.mrb[0].mxu0
        %6392 = vmatprep.mubr.f32.mxu0 0.0
        %6393 = vmatmul.mubr.f32.gmra.mrb[0].mxu0 %v5689
        %v6394 = vpop.f32.mrb[0].mxu0
        %v6395 = vadd.f32 %v5307, %v6394
        %v6396 = vpop.f32.mrb[0].mxu0
        %6397 = vmatprep.mubr.f32.mxu0 0.0
        %6398 = vmatmul.mubr.f32.gmra.mrb[0].mxu0 %v5692
        %v6399 = vpop.f32.mrb[0].mxu0
        %v6400 = vadd.f32 %v5307, %v6399
        %v6401 = vpop.f32.mrb[0].mxu0
        %6402 = vdwg.mxu0
        %v6403 = vsel %vm4394, %v5765, 0.0
        %v6404 = vsel %vm4394, %v5770, 0.0
        %v6405 = vadd.f32 %v6403, %v6404
        %v6406 = vsel %vm4394, %v5775, 0.0
        %v6407 = vadd.f32 %v6405, %v6406
        %v6408 = vsel %vm4394, %v5780, 0.0
        %v6409 = vadd.f32 %v6407, %v6408
        %v6410 = vsel %vm4394, %v5785, 0.0
        %v6411 = vadd.f32 %v6409, %v6410
        %v6412 = vsel %vm4394, %v5790, 0.0
        %v6413 = vadd.f32 %v6411, %v6412
        %v6414 = vsel %vm4394, %v5795, 0.0
        %v6415 = vadd.f32 %v6413, %v6414
        %v6416 = vsel %vm4394, %v5800, 0.0
        %v6417 = vadd.f32 %v6415, %v6416
        %v6418 = vsel %vm4394, %v5805, 0.0
        %v6419 = vadd.f32 %v6417, %v6418
        %v6420 = vsel %vm4394, %v5810, 0.0
        %v6421 = vadd.f32 %v6419, %v6420
        %v6422 = vsel %vm4394, %v5815, 0.0
        %v6423 = vadd.f32 %v6421, %v6422
        %v6424 = vsel %vm4394, %v5820, 0.0
        %v6425 = vadd.f32 %v6423, %v6424
        %v6426 = vsel %vm4394, %v5825, 0.0
        %v6427 = vadd.f32 %v6425, %v6426
        %v6428 = vsel %vm4394, %v5830, 0.0
        %v6429 = vadd.f32 %v6427, %v6428
        %v6430 = vsel %vm4394, %v5835, 0.0
        %v6431 = vadd.f32 %v6429, %v6430
        %v6432 = vsel %vm4394, %v5840, 0.0
        %v6433 = vadd.f32 %v6431, %v6432
        %v6434 = vsel %vm4394, %v5845, 0.0
        %v6435 = vadd.f32 %v6433, %v6434
        %v6436 = vsel %vm4394, %v5850, 0.0
        %v6437 = vadd.f32 %v6435, %v6436
        %v6438 = vsel %vm4394, %v5855, 0.0
        %v6439 = vadd.f32 %v6437, %v6438
        %v6440 = vsel %vm4394, %v5860, 0.0
        %v6441 = vadd.f32 %v6439, %v6440
        %v6442 = vsel %vm4394, %v5865, 0.0
        %v6443 = vadd.f32 %v6441, %v6442
        %v6444 = vsel %vm4394, %v5870, 0.0
        %v6445 = vadd.f32 %v6443, %v6444
        %v6446 = vsel %vm4394, %v5875, 0.0
        %v6447 = vadd.f32 %v6445, %v6446
        %v6448 = vsel %vm4394, %v5880, 0.0
        %v6449 = vadd.f32 %v6447, %v6448
        %v6450 = vsel %vm4394, %v5885, 0.0
        %v6451 = vadd.f32 %v6449, %v6450
        %v6452 = vsel %vm4394, %v5890, 0.0
        %v6453 = vadd.f32 %v6451, %v6452
        %v6454 = vsel %vm4394, %v5895, 0.0
        %v6455 = vadd.f32 %v6453, %v6454
        %v6456 = vsel %vm4394, %v5900, 0.0
        %v6457 = vadd.f32 %v6455, %v6456
        %v6458 = vsel %vm4394, %v5905, 0.0
        %v6459 = vadd.f32 %v6457, %v6458
        %v6460 = vsel %vm4394, %v5910, 0.0
        %v6461 = vadd.f32 %v6459, %v6460
        %v6462 = vsel %vm4394, %v5915, 0.0
        %v6463 = vadd.f32 %v6461, %v6462
        %v6464 = vsel %vm4394, %v5920, 0.0
        %v6465 = vadd.f32 %v6463, %v6464
        %v6466 = vsel %vm4394, %v5925, 0.0
        %v6467 = vadd.f32 %v6465, %v6466
        %v6468 = vsel %vm4394, %v5930, 0.0
        %v6469 = vadd.f32 %v6467, %v6468
        %v6470 = vsel %vm4394, %v5935, 0.0
        %v6471 = vadd.f32 %v6469, %v6470
        %v6472 = vsel %vm4394, %v5940, 0.0
        %v6473 = vadd.f32 %v6471, %v6472
        %v6474 = vsel %vm4394, %v5945, 0.0
        %v6475 = vadd.f32 %v6473, %v6474
        %v6476 = vsel %vm4394, %v5950, 0.0
        %v6477 = vadd.f32 %v6475, %v6476
        %v6478 = vsel %vm4394, %v5955, 0.0
        %v6479 = vadd.f32 %v6477, %v6478
        %v6480 = vsel %vm4394, %v5960, 0.0
        %v6481 = vadd.f32 %v6479, %v6480
        %v6482 = vsel %vm4394, %v5965, 0.0
        %v6483 = vadd.f32 %v6481, %v6482
        %v6484 = vsel %vm4394, %v5970, 0.0
        %v6485 = vadd.f32 %v6483, %v6484
        %v6486 = vsel %vm4394, %v5975, 0.0
        %v6487 = vadd.f32 %v6485, %v6486
        %v6488 = vsel %vm4394, %v5980, 0.0
        %v6489 = vadd.f32 %v6487, %v6488
        %v6490 = vsel %vm4394, %v5985, 0.0
        %v6491 = vadd.f32 %v6489, %v6490
        %v6492 = vsel %vm4394, %v5990, 0.0
        %v6493 = vadd.f32 %v6491, %v6492
        %v6494 = vsel %vm4394, %v5995, 0.0
        %v6495 = vadd.f32 %v6493, %v6494
        %v6496 = vsel %vm4394, %v6000, 0.0
        %v6497 = vadd.f32 %v6495, %v6496
        %v6498 = vsel %vm4394, %v6005, 0.0
        %v6499 = vadd.f32 %v6497, %v6498
        %v6500 = vsel %vm4394, %v6010, 0.0
        %v6501 = vadd.f32 %v6499, %v6500
        %v6502 = vsel %vm4394, %v6015, 0.0
        %v6503 = vadd.f32 %v6501, %v6502
        %v6504 = vsel %vm4394, %v6020, 0.0
        %v6505 = vadd.f32 %v6503, %v6504
        %v6506 = vsel %vm4394, %v6025, 0.0
        %v6507 = vadd.f32 %v6505, %v6506
        %v6508 = vsel %vm4394, %v6030, 0.0
        %v6509 = vadd.f32 %v6507, %v6508
        %v6510 = vsel %vm4394, %v6035, 0.0
        %v6511 = vadd.f32 %v6509, %v6510
        %v6512 = vsel %vm4394, %v6040, 0.0
        %v6513 = vadd.f32 %v6511, %v6512
        %v6514 = vsel %vm4394, %v6045, 0.0
        %v6515 = vadd.f32 %v6513, %v6514
        %v6516 = vsel %vm4394, %v6050, 0.0
        %v6517 = vadd.f32 %v6515, %v6516
        %v6518 = vsel %vm4394, %v6055, 0.0
        %v6519 = vadd.f32 %v6517, %v6518
        %v6520 = vsel %vm4394, %v6060, 0.0
        %v6521 = vadd.f32 %v6519, %v6520
        %v6522 = vsel %vm4394, %v6065, 0.0
        %v6523 = vadd.f32 %v6521, %v6522
        %v6524 = vsel %vm4394, %v6070, 0.0
        %v6525 = vadd.f32 %v6523, %v6524
        %v6526 = vsel %vm4394, %v6075, 0.0
        %v6527 = vadd.f32 %v6525, %v6526
        %v6528 = vsel %vm4394, %v6080, 0.0
        %v6529 = vadd.f32 %v6527, %v6528
        %v6530 = vsel %vm4394, %v6085, 0.0
        %v6531 = vadd.f32 %v6529, %v6530
        %v6532 = vsel %vm4394, %v6090, 0.0
        %v6533 = vadd.f32 %v6531, %v6532
        %v6534 = vsel %vm4394, %v6095, 0.0
        %v6535 = vadd.f32 %v6533, %v6534
        %v6536 = vsel %vm4394, %v6100, 0.0
        %v6537 = vadd.f32 %v6535, %v6536
        %v6538 = vsel %vm4394, %v6105, 0.0
        %v6539 = vadd.f32 %v6537, %v6538
        %v6540 = vsel %vm4394, %v6110, 0.0
        %v6541 = vadd.f32 %v6539, %v6540
        %v6542 = vsel %vm4394, %v6115, 0.0
        %v6543 = vadd.f32 %v6541, %v6542
        %v6544 = vsel %vm4394, %v6120, 0.0
        %v6545 = vadd.f32 %v6543, %v6544
        %v6546 = vsel %vm4394, %v6125, 0.0
        %v6547 = vadd.f32 %v6545, %v6546
        %v6548 = vsel %vm4394, %v6130, 0.0
        %v6549 = vadd.f32 %v6547, %v6548
        %v6550 = vsel %vm4394, %v6135, 0.0
        %v6551 = vadd.f32 %v6549, %v6550
        %v6552 = vsel %vm4394, %v6140, 0.0
        %v6553 = vadd.f32 %v6551, %v6552
        %v6554 = vsel %vm4394, %v6145, 0.0
        %v6555 = vadd.f32 %v6553, %v6554
        %v6556 = vsel %vm4394, %v6150, 0.0
        %v6557 = vadd.f32 %v6555, %v6556
        %v6558 = vsel %vm4394, %v6155, 0.0
        %v6559 = vadd.f32 %v6557, %v6558
        %v6560 = vsel %vm4394, %v6160, 0.0
        %v6561 = vadd.f32 %v6559, %v6560
        %v6562 = vsel %vm4394, %v6165, 0.0
        %v6563 = vadd.f32 %v6561, %v6562
        %v6564 = vsel %vm4394, %v6170, 0.0
        %v6565 = vadd.f32 %v6563, %v6564
        %v6566 = vsel %vm4394, %v6175, 0.0
        %v6567 = vadd.f32 %v6565, %v6566
        %v6568 = vsel %vm4394, %v6180, 0.0
        %v6569 = vadd.f32 %v6567, %v6568
        %v6570 = vsel %vm4394, %v6185, 0.0
        %v6571 = vadd.f32 %v6569, %v6570
        %v6572 = vsel %vm4394, %v6190, 0.0
        %v6573 = vadd.f32 %v6571, %v6572
        %v6574 = vsel %vm4394, %v6195, 0.0
        %v6575 = vadd.f32 %v6573, %v6574
        %v6576 = vsel %vm4394, %v6200, 0.0
        %v6577 = vadd.f32 %v6575, %v6576
        %v6578 = vsel %vm4394, %v6205, 0.0
        %v6579 = vadd.f32 %v6577, %v6578
        %v6580 = vsel %vm4394, %v6210, 0.0
        %v6581 = vadd.f32 %v6579, %v6580
        %v6582 = vsel %vm4394, %v6215, 0.0
        %v6583 = vadd.f32 %v6581, %v6582
        %v6584 = vsel %vm4394, %v6220, 0.0
        %v6585 = vadd.f32 %v6583, %v6584
        %v6586 = vsel %vm4394, %v6225, 0.0
        %v6587 = vadd.f32 %v6585, %v6586
        %v6588 = vsel %vm4394, %v6230, 0.0
        %v6589 = vadd.f32 %v6587, %v6588
        %v6590 = vsel %vm4394, %v6235, 0.0
        %v6591 = vadd.f32 %v6589, %v6590
        %v6592 = vsel %vm4394, %v6240, 0.0
        %v6593 = vadd.f32 %v6591, %v6592
        %v6594 = vsel %vm4394, %v6245, 0.0
        %v6595 = vadd.f32 %v6593, %v6594
        %v6596 = vsel %vm4394, %v6250, 0.0
        %v6597 = vadd.f32 %v6595, %v6596
        %v6598 = vsel %vm4394, %v6255, 0.0
        %v6599 = vadd.f32 %v6597, %v6598
        %v6600 = vsel %vm4394, %v6260, 0.0
        %v6601 = vadd.f32 %v6599, %v6600
        %v6602 = vsel %vm4394, %v6265, 0.0
        %v6603 = vadd.f32 %v6601, %v6602
        %v6604 = vsel %vm4394, %v6270, 0.0
        %v6605 = vadd.f32 %v6603, %v6604
        %v6606 = vsel %vm4394, %v6275, 0.0
        %v6607 = vadd.f32 %v6605, %v6606
        %v6608 = vsel %vm4394, %v6280, 0.0
        %v6609 = vadd.f32 %v6607, %v6608
        %v6610 = vsel %vm4394, %v6285, 0.0
        %v6611 = vadd.f32 %v6609, %v6610
        %v6612 = vsel %vm4394, %v6290, 0.0
        %v6613 = vadd.f32 %v6611, %v6612
        %v6614 = vsel %vm4394, %v6295, 0.0
        %v6615 = vadd.f32 %v6613, %v6614
        %v6616 = vsel %vm4394, %v6300, 0.0
        %v6617 = vadd.f32 %v6615, %v6616
        %v6618 = vsel %vm4394, %v6305, 0.0
        %v6619 = vadd.f32 %v6617, %v6618
        %v6620 = vsel %vm4394, %v6310, 0.0
        %v6621 = vadd.f32 %v6619, %v6620
        %v6622 = vsel %vm4394, %v6315, 0.0
        %v6623 = vadd.f32 %v6621, %v6622
        %v6624 = vsel %vm4394, %v6320, 0.0
        %v6625 = vadd.f32 %v6623, %v6624
        %v6626 = vsel %vm4394, %v6325, 0.0
        %v6627 = vadd.f32 %v6625, %v6626
        %v6628 = vsel %vm4394, %v6330, 0.0
        %v6629 = vadd.f32 %v6627, %v6628
        %v6630 = vsel %vm4394, %v6335, 0.0
        %v6631 = vadd.f32 %v6629, %v6630
        %v6632 = vsel %vm4394, %v6340, 0.0
        %v6633 = vadd.f32 %v6631, %v6632
        %v6634 = vsel %vm4394, %v6345, 0.0
        %v6635 = vadd.f32 %v6633, %v6634
        %v6636 = vsel %vm4394, %v6350, 0.0
        %v6637 = vadd.f32 %v6635, %v6636
        %v6638 = vsel %vm4394, %v6355, 0.0
        %v6639 = vadd.f32 %v6637, %v6638
        %v6640 = vsel %vm4394, %v6360, 0.0
        %v6641 = vadd.f32 %v6639, %v6640
        %v6642 = vsel %vm4394, %v6365, 0.0
        %v6643 = vadd.f32 %v6641, %v6642
        %v6644 = vsel %vm4394, %v6370, 0.0
        %v6645 = vadd.f32 %v6643, %v6644
        %v6646 = vsel %vm4394, %v6375, 0.0
        %v6647 = vadd.f32 %v6645, %v6646
        %v6648 = vsel %vm4394, %v6380, 0.0
        %v6649 = vadd.f32 %v6647, %v6648
        %v6650 = vsel %vm4394, %v6385, 0.0
        %v6651 = vadd.f32 %v6649, %v6650
        %v6652 = vsel %vm4394, %v6390, 0.0
        %v6653 = vadd.f32 %v6651, %v6652
        %v6654 = vsel %vm4394, %v6395, 0.0
        %v6655 = vadd.f32 %v6653, %v6654
        %v6656 = vsel %vm4394, %v6400, 0.0
        %v6657 = vadd.f32 %v6655, %v6656
        %v6658 = vrot.slane %v6657, 4
        %v6659 = vadd.f32 %v6657, %v6658
        %v6660 = vrot.slane %v6659, 2
        %v6661 = vadd.f32 %v6659, %v6660
        %v6662 = vrot.slane %v6661, 1
        %v6663 = vadd.f32 %v6661, %v6662
        %vm6664 = vcmask 57344
        %6665 = vst.msk [vmem:[%s227] sm:$0x1] %vm6664, %v6663
        %v6666 = vmul.f32 %v5765, %v5765
        %v6667 = vmul.f32 %v5770, %v5770
        %v6668 = vmul.f32 %v5775, %v5775
        %v6669 = vmul.f32 %v5780, %v5780
        %v6670 = vmul.f32 %v5785, %v5785
        %v6671 = vmul.f32 %v5790, %v5790
        %v6672 = vmul.f32 %v5795, %v5795
        %v6673 = vmul.f32 %v5800, %v5800
        %v6674 = vmul.f32 %v5805, %v5805
        %v6675 = vmul.f32 %v5810, %v5810
        %v6676 = vmul.f32 %v5815, %v5815
        %v6677 = vmul.f32 %v5820, %v5820
        %v6678 = vmul.f32 %v5825, %v5825
        %v6679 = vmul.f32 %v5830, %v5830
        %v6680 = vmul.f32 %v5835, %v5835
        %v6681 = vmul.f32 %v5840, %v5840
        %v6682 = vmul.f32 %v5845, %v5845
        %v6683 = vmul.f32 %v5850, %v5850
        %v6684 = vmul.f32 %v5855, %v5855
        %v6685 = vmul.f32 %v5860, %v5860
        %v6686 = vmul.f32 %v5865, %v5865
        %v6687 = vmul.f32 %v5870, %v5870
        %v6688 = vmul.f32 %v5875, %v5875
        %v6689 = vmul.f32 %v5880, %v5880
        %v6690 = vmul.f32 %v5885, %v5885
        %v6691 = vmul.f32 %v5890, %v5890
        %v6692 = vmul.f32 %v5895, %v5895
        %v6693 = vmul.f32 %v5900, %v5900
        %v6694 = vmul.f32 %v5905, %v5905
        %v6695 = vmul.f32 %v5910, %v5910
        %v6696 = vmul.f32 %v5915, %v5915
        %v6697 = vmul.f32 %v5920, %v5920
        %v6698 = vmul.f32 %v5925, %v5925
        %v6699 = vmul.f32 %v5930, %v5930
        %v6700 = vmul.f32 %v5935, %v5935
        %v6701 = vmul.f32 %v5940, %v5940
        %v6702 = vmul.f32 %v5945, %v5945
        %v6703 = vmul.f32 %v5950, %v5950
        %v6704 = vmul.f32 %v5955, %v5955
        %v6705 = vmul.f32 %v5960, %v5960
        %v6706 = vmul.f32 %v5965, %v5965
        %v6707 = vmul.f32 %v5970, %v5970
        %v6708 = vmul.f32 %v5975, %v5975
        %v6709 = vmul.f32 %v5980, %v5980
        %v6710 = vmul.f32 %v5985, %v5985
        %v6711 = vmul.f32 %v5990, %v5990
        %v6712 = vmul.f32 %v5995, %v5995
        %v6713 = vmul.f32 %v6000, %v6000
        %v6714 = vmul.f32 %v6005, %v6005
        %v6715 = vmul.f32 %v6010, %v6010
        %v6716 = vmul.f32 %v6015, %v6015
        %v6717 = vmul.f32 %v6020, %v6020
        %v6718 = vmul.f32 %v6025, %v6025
        %v6719 = vmul.f32 %v6030, %v6030
        %v6720 = vmul.f32 %v6035, %v6035
        %v6721 = vmul.f32 %v6040, %v6040
        %v6722 = vmul.f32 %v6045, %v6045
        %v6723 = vmul.f32 %v6050, %v6050
        %v6724 = vmul.f32 %v6055, %v6055
        %v6725 = vmul.f32 %v6060, %v6060
        %v6726 = vmul.f32 %v6065, %v6065
        %v6727 = vmul.f32 %v6070, %v6070
        %v6728 = vmul.f32 %v6075, %v6075
        %v6729 = vmul.f32 %v6080, %v6080
        %v6730 = vmul.f32 %v6085, %v6085
        %v6731 = vmul.f32 %v6090, %v6090
        %v6732 = vmul.f32 %v6095, %v6095
        %v6733 = vmul.f32 %v6100, %v6100
        %v6734 = vmul.f32 %v6105, %v6105
        %v6735 = vmul.f32 %v6110, %v6110
        %v6736 = vmul.f32 %v6115, %v6115
        %v6737 = vmul.f32 %v6120, %v6120
        %v6738 = vmul.f32 %v6125, %v6125
        %v6739 = vmul.f32 %v6130, %v6130
        %v6740 = vmul.f32 %v6135, %v6135
        %v6741 = vmul.f32 %v6140, %v6140
        %v6742 = vmul.f32 %v6145, %v6145
        %v6743 = vmul.f32 %v6150, %v6150
        %v6744 = vmul.f32 %v6155, %v6155
        %v6745 = vmul.f32 %v6160, %v6160
        %v6746 = vmul.f32 %v6165, %v6165
        %v6747 = vmul.f32 %v6170, %v6170
        %v6748 = vmul.f32 %v6175, %v6175
        %v6749 = vmul.f32 %v6180, %v6180
        %v6750 = vmul.f32 %v6185, %v6185
        %v6751 = vmul.f32 %v6190, %v6190
        %v6752 = vmul.f32 %v6195, %v6195
        %v6753 = vmul.f32 %v6200, %v6200
        %v6754 = vmul.f32 %v6205, %v6205
        %v6755 = vmul.f32 %v6210, %v6210
        %v6756 = vmul.f32 %v6215, %v6215
        %v6757 = vmul.f32 %v6220, %v6220
        %v6758 = vmul.f32 %v6225, %v6225
        %v6759 = vmul.f32 %v6230, %v6230
        %v6760 = vmul.f32 %v6235, %v6235
        %v6761 = vmul.f32 %v6240, %v6240
        %v6762 = vmul.f32 %v6245, %v6245
        %v6763 = vmul.f32 %v6250, %v6250
        %v6764 = vmul.f32 %v6255, %v6255
        %v6765 = vmul.f32 %v6260, %v6260
        %v6766 = vmul.f32 %v6265, %v6265
        %v6767 = vmul.f32 %v6270, %v6270
        %v6768 = vmul.f32 %v6275, %v6275
        %v6769 = vmul.f32 %v6280, %v6280
        %v6770 = vmul.f32 %v6285, %v6285
        %v6771 = vmul.f32 %v6290, %v6290
        %v6772 = vmul.f32 %v6295, %v6295
        %v6773 = vmul.f32 %v6300, %v6300
        %v6774 = vmul.f32 %v6305, %v6305
        %v6775 = vmul.f32 %v6310, %v6310
        %v6776 = vmul.f32 %v6315, %v6315
        %v6777 = vmul.f32 %v6320, %v6320
        %v6778 = vmul.f32 %v6325, %v6325
        %v6779 = vmul.f32 %v6330, %v6330
        %v6780 = vmul.f32 %v6335, %v6335
        %v6781 = vmul.f32 %v6340, %v6340
        %v6782 = vmul.f32 %v6345, %v6345
        %v6783 = vmul.f32 %v6350, %v6350
        %v6784 = vmul.f32 %v6355, %v6355
        %v6785 = vmul.f32 %v6360, %v6360
        %v6786 = vmul.f32 %v6365, %v6365
        %v6787 = vmul.f32 %v6370, %v6370
        %v6788 = vmul.f32 %v6375, %v6375
        %v6789 = vmul.f32 %v6380, %v6380
        %v6790 = vmul.f32 %v6385, %v6385
        %v6791 = vmul.f32 %v6390, %v6390
        %v6792 = vmul.f32 %v6395, %v6395
        %v6793 = vmul.f32 %v6400, %v6400
        %v6794 = vsel %vm4394, %v6666, 0.0
        %v6795 = vsel %vm4394, %v6667, 0.0
        %v6796 = vadd.f32 %v6794, %v6795
        %v6797 = vsel %vm4394, %v6668, 0.0
        %v6798 = vadd.f32 %v6796, %v6797
        %v6799 = vsel %vm4394, %v6669, 0.0
        %v6800 = vadd.f32 %v6798, %v6799
        %v6801 = vsel %vm4394, %v6670, 0.0
        %v6802 = vadd.f32 %v6800, %v6801
        %v6803 = vsel %vm4394, %v6671, 0.0
        %v6804 = vadd.f32 %v6802, %v6803
        %v6805 = vsel %vm4394, %v6672, 0.0
        %v6806 = vadd.f32 %v6804, %v6805
        %v6807 = vsel %vm4394, %v6673, 0.0
        %v6808 = vadd.f32 %v6806, %v6807
        %v6809 = vsel %vm4394, %v6674, 0.0
        %v6810 = vadd.f32 %v6808, %v6809
        %v6811 = vsel %vm4394, %v6675, 0.0
        %v6812 = vadd.f32 %v6810, %v6811
        %v6813 = vsel %vm4394, %v6676, 0.0
        %v6814 = vadd.f32 %v6812, %v6813
        %v6815 = vsel %vm4394, %v6677, 0.0
        %v6816 = vadd.f32 %v6814, %v6815
        %v6817 = vsel %vm4394, %v6678, 0.0
        %v6818 = vadd.f32 %v6816, %v6817
        %v6819 = vsel %vm4394, %v6679, 0.0
        %v6820 = vadd.f32 %v6818, %v6819
        %v6821 = vsel %vm4394, %v6680, 0.0
        %v6822 = vadd.f32 %v6820, %v6821
        %v6823 = vsel %vm4394, %v6681, 0.0
        %v6824 = vadd.f32 %v6822, %v6823
        %v6825 = vsel %vm4394, %v6682, 0.0
        %v6826 = vadd.f32 %v6824, %v6825
        %v6827 = vsel %vm4394, %v6683, 0.0
        %v6828 = vadd.f32 %v6826, %v6827
        %v6829 = vsel %vm4394, %v6684, 0.0
        %v6830 = vadd.f32 %v6828, %v6829
        %v6831 = vsel %vm4394, %v6685, 0.0
        %v6832 = vadd.f32 %v6830, %v6831
        %v6833 = vsel %vm4394, %v6686, 0.0
        %v6834 = vadd.f32 %v6832, %v6833
        %v6835 = vsel %vm4394, %v6687, 0.0
        %v6836 = vadd.f32 %v6834, %v6835
        %v6837 = vsel %vm4394, %v6688, 0.0
        %v6838 = vadd.f32 %v6836, %v6837
        %v6839 = vsel %vm4394, %v6689, 0.0
        %v6840 = vadd.f32 %v6838, %v6839
        %v6841 = vsel %vm4394, %v6690, 0.0
        %v6842 = vadd.f32 %v6840, %v6841
        %v6843 = vsel %vm4394, %v6691, 0.0
        %v6844 = vadd.f32 %v6842, %v6843
        %v6845 = vsel %vm4394, %v6692, 0.0
        %v6846 = vadd.f32 %v6844, %v6845
        %v6847 = vsel %vm4394, %v6693, 0.0
        %v6848 = vadd.f32 %v6846, %v6847
        %v6849 = vsel %vm4394, %v6694, 0.0
        %v6850 = vadd.f32 %v6848, %v6849
        %v6851 = vsel %vm4394, %v6695, 0.0
        %v6852 = vadd.f32 %v6850, %v6851
        %v6853 = vsel %vm4394, %v6696, 0.0
        %v6854 = vadd.f32 %v6852, %v6853
        %v6855 = vsel %vm4394, %v6697, 0.0
        %v6856 = vadd.f32 %v6854, %v6855
        %v6857 = vsel %vm4394, %v6698, 0.0
        %v6858 = vadd.f32 %v6856, %v6857
        %v6859 = vsel %vm4394, %v6699, 0.0
        %v6860 = vadd.f32 %v6858, %v6859
        %v6861 = vsel %vm4394, %v6700, 0.0
        %v6862 = vadd.f32 %v6860, %v6861
        %v6863 = vsel %vm4394, %v6701, 0.0
        %v6864 = vadd.f32 %v6862, %v6863
        %v6865 = vsel %vm4394, %v6702, 0.0
        %v6866 = vadd.f32 %v6864, %v6865
        %v6867 = vsel %vm4394, %v6703, 0.0
        %v6868 = vadd.f32 %v6866, %v6867
        %v6869 = vsel %vm4394, %v6704, 0.0
        %v6870 = vadd.f32 %v6868, %v6869
        %v6871 = vsel %vm4394, %v6705, 0.0
        %v6872 = vadd.f32 %v6870, %v6871
        %v6873 = vsel %vm4394, %v6706, 0.0
        %v6874 = vadd.f32 %v6872, %v6873
        %v6875 = vsel %vm4394, %v6707, 0.0
        %v6876 = vadd.f32 %v6874, %v6875
        %v6877 = vsel %vm4394, %v6708, 0.0
        %v6878 = vadd.f32 %v6876, %v6877
        %v6879 = vsel %vm4394, %v6709, 0.0
        %v6880 = vadd.f32 %v6878, %v6879
        %v6881 = vsel %vm4394, %v6710, 0.0
        %v6882 = vadd.f32 %v6880, %v6881
        %v6883 = vsel %vm4394, %v6711, 0.0
        %v6884 = vadd.f32 %v6882, %v6883
        %v6885 = vsel %vm4394, %v6712, 0.0
        %v6886 = vadd.f32 %v6884, %v6885
        %v6887 = vsel %vm4394, %v6713, 0.0
        %v6888 = vadd.f32 %v6886, %v6887
        %v6889 = vsel %vm4394, %v6714, 0.0
        %v6890 = vadd.f32 %v6888, %v6889
        %v6891 = vsel %vm4394, %v6715, 0.0
        %v6892 = vadd.f32 %v6890, %v6891
        %v6893 = vsel %vm4394, %v6716, 0.0
        %v6894 = vadd.f32 %v6892, %v6893
        %v6895 = vsel %vm4394, %v6717, 0.0
        %v6896 = vadd.f32 %v6894, %v6895
        %v6897 = vsel %vm4394, %v6718, 0.0
        %v6898 = vadd.f32 %v6896, %v6897
        %v6899 = vsel %vm4394, %v6719, 0.0
        %v6900 = vadd.f32 %v6898, %v6899
        %v6901 = vsel %vm4394, %v6720, 0.0
        %v6902 = vadd.f32 %v6900, %v6901
        %v6903 = vsel %vm4394, %v6721, 0.0
        %v6904 = vadd.f32 %v6902, %v6903
        %v6905 = vsel %vm4394, %v6722, 0.0
        %v6906 = vadd.f32 %v6904, %v6905
        %v6907 = vsel %vm4394, %v6723, 0.0
        %v6908 = vadd.f32 %v6906, %v6907
        %v6909 = vsel %vm4394, %v6724, 0.0
        %v6910 = vadd.f32 %v6908, %v6909
        %v6911 = vsel %vm4394, %v6725, 0.0
        %v6912 = vadd.f32 %v6910, %v6911
        %v6913 = vsel %vm4394, %v6726, 0.0
        %v6914 = vadd.f32 %v6912, %v6913
        %v6915 = vsel %vm4394, %v6727, 0.0
        %v6916 = vadd.f32 %v6914, %v6915
        %v6917 = vsel %vm4394, %v6728, 0.0
        %v6918 = vadd.f32 %v6916, %v6917
        %v6919 = vsel %vm4394, %v6729, 0.0
        %v6920 = vadd.f32 %v6918, %v6919
        %v6921 = vsel %vm4394, %v6730, 0.0
        %v6922 = vadd.f32 %v6920, %v6921
        %v6923 = vsel %vm4394, %v6731, 0.0
        %v6924 = vadd.f32 %v6922, %v6923
        %v6925 = vsel %vm4394, %v6732, 0.0
        %v6926 = vadd.f32 %v6924, %v6925
        %v6927 = vsel %vm4394, %v6733, 0.0
        %v6928 = vadd.f32 %v6926, %v6927
        %v6929 = vsel %vm4394, %v6734, 0.0
        %v6930 = vadd.f32 %v6928, %v6929
        %v6931 = vsel %vm4394, %v6735, 0.0
        %v6932 = vadd.f32 %v6930, %v6931
        %v6933 = vsel %vm4394, %v6736, 0.0
        %v6934 = vadd.f32 %v6932, %v6933
        %v6935 = vsel %vm4394, %v6737, 0.0
        %v6936 = vadd.f32 %v6934, %v6935
        %v6937 = vsel %vm4394, %v6738, 0.0
        %v6938 = vadd.f32 %v6936, %v6937
        %v6939 = vsel %vm4394, %v6739, 0.0
        %v6940 = vadd.f32 %v6938, %v6939
        %v6941 = vsel %vm4394, %v6740, 0.0
        %v6942 = vadd.f32 %v6940, %v6941
        %v6943 = vsel %vm4394, %v6741, 0.0
        %v6944 = vadd.f32 %v6942, %v6943
        %v6945 = vsel %vm4394, %v6742, 0.0
        %v6946 = vadd.f32 %v6944, %v6945
        %v6947 = vsel %vm4394, %v6743, 0.0
        %v6948 = vadd.f32 %v6946, %v6947
        %v6949 = vsel %vm4394, %v6744, 0.0
        %v6950 = vadd.f32 %v6948, %v6949
        %v6951 = vsel %vm4394, %v6745, 0.0
        %v6952 = vadd.f32 %v6950, %v6951
        %v6953 = vsel %vm4394, %v6746, 0.0
        %v6954 = vadd.f32 %v6952, %v6953
        %v6955 = vsel %vm4394, %v6747, 0.0
        %v6956 = vadd.f32 %v6954, %v6955
        %v6957 = vsel %vm4394, %v6748, 0.0
        %v6958 = vadd.f32 %v6956, %v6957
        %v6959 = vsel %vm4394, %v6749, 0.0
        %v6960 = vadd.f32 %v6958, %v6959
        %v6961 = vsel %vm4394, %v6750, 0.0
        %v6962 = vadd.f32 %v6960, %v6961
        %v6963 = vsel %vm4394, %v6751, 0.0
        %v6964 = vadd.f32 %v6962, %v6963
        %v6965 = vsel %vm4394, %v6752, 0.0
        %v6966 = vadd.f32 %v6964, %v6965
        %v6967 = vsel %vm4394, %v6753, 0.0
        %v6968 = vadd.f32 %v6966, %v6967
        %v6969 = vsel %vm4394, %v6754, 0.0
        %v6970 = vadd.f32 %v6968, %v6969
        %v6971 = vsel %vm4394, %v6755, 0.0
        %v6972 = vadd.f32 %v6970, %v6971
        %v6973 = vsel %vm4394, %v6756, 0.0
        %v6974 = vadd.f32 %v6972, %v6973
        %v6975 = vsel %vm4394, %v6757, 0.0
        %v6976 = vadd.f32 %v6974, %v6975
        %v6977 = vsel %vm4394, %v6758, 0.0
        %v6978 = vadd.f32 %v6976, %v6977
        %v6979 = vsel %vm4394, %v6759, 0.0
        %v6980 = vadd.f32 %v6978, %v6979
        %v6981 = vsel %vm4394, %v6760, 0.0
        %v6982 = vadd.f32 %v6980, %v6981
        %v6983 = vsel %vm4394, %v6761, 0.0
        %v6984 = vadd.f32 %v6982, %v6983
        %v6985 = vsel %vm4394, %v6762, 0.0
        %v6986 = vadd.f32 %v6984, %v6985
        %v6987 = vsel %vm4394, %v6763, 0.0
        %v6988 = vadd.f32 %v6986, %v6987
        %v6989 = vsel %vm4394, %v6764, 0.0
        %v6990 = vadd.f32 %v6988, %v6989
        %v6991 = vsel %vm4394, %v6765, 0.0
        %v6992 = vadd.f32 %v6990, %v6991
        %v6993 = vsel %vm4394, %v6766, 0.0
        %v6994 = vadd.f32 %v6992, %v6993
        %v6995 = vsel %vm4394, %v6767, 0.0
        %v6996 = vadd.f32 %v6994, %v6995
        %v6997 = vsel %vm4394, %v6768, 0.0
        %v6998 = vadd.f32 %v6996, %v6997
        %v6999 = vsel %vm4394, %v6769, 0.0
        %v7000 = vadd.f32 %v6998, %v6999
        %v7001 = vsel %vm4394, %v6770, 0.0
        %v7002 = vadd.f32 %v7000, %v7001
        %v7003 = vsel %vm4394, %v6771, 0.0
        %v7004 = vadd.f32 %v7002, %v7003
        %v7005 = vsel %vm4394, %v6772, 0.0
        %v7006 = vadd.f32 %v7004, %v7005
        %v7007 = vsel %vm4394, %v6773, 0.0
        %v7008 = vadd.f32 %v7006, %v7007
        %v7009 = vsel %vm4394, %v6774, 0.0
        %v7010 = vadd.f32 %v7008, %v7009
        %v7011 = vsel %vm4394, %v6775, 0.0
        %v7012 = vadd.f32 %v7010, %v7011
        %v7013 = vsel %vm4394, %v6776, 0.0
        %v7014 = vadd.f32 %v7012, %v7013
        %v7015 = vsel %vm4394, %v6777, 0.0
        %v7016 = vadd.f32 %v7014, %v7015
        %v7017 = vsel %vm4394, %v6778, 0.0
        %v7018 = vadd.f32 %v7016, %v7017
        %v7019 = vsel %vm4394, %v6779, 0.0
        %v7020 = vadd.f32 %v7018, %v7019
        %v7021 = vsel %vm4394, %v6780, 0.0
        %v7022 = vadd.f32 %v7020, %v7021
        %v7023 = vsel %vm4394, %v6781, 0.0
        %v7024 = vadd.f32 %v7022, %v7023
        %v7025 = vsel %vm4394, %v6782, 0.0
        %v7026 = vadd.f32 %v7024, %v7025
        %v7027 = vsel %vm4394, %v6783, 0.0
        %v7028 = vadd.f32 %v7026, %v7027
        %v7029 = vsel %vm4394, %v6784, 0.0
        %v7030 = vadd.f32 %v7028, %v7029
        %v7031 = vsel %vm4394, %v6785, 0.0
        %v7032 = vadd.f32 %v7030, %v7031
        %v7033 = vsel %vm4394, %v6786, 0.0
        %v7034 = vadd.f32 %v7032, %v7033
        %v7035 = vsel %vm4394, %v6787, 0.0
        %v7036 = vadd.f32 %v7034, %v7035
        %v7037 = vsel %vm4394, %v6788, 0.0
        %v7038 = vadd.f32 %v7036, %v7037
        %v7039 = vsel %vm4394, %v6789, 0.0
        %v7040 = vadd.f32 %v7038, %v7039
        %v7041 = vsel %vm4394, %v6790, 0.0
        %v7042 = vadd.f32 %v7040, %v7041
        %v7043 = vsel %vm4394, %v6791, 0.0
        %v7044 = vadd.f32 %v7042, %v7043
        %v7045 = vsel %vm4394, %v6792, 0.0
        %v7046 = vadd.f32 %v7044, %v7045
        %v7047 = vsel %vm4394, %v6793, 0.0
        %v7048 = vadd.f32 %v7046, %v7047
        %v7049 = vrot.slane %v7048, 4
        %v7050 = vadd.f32 %v7048, %v7049
        %v7051 = vrot.slane %v7050, 2
        %v7052 = vadd.f32 %v7050, %v7051
        %v7053 = vrot.slane %v7052, 1
        %v7054 = vadd.f32 %v7052, %v7053
        %7055 = vst.msk [vmem:[%s233] sm:$0x1] %vm6664, %v7054
        %7056 = vxpose.xlu0.b32.start [1/16] %v5765, 128
        %7057 = vxpose.xlu0.b32.cont [2/16] %v5770, 128
        %7058 = vxpose.xlu0.b32.cont [3/16] %v5775, 128
        %7059 = vxpose.xlu0.b32.cont [4/16] %v5780, 128
        %7060 = vxpose.xlu0.b32.cont [5/16] %v5785, 128
        %7061 = vxpose.xlu0.b32.cont [6/16] %v5790, 128
        %7062 = vxpose.xlu0.b32.cont [7/16] %v5795, 128
        %7063 = vxpose.xlu0.b32.cont [8/16] %v5800, 128
        %7064 = vxpose.xlu0.b32.cont [9/16] %v5805, 128
        %7065 = vxpose.xlu0.b32.cont [10/16] %v5810, 128
        %7066 = vxpose.xlu0.b32.cont [11/16] %v5815, 128
        %7067 = vxpose.xlu0.b32.cont [12/16] %v5820, 128
        %7068 = vxpose.xlu0.b32.cont [13/16] %v5825, 128
        %7069 = vxpose.xlu0.b32.cont [14/16] %v5830, 128
        %7070 = vxpose.xlu0.b32.cont [15/16] %v5835, 128
        %7071 = vxpose.xlu0.b32.end [16/16] %v5840, 128
        %v7072 = vpop.trf.xlu0
        %v7073 = vpop.trf.xlu0
        %v7074 = vpop.trf.xlu0
        %v7075 = vpop.trf.xlu0
        %v7076 = vpop.trf.xlu0
        %v7077 = vpop.trf.xlu0
        %v7078 = vpop.trf.xlu0
        %v7079 = vpop.trf.xlu0
        %v7080 = vpop.trf.xlu0
        %v7081 = vpop.trf.xlu0
        %v7082 = vpop.trf.xlu0
        %v7083 = vpop.trf.xlu0
        %v7084 = vpop.trf.xlu0
        %v7085 = vpop.trf.xlu0
        %v7086 = vpop.trf.xlu0
        %v7087 = vpop.trf.xlu0
        %7088 = vxpose.xlu0.b32.start [1/16] %v5845, 128
        %7089 = vxpose.xlu0.b32.cont [2/16] %v5850, 128
        %7090 = vxpose.xlu0.b32.cont [3/16] %v5855, 128
        %7091 = vxpose.xlu0.b32.cont [4/16] %v5860, 128
        %7092 = vxpose.xlu0.b32.cont [5/16] %v5865, 128
        %7093 = vxpose.xlu0.b32.cont [6/16] %v5870, 128
        %7094 = vxpose.xlu0.b32.cont [7/16] %v5875, 128
        %7095 = vxpose.xlu0.b32.cont [8/16] %v5880, 128
        %7096 = vxpose.xlu0.b32.cont [9/16] %v5885, 128
        %7097 = vxpose.xlu0.b32.cont [10/16] %v5890, 128
        %7098 = vxpose.xlu0.b32.cont [11/16] %v5895, 128
        %7099 = vxpose.xlu0.b32.cont [12/16] %v5900, 128
        %7100 = vxpose.xlu0.b32.cont [13/16] %v5905, 128
        %7101 = vxpose.xlu0.b32.cont [14/16] %v5910, 128
        %7102 = vxpose.xlu0.b32.cont [15/16] %v5915, 128
        %7103 = vxpose.xlu0.b32.end [16/16] %v5920, 128
        %v7104 = vpop.trf.xlu0
        %v7105 = vpop.trf.xlu0
        %v7106 = vpop.trf.xlu0
        %v7107 = vpop.trf.xlu0
        %v7108 = vpop.trf.xlu0
        %v7109 = vpop.trf.xlu0
        %v7110 = vpop.trf.xlu0
        %v7111 = vpop.trf.xlu0
        %v7112 = vpop.trf.xlu0
        %v7113 = vpop.trf.xlu0
        %v7114 = vpop.trf.xlu0
        %v7115 = vpop.trf.xlu0
        %v7116 = vpop.trf.xlu0
        %v7117 = vpop.trf.xlu0
        %v7118 = vpop.trf.xlu0
        %v7119 = vpop.trf.xlu0
        %7120 = vxpose.xlu0.b32.start [1/16] %v5925, 128
        %7121 = vxpose.xlu0.b32.cont [2/16] %v5930, 128
        %7122 = vxpose.xlu0.b32.cont [3/16] %v5935, 128
        %7123 = vxpose.xlu0.b32.cont [4/16] %v5940, 128
        %7124 = vxpose.xlu0.b32.cont [5/16] %v5945, 128
        %7125 = vxpose.xlu0.b32.cont [6/16] %v5950, 128
        %7126 = vxpose.xlu0.b32.cont [7/16] %v5955, 128
        %7127 = vxpose.xlu0.b32.cont [8/16] %v5960, 128
        %7128 = vxpose.xlu0.b32.cont [9/16] %v5965, 128
        %7129 = vxpose.xlu0.b32.cont [10/16] %v5970, 128
        %7130 = vxpose.xlu0.b32.cont [11/16] %v5975, 128
        %7131 = vxpose.xlu0.b32.cont [12/16] %v5980, 128
        %7132 = vxpose.xlu0.b32.cont [13/16] %v5985, 128
        %7133 = vxpose.xlu0.b32.cont [14/16] %v5990, 128
        %7134 = vxpose.xlu0.b32.cont [15/16] %v5995, 128
        %7135 = vxpose.xlu0.b32.end [16/16] %v6000, 128
        %v7136 = vpop.trf.xlu0
        %v7137 = vpop.trf.xlu0
        %v7138 = vpop.trf.xlu0
        %v7139 = vpop.trf.xlu0
        %v7140 = vpop.trf.xlu0
        %v7141 = vpop.trf.xlu0
        %v7142 = vpop.trf.xlu0
        %v7143 = vpop.trf.xlu0
        %v7144 = vpop.trf.xlu0
        %v7145 = vpop.trf.xlu0
        %v7146 = vpop.trf.xlu0
        %v7147 = vpop.trf.xlu0
        %v7148 = vpop.trf.xlu0
        %v7149 = vpop.trf.xlu0
        %v7150 = vpop.trf.xlu0
        %v7151 = vpop.trf.xlu0
        %7152 = vxpose.xlu0.b32.start [1/16] %v6005, 128
        %7153 = vxpose.xlu0.b32.cont [2/16] %v6010, 128
        %7154 = vxpose.xlu0.b32.cont [3/16] %v6015, 128
        %7155 = vxpose.xlu0.b32.cont [4/16] %v6020, 128
        %7156 = vxpose.xlu0.b32.cont [5/16] %v6025, 128
        %7157 = vxpose.xlu0.b32.cont [6/16] %v6030, 128
        %7158 = vxpose.xlu0.b32.cont [7/16] %v6035, 128
        %7159 = vxpose.xlu0.b32.cont [8/16] %v6040, 128
        %7160 = vxpose.xlu0.b32.cont [9/16] %v6045, 128
        %7161 = vxpose.xlu0.b32.cont [10/16] %v6050, 128
        %7162 = vxpose.xlu0.b32.cont [11/16] %v6055, 128
        %7163 = vxpose.xlu0.b32.cont [12/16] %v6060, 128
        %7164 = vxpose.xlu0.b32.cont [13/16] %v6065, 128
        %7165 = vxpose.xlu0.b32.cont [14/16] %v6070, 128
        %7166 = vxpose.xlu0.b32.cont [15/16] %v6075, 128
        %7167 = vxpose.xlu0.b32.end [16/16] %v6080, 128
        %v7168 = vpop.trf.xlu0
        %v7169 = vpop.trf.xlu0
        %v7170 = vpop.trf.xlu0
        %v7171 = vpop.trf.xlu0
        %v7172 = vpop.trf.xlu0
        %v7173 = vpop.trf.xlu0
        %v7174 = vpop.trf.xlu0
        %v7175 = vpop.trf.xlu0
        %v7176 = vpop.trf.xlu0
        %v7177 = vpop.trf.xlu0
        %v7178 = vpop.trf.xlu0
        %v7179 = vpop.trf.xlu0
        %v7180 = vpop.trf.xlu0
        %v7181 = vpop.trf.xlu0
        %v7182 = vpop.trf.xlu0
        %v7183 = vpop.trf.xlu0
        %7184 = vxpose.xlu0.b32.start [1/16] %v6085, 128
        %7185 = vxpose.xlu0.b32.cont [2/16] %v6090, 128
        %7186 = vxpose.xlu0.b32.cont [3/16] %v6095, 128
        %7187 = vxpose.xlu0.b32.cont [4/16] %v6100, 128
        %7188 = vxpose.xlu0.b32.cont [5/16] %v6105, 128
        %7189 = vxpose.xlu0.b32.cont [6/16] %v6110, 128
        %7190 = vxpose.xlu0.b32.cont [7/16] %v6115, 128
        %7191 = vxpose.xlu0.b32.cont [8/16] %v6120, 128
        %7192 = vxpose.xlu0.b32.cont [9/16] %v6125, 128
        %7193 = vxpose.xlu0.b32.cont [10/16] %v6130, 128
        %7194 = vxpose.xlu0.b32.cont [11/16] %v6135, 128
        %7195 = vxpose.xlu0.b32.cont [12/16] %v6140, 128
        %7196 = vxpose.xlu0.b32.cont [13/16] %v6145, 128
        %7197 = vxpose.xlu0.b32.cont [14/16] %v6150, 128
        %7198 = vxpose.xlu0.b32.cont [15/16] %v6155, 128
        %7199 = vxpose.xlu0.b32.end [16/16] %v6160, 128
        %v7200 = vpop.trf.xlu0
        %v7201 = vpop.trf.xlu0
        %v7202 = vpop.trf.xlu0
        %v7203 = vpop.trf.xlu0
        %v7204 = vpop.trf.xlu0
        %v7205 = vpop.trf.xlu0
        %v7206 = vpop.trf.xlu0
        %v7207 = vpop.trf.xlu0
        %v7208 = vpop.trf.xlu0
        %v7209 = vpop.trf.xlu0
        %v7210 = vpop.trf.xlu0
        %v7211 = vpop.trf.xlu0
        %v7212 = vpop.trf.xlu0
        %v7213 = vpop.trf.xlu0
        %v7214 = vpop.trf.xlu0
        %v7215 = vpop.trf.xlu0
        %7216 = vxpose.xlu0.b32.start [1/16] %v6165, 128
        %7217 = vxpose.xlu0.b32.cont [2/16] %v6170, 128
        %7218 = vxpose.xlu0.b32.cont [3/16] %v6175, 128
        %7219 = vxpose.xlu0.b32.cont [4/16] %v6180, 128
        %7220 = vxpose.xlu0.b32.cont [5/16] %v6185, 128
        %7221 = vxpose.xlu0.b32.cont [6/16] %v6190, 128
        %7222 = vxpose.xlu0.b32.cont [7/16] %v6195, 128
        %7223 = vxpose.xlu0.b32.cont [8/16] %v6200, 128
        %7224 = vxpose.xlu0.b32.cont [9/16] %v6205, 128
        %7225 = vxpose.xlu0.b32.cont [10/16] %v6210, 128
        %7226 = vxpose.xlu0.b32.cont [11/16] %v6215, 128
        %7227 = vxpose.xlu0.b32.cont [12/16] %v6220, 128
        %7228 = vxpose.xlu0.b32.cont [13/16] %v6225, 128
        %7229 = vxpose.xlu0.b32.cont [14/16] %v6230, 128
        %7230 = vxpose.xlu0.b32.cont [15/16] %v6235, 128
        %7231 = vxpose.xlu0.b32.end [16/16] %v6240, 128
        %v7232 = vpop.trf.xlu0
        %v7233 = vpop.trf.xlu0
        %v7234 = vpop.trf.xlu0
        %v7235 = vpop.trf.xlu0
        %v7236 = vpop.trf.xlu0
        %v7237 = vpop.trf.xlu0
        %v7238 = vpop.trf.xlu0
        %v7239 = vpop.trf.xlu0
        %v7240 = vpop.trf.xlu0
        %v7241 = vpop.trf.xlu0
        %v7242 = vpop.trf.xlu0
        %v7243 = vpop.trf.xlu0
        %v7244 = vpop.trf.xlu0
        %v7245 = vpop.trf.xlu0
        %v7246 = vpop.trf.xlu0
        %v7247 = vpop.trf.xlu0
        %7248 = vxpose.xlu0.b32.start [1/16] %v6245, 128
        %7249 = vxpose.xlu0.b32.cont [2/16] %v6250, 128
        %7250 = vxpose.xlu0.b32.cont [3/16] %v6255, 128
        %7251 = vxpose.xlu0.b32.cont [4/16] %v6260, 128
        %7252 = vxpose.xlu0.b32.cont [5/16] %v6265, 128
        %7253 = vxpose.xlu0.b32.cont [6/16] %v6270, 128
        %7254 = vxpose.xlu0.b32.cont [7/16] %v6275, 128
        %7255 = vxpose.xlu0.b32.cont [8/16] %v6280, 128
        %7256 = vxpose.xlu0.b32.cont [9/16] %v6285, 128
        %7257 = vxpose.xlu0.b32.cont [10/16] %v6290, 128
        %7258 = vxpose.xlu0.b32.cont [11/16] %v6295, 128
        %7259 = vxpose.xlu0.b32.cont [12/16] %v6300, 128
        %7260 = vxpose.xlu0.b32.cont [13/16] %v6305, 128
        %7261 = vxpose.xlu0.b32.cont [14/16] %v6310, 128
        %7262 = vxpose.xlu0.b32.cont [15/16] %v6315, 128
        %7263 = vxpose.xlu0.b32.end [16/16] %v6320, 128
        %v7264 = vpop.trf.xlu0
        %v7265 = vpop.trf.xlu0
        %v7266 = vpop.trf.xlu0
        %v7267 = vpop.trf.xlu0
        %v7268 = vpop.trf.xlu0
        %v7269 = vpop.trf.xlu0
        %v7270 = vpop.trf.xlu0
        %v7271 = vpop.trf.xlu0
        %v7272 = vpop.trf.xlu0
        %v7273 = vpop.trf.xlu0
        %v7274 = vpop.trf.xlu0
        %v7275 = vpop.trf.xlu0
        %v7276 = vpop.trf.xlu0
        %v7277 = vpop.trf.xlu0
        %v7278 = vpop.trf.xlu0
        %v7279 = vpop.trf.xlu0
        %7280 = vxpose.xlu0.b32.start [1/16] %v6325, 128
        %7281 = vxpose.xlu0.b32.cont [2/16] %v6330, 128
        %7282 = vxpose.xlu0.b32.cont [3/16] %v6335, 128
        %7283 = vxpose.xlu0.b32.cont [4/16] %v6340, 128
        %7284 = vxpose.xlu0.b32.cont [5/16] %v6345, 128
        %7285 = vxpose.xlu0.b32.cont [6/16] %v6350, 128
        %7286 = vxpose.xlu0.b32.cont [7/16] %v6355, 128
        %7287 = vxpose.xlu0.b32.cont [8/16] %v6360, 128
        %7288 = vxpose.xlu0.b32.cont [9/16] %v6365, 128
        %7289 = vxpose.xlu0.b32.cont [10/16] %v6370, 128
        %7290 = vxpose.xlu0.b32.cont [11/16] %v6375, 128
        %7291 = vxpose.xlu0.b32.cont [12/16] %v6380, 128
        %7292 = vxpose.xlu0.b32.cont [13/16] %v6385, 128
        %7293 = vxpose.xlu0.b32.cont [14/16] %v6390, 128
        %7294 = vxpose.xlu0.b32.cont [15/16] %v6395, 128
        %7295 = vxpose.xlu0.b32.end [16/16] %v6400, 128
        %v7296 = vpop.trf.xlu0
        %v7297 = vpop.trf.xlu0
        %v7298 = vpop.trf.xlu0
        %v7299 = vpop.trf.xlu0
        %v7300 = vpop.trf.xlu0
        %v7301 = vpop.trf.xlu0
        %v7302 = vpop.trf.xlu0
        %v7303 = vpop.trf.xlu0
        %v7304 = vpop.trf.xlu0
        %v7305 = vpop.trf.xlu0
        %v7306 = vpop.trf.xlu0
        %v7307 = vpop.trf.xlu0
        %v7308 = vpop.trf.xlu0
        %v7309 = vpop.trf.xlu0
        %v7310 = vpop.trf.xlu0
        %v7311 = vpop.trf.xlu0
        %7312 = vst [vmem:[%s221] sm:$0xff] %v7072
        %7313 = vst [vmem:[%s221 + $0x8] sm:$0xff] %v7104
        %7314 = vst [vmem:[%s221 + $0x10] sm:$0xff] %v7136
        %7315 = vst [vmem:[%s221 + $0x18] sm:$0xff] %v7168
        %7316 = vst [vmem:[%s221 + $0x20] sm:$0xff] %v7200
        %7317 = vst [vmem:[%s221 + $0x28] sm:$0xff] %v7232
        %7318 = vst [vmem:[%s221 + $0x30] sm:$0xff] %v7264
        %7319 = vst [vmem:[%s221 + $0x38] sm:$0xff] %v7296
        %s7320 = sand.u32 %s99, 1
        %s7321 = scalar_lea.sflag [#allocation3], %s7320
        %s7322 = sand.u32 %s99, 1
        %s7323 = smul.addr %s7322, 64
        %s7324 = scalar_lea.vmem [#allocation2], %s7323
        %s7325 = sand.u32 %s23, 1
        %s7326 = scalar_lea.sflag [#allocation5], %s7325
        %s7327 = sand.u32 %s125, 1
        %s7328 = scalar_lea.vmem [#allocation4], %s7327
        %s7329 = sand.u32 %s23, 1
        %s7330 = scalar_lea.sflag [#allocation5], %s7329
        %s7331 = sand.u32 %s151, 1
        %s7332 = scalar_lea.vmem [#allocation6], %s7331
        // Predicated region
        $region33: #{tpu_custom_call.1} parent=31 // pred_check
          %p7333 = pneg %p109
        $region34: #{tpu_custom_call.1} parent=31 // pred_check_branch
          %7335 = sbr.rel (%p7333) target = $region36
        $region35: #{tpu_custom_call.1} parent=31 // pred_region
          %s7337 = ssub.s32 1024, 1024
          %7338 = vsyncadd %s7321, %s7337
          %s7339 = smul.addr %s23, 8
          %s7340 = smul.addr %s7339, 128
          %s7341 = scalar_lea.hbm %s3, %s7340
          %s7343 = sshll.u32 %s7324, 4
          %s7344 = int_to_ptr.vmem [resolvable:$true] %s7343
          %7346 = dma.vmem_to_hbm [thread:$0]  %s7344, 1024, %s7341, %s7321
        $region36: #{tpu_custom_call.1} parent=31 // pred_fallthru
          _
        // Predicated region
        $region37: #{tpu_custom_call.1} parent=31 // pred_check
          %p7347 = pneg %p135
        $region38: #{tpu_custom_call.1} parent=31 // pred_check_branch
          %7349 = sbr.rel (%p7347) target = $region40
        $region39: #{tpu_custom_call.1} parent=31 // pred_region
          %s7351 = ssub.s32 16, 16
          %7352 = vsyncadd %s7326, %s7351
          %s7353 = smul.addr %s23, 16
          %s7354 = scalar_lea.hbm %s4, %s7353
          %s7356 = sshll.u32 %s7328, 4
          %s7357 = int_to_ptr.vmem [resolvable:$true] %s7356
          %7359 = dma.vmem_to_hbm [thread:$0]  %s7357, 16, %s7354, %s7326
        $region40: #{tpu_custom_call.1} parent=31 // pred_fallthru
          _
        // Predicated region
        $region41: #{tpu_custom_call.1} parent=31 // pred_check
          %p7360 = pneg %p161
        $region42: #{tpu_custom_call.1} parent=31 // pred_check_branch
          %7362 = sbr.rel (%p7360) target = $region44
        $region43: #{tpu_custom_call.1} parent=31 // pred_region
          %s7364 = ssub.s32 16, 16
          %7365 = vsyncadd %s7330, %s7364
          %s7366 = smul.addr %s23, 16
          %s7367 = scalar_lea.hbm %s5, %s7366
          %s7369 = sshll.u32 %s7332, 4
          %s7370 = int_to_ptr.vmem [resolvable:$true] %s7369
          %7372 = dma.vmem_to_hbm [thread:$0]  %s7370, 16, %s7367, %s7330
        $region44: #{tpu_custom_call.1} parent=31 // pred_fallthru
          _
      $region32: #{tpu_custom_call.1} parent=5 // pred_fallthru
        _
      %p7373 = scmp.le.s32.totalorder 2, %s18
      // Predicated region
      $region45: #{tpu_custom_call.1} parent=5 // pred_check
        %p7374 = pneg %p7373
      $region46: #{tpu_custom_call.1} parent=5 // pred_check_branch
        %7376 = sbr.rel (%p7374) target = $region48
      $region47: #{tpu_custom_call.1} parent=5 // pred_region
        %s7377 = ssub.s32 %s18, 2
        // Predicated region
        $region49: #{tpu_custom_call.1} parent=47 // pred_check
          %p7378 = pneg %p115
        $region50: #{tpu_custom_call.1} parent=47 // pred_check_branch
          %7380 = sbr.rel (%p7378) target = $region52
        $region51: #{tpu_custom_call.1} parent=47 // pred_region
          %s7381 = sand.u32 %s100, 1
          %s7382 = scalar_lea.sflag [#allocation3], %s7381
          %s7383 = sand.u32 %s100, 1
          %s7384 = smul.addr %s7383, 64
          %s7385 = scalar_lea.vmem [#allocation2], %s7384
          %7386 = dma.done %s7382, 1024
        $region52: #{tpu_custom_call.1} parent=47 // pred_fallthru
          _
        // Predicated region
        $region53: #{tpu_custom_call.1} parent=47 // pred_check
          %p7387 = pneg %p141
        $region54: #{tpu_custom_call.1} parent=47 // pred_check_branch
          %7389 = sbr.rel (%p7387) target = $region56
        $region55: #{tpu_custom_call.1} parent=47 // pred_region
          %s7390 = sand.u32 %s24, 1
          %s7391 = scalar_lea.sflag [#allocation5], %s7390
          %s7392 = sand.u32 %s126, 1
          %s7393 = scalar_lea.vmem [#allocation4], %s7392
          %7394 = dma.done %s7391, 16
        $region56: #{tpu_custom_call.1} parent=47 // pred_fallthru
          _
        // Predicated region
        $region57: #{tpu_custom_call.1} parent=47 // pred_check
          %p7395 = pneg %p167
        $region58: #{tpu_custom_call.1} parent=47 // pred_check_branch
          %7397 = sbr.rel (%p7395) target = $region60
        $region59: #{tpu_custom_call.1} parent=47 // pred_region
          %s7398 = sand.u32 %s24, 1
          %s7399 = scalar_lea.sflag [#allocation5], %s7398
          %s7400 = sand.u32 %s152, 1
          %s7401 = scalar_lea.vmem [#allocation6], %s7400
          %7402 = dma.done %s7399, 16
        $region60: #{tpu_custom_call.1} parent=47 // pred_fallthru
          _
      $region48: #{tpu_custom_call.1} parent=5 // pred_fallthru
        _
    $region6: #{tpu_custom_call.1} parent=1 // loop_footer
      %s22 = sadd.s32 1, %s18
    $region7: #{tpu_custom_call.1} parent=1 // loop_footer_branch
      %17 = sbr.rel target = $region3
    $region8: #{tpu_custom_call.1} parent=1 // loop_exit
      _
    %7403 = vsyncpa [#allocation3], 1
    %s7404 = scalar_lea.sflag [#allocation3], 1
    %7405 = vsyncpa %s7404, 1
    %7406 = vsyncpa [#allocation5], 1
    %s7407 = scalar_lea.sflag [#allocation5], 1
    %7408 = vsyncpa %s7407, 1

</llo_original>
